<compile_context>
chip_gen: v7x
topology: tpu7x:2x2x1
jax: 0.10.0
libtpu: 0.0.40
codegen_flags: <defaults>
</compile_context>

<pallas_src>
import jax
import jax.numpy as jnp
from jax.experimental import pallas as pl
from jax.experimental.pallas import tpu as pltpu

LANE = 128  # lane-dense padding width for the 1-wide classifier head


# ----------------------------- Pallas kernel ------------------------------- #

def _disc_kernel(x_ref, w0_ref, w1_ref, w2_ref, wf_ref, b_ref, o_ref):
    biases = b_ref[...]                     # (8, nd) f32, rows: b0, b1, b2', bf'

    # Layer 0: Linear(2, nd) + ReLU — two broadcast FMAs on the VPU
    # (avoids a K=2 MXU matmul and its narrow-lane relayout).
    x = x_ref[...]                          # (block_b, 2) f32
    w0 = w0_ref[...]                        # (2, nd) f32
    h = x[:, 0:1] * w0[0:1, :] + x[:, 1:2] * w0[1:2, :] + biases[0:1, :]
    h = jnp.maximum(h, 0.0)

    # Layer 1: Linear(nd, nd) + ReLU  (bf16 operands, f32 accumulation)
    h = jnp.dot(h.astype(jnp.bfloat16), w1_ref[...],
                preferred_element_type=jnp.float32)
    h = jnp.maximum(h + biases[1:2, :], 0.0)

    # Layer 2: Linear(nd, nd) + ReLU, with BatchNorm1 folded into w2 / b2
    h = jnp.dot(h.astype(jnp.bfloat16), w2_ref[...],
                preferred_element_type=jnp.float32)
    h = jnp.maximum(h + biases[2:3, :], 0.0)

    # Head: Linear(nd, 1) padded to a lane-dense 128-wide slab, with
    # BatchNorm2 folded in; sigmoid via EUP exp + approx reciprocal.
    logits = jnp.dot(h.astype(jnp.bfloat16), wf_ref[...],
                     preferred_element_type=jnp.float32)
    logits = logits + biases[3:4, :LANE]
    o_ref[...] = pl.reciprocal(1.0 + jnp.exp(-logits), approx=True).astype(o_ref.dtype)


# ------------------------------ Wrapper ------------------------------------ #

def discriminator_forward_pallas(x, params, *, block_b=256):
    B, din = x.shape
    assert din == 2, din
    nd = params["w1"].shape[0]
    block_b = min(block_b, B)
    assert B % block_b == 0 and block_b % 8 == 0, (B, block_b)

    const = lambda i: (0, 0)          # weights/biases: same block every step
    batched = lambda i: (i, 0)        # activations: tile over the batch axis

    out = pl.pallas_call(
        _disc_kernel,
        out_shape=jax.ShapeDtypeStruct((B, LANE), jnp.float32),
        grid=(B // block_b,),
        in_specs=[
            pl.BlockSpec((block_b, din), batched),   # x           (f32)
            pl.BlockSpec((din, nd), const),          # w0          (f32, VPU path)
            pl.BlockSpec((nd, nd), const),           # w1          (bf16)
            pl.BlockSpec((nd, nd), const),           # w2 folded   (bf16)
            pl.BlockSpec((nd, LANE), const),         # wf folded   (bf16, lane-padded)
            pl.BlockSpec((8, nd), const),            # packed biases (f32)
        ],
        out_specs=pl.BlockSpec((block_b, LANE), batched),
        # Note: on v7x "parallel" shards batch tiles across the 2 TensorCores
        # (each core fetches its own weight copy); worthwhile for large B.
        compiler_params=pltpu.CompilerParams(
            dimension_semantics=("parallel",),
        ),
    )(x, params["w0"], params["w1"], params["w2_folded"],
      params["wf_folded"], params["bias_pack"])

    return out[:, :1]                 # real output is column 0 of the padded head


# ------------------------------ Parameters --------------------------------- #

def init_raw_params(key, nd):
    """Raw f32 parameters mirroring the PyTorch module's init.

    Linear weights ~ N(0, 0.02), biases 0 (init_weights).  BatchNorm running
    stats / affine params are synthetic so the folding path is exercised.
    Weights are stored (in_features, out_features).
    """
    keys = jax.random.split(key, 12)
    p = {
        "w0": 0.02 * jax.random.normal(keys[0], (2, nd), jnp.float32),
        "b0": jnp.zeros((nd,), jnp.float32),
        "w1": 0.02 * jax.random.normal(keys[1], (nd, nd), jnp.float32),
        "b1": jnp.zeros((nd,), jnp.float32),
        "w2": 0.02 * jax.random.normal(keys[2], (nd, nd), jnp.float32),
        "b2": jnp.zeros((nd,), jnp.float32),
        "wf": 0.02 * jax.random.normal(keys[3], (nd, 1), jnp.float32),
        "bf": jnp.zeros((1,), jnp.float32),
    }
    for li, kb in ((1, 4), (2, 8)):
        p[f"bn{li}_gamma"] = 1.0 + 0.1 * jax.random.normal(keys[kb + 0], (nd,), jnp.float32)
        p[f"bn{li}_beta"] = 0.1 * jax.random.normal(keys[kb + 1], (nd,), jnp.float32)
        p[f"bn{li}_mean"] = 0.1 * jax.random.normal(keys[kb + 2], (nd,), jnp.float32)
        p[f"bn{li}_var"] = jax.random.uniform(keys[kb + 3], (nd,), jnp.float32, 0.5, 1.5)
    return p


def pack_params(raw, eps=1e-5):
    """Fold eval-mode BNs into the following Linears, pad the head to 128
    lanes, pack all biases into one (8, nd) array, cast matmul weights to bf16."""
    nd = raw["w1"].shape[0]

    s1 = raw["bn1_gamma"] * jax.lax.rsqrt(raw["bn1_var"] + eps)
    t1 = raw["bn1_beta"] - raw["bn1_mean"] * s1
    s2 = raw["bn2_gamma"] * jax.lax.rsqrt(raw["bn2_var"] + eps)
    t2 = raw["bn2_beta"] - raw["bn2_mean"] * s2

    # (a*s1 + t1) @ w2 + b2  ==  a @ (s1[:,None]*w2) + (t1 @ w2 + b2)
    w2_f = s1[:, None] * raw["w2"]                     # (nd, nd)
    b2_f = t1 @ raw["w2"] + raw["b2"]                  # (nd,)
    wf_f = s2[:, None] * raw["wf"]                     # (nd, 1)
    bf_f = t2 @ raw["wf"] + raw["bf"]                  # (1,)

    wf_pad = jnp.zeros((nd, LANE), jnp.float32).at[:, 0].set(wf_f[:, 0])

    bias_pack = jnp.zeros((8, nd), jnp.float32)
    bias_pack = bias_pack.at[0, :].set(raw["b0"])
    bias_pack = bias_pack.at[1, :].set(raw["b1"])
    bias_pack = bias_pack.at[2, :].set(b2_f)
    bias_pack = bias_pack.at[3, 0].set(bf_f[0])        # head bias in lane 0

    return {
        "w0": raw["w0"].astype(jnp.float32),
        "w1": raw["w1"].astype(jnp.bfloat16),
        "w2_folded": w2_f.astype(jnp.bfloat16),
        "wf_folded": wf_pad.astype(jnp.bfloat16),
        "bias_pack": bias_pack,
    }


# -------------------- Pure-JAX reference (validation only) ----------------- #

def discriminator_forward_reference(x, raw, eps=1e-5):
    h = jnp.maximum(x @ raw["w0"] + raw["b0"], 0.0)
    h = jnp.maximum(h @ raw["w1"] + raw["b1"], 0.0)
    h = (h - raw["bn1_mean"]) * jax.lax.rsqrt(raw["bn1_var"] + eps) \
        * raw["bn1_gamma"] + raw["bn1_beta"]
    h = jnp.maximum(h @ raw["w2"] + raw["b2"], 0.0)
    h = (h - raw["bn2_mean"]) * jax.lax.rsqrt(raw["bn2_var"] + eps) \
        * raw["bn2_gamma"] + raw["bn2_beta"]
    logit = h @ raw["wf"] + raw["bf"]
    return jax.nn.sigmoid(logit)


# ---------------------------------- main ----------------------------------- #

if __name__ == "__main__":
    nd = 512          # module default
    B = 1024          # 4 batch tiles of 256 -> pipelined, >=2 steps/TC on v7x
    key = jax.random.PRNGKey(0)
    kx, kp = jax.random.split(key)
    x = jax.random.normal(kx, (B, 2), jnp.float32)

    raw = init_raw_params(kp, nd)
    params = pack_params(raw)

    fwd = jax.jit(lambda xx: discriminator_forward_pallas(xx, params))
    out = jax.block_until_ready(fwd(x))
    assert out.shape == (B, 1), out.shape

    ref = jax.block_until_ready(
        jax.jit(lambda xx: discriminator_forward_reference(xx, raw))(x))
    max_err = float(jnp.max(jnp.abs(out - ref)))
    assert max_err < 5e-3, f"mismatch vs reference: {max_err}"

    print("KERNEL_OK")
</pallas_src>

<mosaic_0001>
module attributes {stable_mosaic.version = 11 : i64} {
  func.func @_disc_kernel(%arg0: i32, %arg1: memref<256x2xf32, #tpu.memory_space<vmem>>, %arg2: memref<2x512xf32, #tpu.memory_space<vmem>>, %arg3: memref<512x512xbf16, #tpu.memory_space<vmem>>, %arg4: memref<512x512xbf16, #tpu.memory_space<vmem>>, %arg5: memref<512x128xbf16, #tpu.memory_space<vmem>>, %arg6: memref<8x512xf32, #tpu.memory_space<vmem>>, %arg7: memref<256x128xf32, #tpu.memory_space<vmem>>) attributes {dimension_semantics = [#tpu.dimension_semantics<parallel>], iteration_bounds = array<i64: 4>, scalar_prefetch = 0 : i64, scratch_operands = 0 : i64, tpu.core_type = #tpu.core_type<tc>, window_params = [{transform_indices = @transform_0, window_bounds = array<i64: 256, 2>}, {pipeline_mode = #tpu.pipeline_mode<synchronous>, transform_indices = @transform_1, window_bounds = array<i64: 2, 512>}, {pipeline_mode = #tpu.pipeline_mode<synchronous>, transform_indices = @transform_2, window_bounds = array<i64: 512, 512>}, {pipeline_mode = #tpu.pipeline_mode<synchronous>, transform_indices = @transform_3, window_bounds = array<i64: 512, 512>}, {pipeline_mode = #tpu.pipeline_mode<synchronous>, transform_indices = @transform_4, window_bounds = array<i64: 512, 128>}, {pipeline_mode = #tpu.pipeline_mode<synchronous>, transform_indices = @transform_5, window_bounds = array<i64: 8, 512>}, {transform_indices = @transform_6, window_bounds = array<i64: 256, 128>}]} {
    %c0 = arith.constant 0 : index
    %c0_0 = arith.constant 0 : index
    %0 = vector.load %arg6[%c0, %c0_0] : memref<8x512xf32, #tpu.memory_space<vmem>>, vector<8x512xf32>
    %c0_1 = arith.constant 0 : index
    %c0_2 = arith.constant 0 : index
    %1 = vector.load %arg1[%c0_1, %c0_2] : memref<256x2xf32, #tpu.memory_space<vmem>>, vector<256x2xf32>
    %c0_3 = arith.constant 0 : index
    %c0_4 = arith.constant 0 : index
    %2 = vector.load %arg2[%c0_3, %c0_4] : memref<2x512xf32, #tpu.memory_space<vmem>>, vector<2x512xf32>
    %3 = vector.extract_strided_slice %1 {offsets = [0, 0], sizes = [256, 1], strides = [1, 1]} : vector<256x2xf32> to vector<256x1xf32>
    %4 = vector.extract_strided_slice %2 {offsets = [0, 0], sizes = [1, 512], strides = [1, 1]} : vector<2x512xf32> to vector<1x512xf32>
    %5 = vector.broadcast %3 : vector<256x1xf32> to vector<256x512xf32>
    %6 = vector.broadcast %4 : vector<1x512xf32> to vector<256x512xf32>
    %7 = arith.mulf %5, %6 : vector<256x512xf32>
    %8 = vector.extract_strided_slice %1 {offsets = [0, 1], sizes = [256, 1], strides = [1, 1]} : vector<256x2xf32> to vector<256x1xf32>
    %9 = vector.extract_strided_slice %2 {offsets = [1, 0], sizes = [1, 512], strides = [1, 1]} : vector<2x512xf32> to vector<1x512xf32>
    %10 = vector.broadcast %8 : vector<256x1xf32> to vector<256x512xf32>
    %11 = vector.broadcast %9 : vector<1x512xf32> to vector<256x512xf32>
    %12 = arith.mulf %10, %11 : vector<256x512xf32>
    %13 = arith.addf %7, %12 : vector<256x512xf32>
    %14 = vector.extract_strided_slice %0 {offsets = [0, 0], sizes = [1, 512], strides = [1, 1]} : vector<8x512xf32> to vector<1x512xf32>
    %15 = vector.broadcast %14 : vector<1x512xf32> to vector<256x512xf32>
    %16 = arith.addf %13, %15 : vector<256x512xf32>
    %cst = arith.constant 0.000000e+00 : f32
    %17 = vector.broadcast %cst : f32 to vector<256x512xf32>
    %18 = arith.maximumf %16, %17 : vector<256x512xf32>
    %19 = arith.truncf %18 : vector<256x512xf32> to vector<256x512xbf16>
    %c0_5 = arith.constant 0 : index
    %c0_6 = arith.constant 0 : index
    %20 = vector.load %arg3[%c0_5, %c0_6] : memref<512x512xbf16, #tpu.memory_space<vmem>>, vector<512x512xbf16>
    %cst_7 = arith.constant dense<0.000000e+00> : vector<256x512xf32>
    %21 = tpu.matmul %19, %20, %cst_7 {dimension_numbers = #tpu.dot_dimension_numbers<[1], [0], [0], [1], [0, 0, 1, 1], [], []>} : vector<256x512xbf16>, vector<512x512xbf16>, vector<256x512xf32> -> vector<256x512xf32>
    %22 = vector.extract_strided_slice %0 {offsets = [1, 0], sizes = [1, 512], strides = [1, 1]} : vector<8x512xf32> to vector<1x512xf32>
    %23 = vector.broadcast %22 : vector<1x512xf32> to vector<256x512xf32>
    %24 = arith.addf %21, %23 : vector<256x512xf32>
    %cst_8 = arith.constant 0.000000e+00 : f32
    %25 = vector.broadcast %cst_8 : f32 to vector<256x512xf32>
    %26 = arith.maximumf %24, %25 : vector<256x512xf32>
    %27 = arith.truncf %26 : vector<256x512xf32> to vector<256x512xbf16>
    %c0_9 = arith.constant 0 : index
    %c0_10 = arith.constant 0 : index
    %28 = vector.load %arg4[%c0_9, %c0_10] : memref<512x512xbf16, #tpu.memory_space<vmem>>, vector<512x512xbf16>
    %cst_11 = arith.constant dense<0.000000e+00> : vector<256x512xf32>
    %29 = tpu.matmul %27, %28, %cst_11 {dimension_numbers = #tpu.dot_dimension_numbers<[1], [0], [0], [1], [0, 0, 1, 1], [], []>} : vector<256x512xbf16>, vector<512x512xbf16>, vector<256x512xf32> -> vector<256x512xf32>
    %30 = vector.extract_strided_slice %0 {offsets = [2, 0], sizes = [1, 512], strides = [1, 1]} : vector<8x512xf32> to vector<1x512xf32>
    %31 = vector.broadcast %30 : vector<1x512xf32> to vector<256x512xf32>
    %32 = arith.addf %29, %31 : vector<256x512xf32>
    %cst_12 = arith.constant 0.000000e+00 : f32
    %33 = vector.broadcast %cst_12 : f32 to vector<256x512xf32>
    %34 = arith.maximumf %32, %33 : vector<256x512xf32>
    %35 = arith.truncf %34 : vector<256x512xf32> to vector<256x512xbf16>
    %c0_13 = arith.constant 0 : index
    %c0_14 = arith.constant 0 : index
    %36 = vector.load %arg5[%c0_13, %c0_14] : memref<512x128xbf16, #tpu.memory_space<vmem>>, vector<512x128xbf16>
    %cst_15 = arith.constant dense<0.000000e+00> : vector<256x128xf32>
    %37 = tpu.matmul %35, %36, %cst_15 {dimension_numbers = #tpu.dot_dimension_numbers<[1], [0], [0], [1], [0, 0, 1, 1], [], []>} : vector<256x512xbf16>, vector<512x128xbf16>, vector<256x128xf32> -> vector<256x128xf32>
    %38 = vector.extract_strided_slice %0 {offsets = [3, 0], sizes = [1, 128], strides = [1, 1]} : vector<8x512xf32> to vector<1x128xf32>
    %39 = vector.broadcast %38 : vector<1x128xf32> to vector<256x128xf32>
    %40 = arith.addf %37, %39 : vector<256x128xf32>
    %cst_16 = arith.constant 0.000000e+00 : f32
    %41 = vector.broadcast %cst_16 : f32 to vector<256x128xf32>
    %42 = arith.subf %41, %40 : vector<256x128xf32>
    %43 = math.exp %42 : vector<256x128xf32>
    %cst_17 = arith.constant 1.000000e+00 : f32
    %44 = vector.broadcast %cst_17 : f32 to vector<256x128xf32>
    %45 = arith.addf %44, %43 : vector<256x128xf32>
    %46 = tpu.reciprocal %45 {approx = true} : vector<256x128xf32> -> vector<256x128xf32>
    %c0_18 = arith.constant 0 : index
    %c0_19 = arith.constant 0 : index
    %47 = vector.load %arg7[%c0_18, %c0_19] : memref<256x128xf32, #tpu.memory_space<vmem>>, vector<256x128xf32>
    tpu.vector_store %arg7[%c0_18, %c0_19], %46 {strides = array<i32>} : memref<256x128xf32, #tpu.memory_space<vmem>>, vector<256x128xf32>,
    return
  }
  func.func @transform_0(%arg0: i32) -> (i32, i32) {
    %c0_i32 = arith.constant 0 : i32
    %c0_i32_0 = arith.constant 0 : i32
    return %arg0, %c0_i32 : i32, i32
  }
  func.func @transform_1(%arg0: i32) -> (i32, i32) {
    %c0_i32 = arith.constant 0 : i32
    %c0_i32_0 = arith.constant 0 : i32
    %c0_i32_1 = arith.constant 0 : i32
    return %c0_i32, %c0_i32_0 : i32, i32
  }
  func.func @transform_2(%arg0: i32) -> (i32, i32) {
    %c0_i32 = arith.constant 0 : i32
    %c0_i32_0 = arith.constant 0 : i32
    %c0_i32_1 = arith.constant 0 : i32
    return %c0_i32, %c0_i32_0 : i32, i32
  }
  func.func @transform_3(%arg0: i32) -> (i32, i32) {
    %c0_i32 = arith.constant 0 : i32
    %c0_i32_0 = arith.constant 0 : i32
    %c0_i32_1 = arith.constant 0 : i32
    return %c0_i32, %c0_i32_0 : i32, i32
  }
  func.func @transform_4(%arg0: i32) -> (i32, i32) {
    %c0_i32 = arith.constant 0 : i32
    %c0_i32_0 = arith.constant 0 : i32
    %c0_i32_1 = arith.constant 0 : i32
    return %c0_i32, %c0_i32_0 : i32, i32
  }
  func.func @transform_5(%arg0: i32) -> (i32, i32) {
    %c0_i32 = arith.constant 0 : i32
    %c0_i32_0 = arith.constant 0 : i32
    %c0_i32_1 = arith.constant 0 : i32
    return %c0_i32, %c0_i32_0 : i32, i32
  }
  func.func @transform_6(%arg0: i32) -> (i32, i32) {
    %c0_i32 = arith.constant 0 : i32
    %c0_i32_0 = arith.constant 0 : i32
    return %arg0, %c0_i32 : i32, i32
  }
}

</mosaic_0001>

<llo_original>
// kernel: _lambda_.1
$region0: #{_lambda_.1}
  #allocation0 [shape = 'u32[]', space=smem, size = 0x4, offset = 0x4, fixed_abs, tag = 'smem constant byte address 0x4 - core index']
  #allocation1 [shape = 'u32[144,128]{1,0:T(1,128)}', space=vmem, size = 0x12000, scoped, tag = 'internal scratch']
  %s0 = inlined_call_operand.vmem [shape: f32[1024,2], index: 0, kind: input, shape index: {}]
  %s1 = inlined_call_operand.vmem [shape: f32[2,512], index: 1, kind: input, shape index: {}]
  %s2 = inlined_call_operand.vmem [shape: bf16[512,512], index: 2, kind: input, shape index: {}]
  %s3 = inlined_call_operand.vmem [shape: bf16[512,512], index: 3, kind: input, shape index: {}]
  %s4 = inlined_call_operand.vmem [shape: bf16[512,128], index: 4, kind: input, shape index: {}]
  %s5 = inlined_call_operand.vmem [shape: f32[8,512], index: 5, kind: input, shape index: {}]
  %s6 = inlined_call_operand.vmem [shape: f32[1024,128], index: 6, kind: output, shape index: {}]
  %s7 = sld [smem:[#allocation0]]
  $region57: #{_lambda_.1} parent=0
    _
  %s9 = ssub.s32 1, %s7
  %s10 = scalar_select 0, %s9, %s7
  loop: start=0, step=1, limit=6
  $region2: #{_lambda_.1} parent=0 // loop_pre_header
    _
  $region3: #{_lambda_.1} parent=0 // loop_header
    %s12 = sphi 0, %s16
    %p13 = scmp.ge.s32.totalorder %s12, 6
    %s22 = sphi 0, %s24
    %s25 = sphi 0, %s22
    %s26 = sphi 0, %s25
    %s42 = sphi 0, %s26
    %s46 = sphi 0, %s46
    %s48 = sphi 0, %s46
    %s49 = sphi 0, %s48
    %s63 = sphi 0, %s49
    %s67 = sphi 0, %s67
    %s69 = sphi 0, %s67
    %s70 = sphi 0, %s69
    %s84 = sphi 0, %s70
    %s88 = sphi 0, %s88
    %s90 = sphi 0, %s88
    %s91 = sphi 0, %s90
    %s105 = sphi 0, %s91
    %s109 = sphi 0, %s109
    %s111 = sphi 0, %s109
    %s112 = sphi 0, %s111
    %s126 = sphi 0, %s112
    %s130 = sphi 0, %s130
    %s132 = sphi 0, %s130
    %s133 = sphi 0, %s132
    %s147 = sphi 0, %s133
    %s153 = sphi 0, %s155
    %s156 = sphi 0, %s153
    %s157 = sphi 0, %s156
    %s173 = sphi 0, %s157
  $region4: #{_lambda_.1} parent=0 // loop_header_branch
    %15 = sbr.rel (%p13) target = $region8
  $region5: #{_lambda_.1} parent=0 // loop_body
    %s17 = ssub.s32 %s12, 1
    %s18 = ssub.s32 %s12, 2
    %s19 = sadd.s32 %s12, 1
    %s20 = ssub.s32 %s12, %s19
    %p21 = scmp.eq.s32.totalorder %s20, 0
    %s23 = sadd.s32 %s22, 1
    %s24 = scalar_select %p21, %s22, %s23
    %p27 = pneg %p21
    %p28 = scmp.eq.s32.totalorder %s12, 3
    %p29 = por %p27, %p28
    %p30 = scmp.ne.s32.totalorder %s22, %s25
    %p31 = scmp.eq.s32.totalorder %s12, 0
    %p32 = por %p30, %p31
    %p33 = scmp.ne.s32.totalorder %s22, %s25
    %p34 = scmp.eq.s32.totalorder %s17, 3
    %p35 = por %p33, %p34
    %p36 = scmp.ne.s32.totalorder %s25, %s26
    %p37 = scmp.eq.s32.totalorder %s17, 0
    %p38 = por %p36, %p37
    %p39 = scmp.ne.s32.totalorder %s25, %s26
    %p40 = scmp.eq.s32.totalorder %s18, 3
    %p41 = por %p39, %p40
    %p43 = scmp.ne.s32.totalorder %s26, %s42
    %p44 = scmp.eq.s32.totalorder %s18, 0
    %p45 = por %p43, %p44
    %s47 = sadd.s32 %s46, 1
    %p50 = scmp.eq.s32.totalorder %s12, 3
    %p51 = scmp.ne.s32.totalorder %s46, %s48
    %p52 = scmp.eq.s32.totalorder %s12, 0
    %p53 = por %p51, %p52
    %p54 = scmp.ne.s32.totalorder %s46, %s48
    %p55 = scmp.eq.s32.totalorder %s17, 3
    %p56 = por %p54, %p55
    %p57 = scmp.ne.s32.totalorder %s48, %s49
    %p58 = scmp.eq.s32.totalorder %s17, 0
    %p59 = por %p57, %p58
    %p60 = scmp.ne.s32.totalorder %s48, %s49
    %p61 = scmp.eq.s32.totalorder %s18, 3
    %p62 = por %p60, %p61
    %p64 = scmp.ne.s32.totalorder %s49, %s63
    %p65 = scmp.eq.s32.totalorder %s18, 0
    %p66 = por %p64, %p65
    %s68 = sadd.s32 %s67, 1
    %p71 = scmp.eq.s32.totalorder %s12, 3
    %p72 = scmp.ne.s32.totalorder %s67, %s69
    %p73 = scmp.eq.s32.totalorder %s12, 0
    %p74 = por %p72, %p73
    %p75 = scmp.ne.s32.totalorder %s67, %s69
    %p76 = scmp.eq.s32.totalorder %s17, 3
    %p77 = por %p75, %p76
    %p78 = scmp.ne.s32.totalorder %s69, %s70
    %p79 = scmp.eq.s32.totalorder %s17, 0
    %p80 = por %p78, %p79
    %p81 = scmp.ne.s32.totalorder %s69, %s70
    %p82 = scmp.eq.s32.totalorder %s18, 3
    %p83 = por %p81, %p82
    %p85 = scmp.ne.s32.totalorder %s70, %s84
    %p86 = scmp.eq.s32.totalorder %s18, 0
    %p87 = por %p85, %p86
    %s89 = sadd.s32 %s88, 1
    %p92 = scmp.eq.s32.totalorder %s12, 3
    %p93 = scmp.ne.s32.totalorder %s88, %s90
    %p94 = scmp.eq.s32.totalorder %s12, 0
    %p95 = por %p93, %p94
    %p96 = scmp.ne.s32.totalorder %s88, %s90
    %p97 = scmp.eq.s32.totalorder %s17, 3
    %p98 = por %p96, %p97
    %p99 = scmp.ne.s32.totalorder %s90, %s91
    %p100 = scmp.eq.s32.totalorder %s17, 0
    %p101 = por %p99, %p100
    %p102 = scmp.ne.s32.totalorder %s90, %s91
    %p103 = scmp.eq.s32.totalorder %s18, 3
    %p104 = por %p102, %p103
    %p106 = scmp.ne.s32.totalorder %s91, %s105
    %p107 = scmp.eq.s32.totalorder %s18, 0
    %p108 = por %p106, %p107
    %s110 = sadd.s32 %s109, 1
    %p113 = scmp.eq.s32.totalorder %s12, 3
    %p114 = scmp.ne.s32.totalorder %s109, %s111
    %p115 = scmp.eq.s32.totalorder %s12, 0
    %p116 = por %p114, %p115
    %p117 = scmp.ne.s32.totalorder %s109, %s111
    %p118 = scmp.eq.s32.totalorder %s17, 3
    %p119 = por %p117, %p118
    %p120 = scmp.ne.s32.totalorder %s111, %s112
    %p121 = scmp.eq.s32.totalorder %s17, 0
    %p122 = por %p120, %p121
    %p123 = scmp.ne.s32.totalorder %s111, %s112
    %p124 = scmp.eq.s32.totalorder %s18, 3
    %p125 = por %p123, %p124
    %p127 = scmp.ne.s32.totalorder %s112, %s126
    %p128 = scmp.eq.s32.totalorder %s18, 0
    %p129 = por %p127, %p128
    %s131 = sadd.s32 %s130, 1
    %p134 = scmp.eq.s32.totalorder %s12, 3
    %p135 = scmp.ne.s32.totalorder %s130, %s132
    %p136 = scmp.eq.s32.totalorder %s12, 0
    %p137 = por %p135, %p136
    %p138 = scmp.ne.s32.totalorder %s130, %s132
    %p139 = scmp.eq.s32.totalorder %s17, 3
    %p140 = por %p138, %p139
    %p141 = scmp.ne.s32.totalorder %s132, %s133
    %p142 = scmp.eq.s32.totalorder %s17, 0
    %p143 = por %p141, %p142
    %p144 = scmp.ne.s32.totalorder %s132, %s133
    %p145 = scmp.eq.s32.totalorder %s18, 3
    %p146 = por %p144, %p145
    %p148 = scmp.ne.s32.totalorder %s133, %s147
    %p149 = scmp.eq.s32.totalorder %s18, 0
    %p150 = por %p148, %p149
    %s151 = ssub.s32 %s12, %s19
    %p152 = scmp.eq.s32.totalorder %s151, 0
    %s154 = sadd.s32 %s153, 1
    %s155 = scalar_select %p152, %s153, %s154
    %p158 = pneg %p152
    %p159 = scmp.eq.s32.totalorder %s12, 3
    %p160 = por %p158, %p159
    %p161 = scmp.ne.s32.totalorder %s153, %s156
    %p162 = scmp.eq.s32.totalorder %s12, 0
    %p163 = por %p161, %p162
    %p164 = scmp.ne.s32.totalorder %s153, %s156
    %p165 = scmp.eq.s32.totalorder %s17, 3
    %p166 = por %p164, %p165
    %p167 = scmp.ne.s32.totalorder %s156, %s157
    %p168 = scmp.eq.s32.totalorder %s17, 0
    %p169 = por %p167, %p168
    %p170 = scmp.ne.s32.totalorder %s156, %s157
    %p171 = scmp.eq.s32.totalorder %s18, 3
    %p172 = por %p170, %p171
    %p174 = scmp.ne.s32.totalorder %s157, %s173
    %p175 = scmp.eq.s32.totalorder %s18, 0
    %p176 = por %p174, %p175
    %p177 = scmp.le.s32.totalorder 1, %s12
    %p178 = scmp.lt.s32.totalorder %s12, 5
    %p179 = pnand %p177, %p178
    %p180 = pneg %p179
    // Predicated region
    $region9: #{_lambda_.1} parent=5 // pred_check
      _
    $region10: #{_lambda_.1} parent=5 // pred_check_branch
      %182 = sbr.rel (%p179) target = $region12
    $region11: #{_lambda_.1} parent=5 // pred_region
      %s183 = ssub.s32 %s12, 1
      // Predicated region
      $region13: #{_lambda_.1} parent=11 // pred_check
        %p184 = pneg %p59
      $region14: #{_lambda_.1} parent=11 // pred_check_branch
        %186 = sbr.rel (%p184) target = $region16
      $region15: #{_lambda_.1} parent=11 // pred_region
        _
      $region16: #{_lambda_.1} parent=11 // pred_fallthru
        _
      // Predicated region
      $region17: #{_lambda_.1} parent=11 // pred_check
        %p187 = pneg %p80
      $region18: #{_lambda_.1} parent=11 // pred_check_branch
        %189 = sbr.rel (%p187) target = $region20
      $region19: #{_lambda_.1} parent=11 // pred_region
        _
      $region20: #{_lambda_.1} parent=11 // pred_fallthru
        _
      // Predicated region
      $region21: #{_lambda_.1} parent=11 // pred_check
        %p190 = pneg %p101
      $region22: #{_lambda_.1} parent=11 // pred_check_branch
        %192 = sbr.rel (%p190) target = $region24
      $region23: #{_lambda_.1} parent=11 // pred_region
        _
      $region24: #{_lambda_.1} parent=11 // pred_fallthru
        _
      // Predicated region
      $region25: #{_lambda_.1} parent=11 // pred_check
        %p193 = pneg %p122
      $region26: #{_lambda_.1} parent=11 // pred_check_branch
        %195 = sbr.rel (%p193) target = $region28
      $region27: #{_lambda_.1} parent=11 // pred_region
        _
      $region28: #{_lambda_.1} parent=11 // pred_fallthru
        _
      // Predicated region
      $region29: #{_lambda_.1} parent=11 // pred_check
        %p196 = pneg %p143
      $region30: #{_lambda_.1} parent=11 // pred_check_branch
        %198 = sbr.rel (%p196) target = $region32
      $region31: #{_lambda_.1} parent=11 // pred_region
        _
      $region32: #{_lambda_.1} parent=11 // pred_fallthru
        _
    $region12: #{_lambda_.1} parent=5 // pred_fallthru
      _
    %p199 = scmp.lt.s32.totalorder %s12, 4
    // Predicated region
    $region33: #{_lambda_.1} parent=5 // pred_check
      %p200 = pneg %p199
    $region34: #{_lambda_.1} parent=5 // pred_check_branch
      %202 = sbr.rel (%p200) target = $region36
    $region35: #{_lambda_.1} parent=5 // pred_region
      // Predicated region
      $region37: #{_lambda_.1} parent=35 // pred_check
        %p203 = pneg %p32
      $region38: #{_lambda_.1} parent=35 // pred_check_branch
        %205 = sbr.rel (%p203) target = $region40
      $region39: #{_lambda_.1} parent=35 // pred_region
        %s206 = smul.u32 32, %s12
        %p207 = scmp.lt.s32.totalorder %s206, 127
        %s208 = scalar_select %p207, %s206, 127
        %s209 = smul.addr %s208, 8
        %s210 = scalar_lea.vmem %s0, %s209
        %s211 = smul.u32 32, %s12
      $region40: #{_lambda_.1} parent=35 // pred_fallthru
        _
    $region36: #{_lambda_.1} parent=5 // pred_fallthru
      _
    %p212 = scmp.le.s32.totalorder 1, %s12
    %p213 = scmp.lt.s32.totalorder %s12, 5
    %p214 = pnand %p212, %p213
    %p215 = pneg %p214
    // Predicated region
    $region41: #{_lambda_.1} parent=5 // pred_check
      _
    $region42: #{_lambda_.1} parent=5 // pred_check_branch
      %217 = sbr.rel (%p214) target = $region44
    $region43: #{_lambda_.1} parent=5 // pred_region
      %s218 = ssub.s32 %s12, 1
      %s219 = smul.u32 32, %s17
      %p220 = scmp.lt.s32.totalorder %s219, 127
      %s221 = scalar_select %p220, %s219, 127
      %s222 = smul.addr %s221, 8
      %s223 = scalar_lea.vmem %s0, %s222
      %p224 = pneg %p38
      %p225 = pneg %p35
      %p226 = pneg %p59
      %p227 = pneg %p56
      %p228 = pneg %p80
      %p229 = pneg %p77
      %p230 = pneg %p101
      %p231 = pneg %p98
      %p232 = pneg %p122
      %p233 = pneg %p119
      %p234 = pneg %p143
      %p235 = pneg %p140
      %p236 = pneg %p169
      %p237 = pneg %p166
      %s238 = smul.u32 32, %s17
      %p239 = scmp.lt.s32.totalorder %s238, 127
      %s240 = scalar_select %p239, %s238, 127
      %s241 = smul.addr %s240, 8
      %s242 = scalar_lea.vmem %s6, %s241
      %s243 = smul.u32 32, %s17
      %p244 = scmp.lt.s32.totalorder %s243, 127
      %s245 = scalar_select %p244, %s243, 127
      %s246 = smul.addr %s245, 8
      %s247 = scalar_lea.vmem %s0, %s246
      %s248 = smul.u32 32, %s17
      %s249 = smul.u32 32, %s17
      %p250 = scmp.lt.s32.totalorder %s249, 127
      %s251 = scalar_select %p250, %s249, 127
      %s252 = smul.addr %s251, 8
      %s253 = scalar_lea.vmem %s6, %s252
      %s254 = smul.u32 32, %s17
      %v256 = vld [vmem:[%s5] sm:$0xff]
      %v257 = vld [vmem:[%s5 + $0x8] sm:$0xff]
      %v258 = vld [vmem:[%s5 + $0x10] sm:$0xff]
      %v259 = vld [vmem:[%s5 + $0x18] sm:$0xff]
      %v260 = vld [vmem:[%s247] sm:$0xff]
      %v261 = vld [vmem:[%s247 + $0x8] sm:$0xff]
      %v262 = vld [vmem:[%s247 + $0x10] sm:$0xff]
      %v263 = vld [vmem:[%s247 + $0x18] sm:$0xff]
      %v264 = vld [vmem:[%s247 + $0x20] sm:$0xff]
      %v265 = vld [vmem:[%s247 + $0x28] sm:$0xff]
      %v266 = vld [vmem:[%s247 + $0x30] sm:$0xff]
      %v267 = vld [vmem:[%s247 + $0x38] sm:$0xff]
      %v268 = vld [vmem:[%s247 + $0x40] sm:$0xff]
      %v269 = vld [vmem:[%s247 + $0x48] sm:$0xff]
      %v270 = vld [vmem:[%s247 + $0x50] sm:$0xff]
      %v271 = vld [vmem:[%s247 + $0x58] sm:$0xff]
      %v272 = vld [vmem:[%s247 + $0x60] sm:$0xff]
      %v273 = vld [vmem:[%s247 + $0x68] sm:$0xff]
      %v274 = vld [vmem:[%s247 + $0x70] sm:$0xff]
      %v275 = vld [vmem:[%s247 + $0x78] sm:$0xff]
      %v276 = vld [vmem:[%s247 + $0x80] sm:$0xff]
      %v277 = vld [vmem:[%s247 + $0x88] sm:$0xff]
      %v278 = vld [vmem:[%s247 + $0x90] sm:$0xff]
      %v279 = vld [vmem:[%s247 + $0x98] sm:$0xff]
      %v280 = vld [vmem:[%s247 + $0xa0] sm:$0xff]
      %v281 = vld [vmem:[%s247 + $0xa8] sm:$0xff]
      %v282 = vld [vmem:[%s247 + $0xb0] sm:$0xff]
      %v283 = vld [vmem:[%s247 + $0xb8] sm:$0xff]
      %v284 = vld [vmem:[%s247 + $0xc0] sm:$0xff]
      %v285 = vld [vmem:[%s247 + $0xc8] sm:$0xff]
      %v286 = vld [vmem:[%s247 + $0xd0] sm:$0xff]
      %v287 = vld [vmem:[%s247 + $0xd8] sm:$0xff]
      %v288 = vld [vmem:[%s247 + $0xe0] sm:$0xff]
      %v289 = vld [vmem:[%s247 + $0xe8] sm:$0xff]
      %v290 = vld [vmem:[%s247 + $0xf0] sm:$0xff]
      %v291 = vld [vmem:[%s247 + $0xf8] sm:$0xff]
      %v292 = vld [vmem:[%s1] sm:$0xff]
      %294 = vset.pattern.permute.xlu0 0
      %295 = vperm.xlu0 %294, %v260
      %v296 = vpop.permute.xlu0 %295
      %299 = vset.pattern.permute.xlu0 0
      %300 = vperm.xlu0 %299, %v261
      %v301 = vpop.permute.xlu0 %300
      %304 = vset.pattern.permute.xlu0 0
      %305 = vperm.xlu0 %304, %v262
      %v306 = vpop.permute.xlu0 %305
      %309 = vset.pattern.permute.xlu0 0
      %310 = vperm.xlu0 %309, %v263
      %v311 = vpop.permute.xlu0 %310
      %314 = vset.pattern.permute.xlu0 0
      %315 = vperm.xlu0 %314, %v264
      %v316 = vpop.permute.xlu0 %315
      %319 = vset.pattern.permute.xlu0 0
      %320 = vperm.xlu0 %319, %v265
      %v321 = vpop.permute.xlu0 %320
      %324 = vset.pattern.permute.xlu0 0
      %325 = vperm.xlu0 %324, %v266
      %v326 = vpop.permute.xlu0 %325
      %329 = vset.pattern.permute.xlu0 0
      %330 = vperm.xlu0 %329, %v267
      %v331 = vpop.permute.xlu0 %330
      %334 = vset.pattern.permute.xlu0 0
      %335 = vperm.xlu0 %334, %v268
      %v336 = vpop.permute.xlu0 %335
      %339 = vset.pattern.permute.xlu0 0
      %340 = vperm.xlu0 %339, %v269
      %v341 = vpop.permute.xlu0 %340
      %344 = vset.pattern.permute.xlu0 0
      %345 = vperm.xlu0 %344, %v270
      %v346 = vpop.permute.xlu0 %345
      %349 = vset.pattern.permute.xlu0 0
      %350 = vperm.xlu0 %349, %v271
      %v351 = vpop.permute.xlu0 %350
      %354 = vset.pattern.permute.xlu0 0
      %355 = vperm.xlu0 %354, %v272
      %v356 = vpop.permute.xlu0 %355
      %359 = vset.pattern.permute.xlu0 0
      %360 = vperm.xlu0 %359, %v273
      %v361 = vpop.permute.xlu0 %360
      %364 = vset.pattern.permute.xlu0 0
      %365 = vperm.xlu0 %364, %v274
      %v366 = vpop.permute.xlu0 %365
      %369 = vset.pattern.permute.xlu0 0
      %370 = vperm.xlu0 %369, %v275
      %v371 = vpop.permute.xlu0 %370
      %374 = vset.pattern.permute.xlu0 0
      %375 = vperm.xlu0 %374, %v276
      %v376 = vpop.permute.xlu0 %375
      %379 = vset.pattern.permute.xlu0 0
      %380 = vperm.xlu0 %379, %v277
      %v381 = vpop.permute.xlu0 %380
      %384 = vset.pattern.permute.xlu0 0
      %385 = vperm.xlu0 %384, %v278
      %v386 = vpop.permute.xlu0 %385
      %389 = vset.pattern.permute.xlu0 0
      %390 = vperm.xlu0 %389, %v279
      %v391 = vpop.permute.xlu0 %390
      %394 = vset.pattern.permute.xlu0 0
      %395 = vperm.xlu0 %394, %v280
      %v396 = vpop.permute.xlu0 %395
      %399 = vset.pattern.permute.xlu0 0
      %400 = vperm.xlu0 %399, %v281
      %v401 = vpop.permute.xlu0 %400
      %404 = vset.pattern.permute.xlu0 0
      %405 = vperm.xlu0 %404, %v282
      %v406 = vpop.permute.xlu0 %405
      %409 = vset.pattern.permute.xlu0 0
      %410 = vperm.xlu0 %409, %v283
      %v411 = vpop.permute.xlu0 %410
      %414 = vset.pattern.permute.xlu0 0
      %415 = vperm.xlu0 %414, %v284
      %v416 = vpop.permute.xlu0 %415
      %419 = vset.pattern.permute.xlu0 0
      %420 = vperm.xlu0 %419, %v285
      %v421 = vpop.permute.xlu0 %420
      %424 = vset.pattern.permute.xlu0 0
      %425 = vperm.xlu0 %424, %v286
      %v426 = vpop.permute.xlu0 %425
      %429 = vset.pattern.permute.xlu0 0
      %430 = vperm.xlu0 %429, %v287
      %v431 = vpop.permute.xlu0 %430
      %434 = vset.pattern.permute.xlu0 0
      %435 = vperm.xlu0 %434, %v288
      %v436 = vpop.permute.xlu0 %435
      %439 = vset.pattern.permute.xlu0 0
      %440 = vperm.xlu0 %439, %v289
      %v441 = vpop.permute.xlu0 %440
      %444 = vset.pattern.permute.xlu0 0
      %445 = vperm.xlu0 %444, %v290
      %v446 = vpop.permute.xlu0 %445
      %449 = vset.pattern.permute.xlu0 0
      %450 = vperm.xlu0 %449, %v291
      %v451 = vpop.permute.xlu0 %450
      %v454 = vlaneseq
      %v455 = vshrl.u32 %v454, 7
      %v456 = vsub.s32 0, %v455
      %v457 = vrot.slane %v292, %v456
      %v458 = vlaneseq
      %v459 = vshrl.u32 %v458, 7
      %v460 = vsub.s32 2, %v459
      %v461 = vrot.slane %v292, %v460
      %v462 = vlaneseq
      %v463 = vshrl.u32 %v462, 7
      %v464 = vsub.s32 4, %v463
      %v465 = vrot.slane %v292, %v464
      %v466 = vlaneseq
      %v467 = vshrl.u32 %v466, 7
      %v468 = vsub.s32 6, %v467
      %v469 = vrot.slane %v292, %v468
      %v474 = vlaneseq
      %v475 = vshrl.u32 %v474, 7
      %v476 = vsub.s32 0, %v475
      %v477 = vrot.slane %v457, %v476
      %v478 = vlaneseq
      %v479 = vshrl.u32 %v478, 7
      %v480 = vsub.s32 0, %v479
      %v481 = vrot.slane %v461, %v480
      %v482 = vlaneseq
      %v483 = vshrl.u32 %v482, 7
      %v484 = vsub.s32 0, %v483
      %v485 = vrot.slane %v465, %v484
      %v486 = vlaneseq
      %v487 = vshrl.u32 %v486, 7
      %v488 = vsub.s32 0, %v487
      %v489 = vrot.slane %v469, %v488
      %v490 = vmul.f32 %v296, %v477
      %v491 = vmul.f32 %v296, %v481
      %v492 = vmul.f32 %v296, %v485
      %v493 = vmul.f32 %v296, %v489
      %v494 = vmul.f32 %v301, %v477
      %v495 = vmul.f32 %v301, %v481
      %v496 = vmul.f32 %v301, %v485
      %v497 = vmul.f32 %v301, %v489
      %v498 = vmul.f32 %v306, %v477
      %v499 = vmul.f32 %v306, %v481
      %v500 = vmul.f32 %v306, %v485
      %v501 = vmul.f32 %v306, %v489
      %v502 = vmul.f32 %v311, %v477
      %v503 = vmul.f32 %v311, %v481
      %v504 = vmul.f32 %v311, %v485
      %v505 = vmul.f32 %v311, %v489
      %v506 = vmul.f32 %v316, %v477
      %v507 = vmul.f32 %v316, %v481
      %v508 = vmul.f32 %v316, %v485
      %v509 = vmul.f32 %v316, %v489
      %v510 = vmul.f32 %v321, %v477
      %v511 = vmul.f32 %v321, %v481
      %v512 = vmul.f32 %v321, %v485
      %v513 = vmul.f32 %v321, %v489
      %v514 = vmul.f32 %v326, %v477
      %v515 = vmul.f32 %v326, %v481
      %v516 = vmul.f32 %v326, %v485
      %v517 = vmul.f32 %v326, %v489
      %v518 = vmul.f32 %v331, %v477
      %v519 = vmul.f32 %v331, %v481
      %v520 = vmul.f32 %v331, %v485
      %v521 = vmul.f32 %v331, %v489
      %v522 = vmul.f32 %v336, %v477
      %v523 = vmul.f32 %v336, %v481
      %v524 = vmul.f32 %v336, %v485
      %v525 = vmul.f32 %v336, %v489
      %v526 = vmul.f32 %v341, %v477
      %v527 = vmul.f32 %v341, %v481
      %v528 = vmul.f32 %v341, %v485
      %v529 = vmul.f32 %v341, %v489
      %v530 = vmul.f32 %v346, %v477
      %v531 = vmul.f32 %v346, %v481
      %v532 = vmul.f32 %v346, %v485
      %v533 = vmul.f32 %v346, %v489
      %v534 = vmul.f32 %v351, %v477
      %v535 = vmul.f32 %v351, %v481
      %v536 = vmul.f32 %v351, %v485
      %v537 = vmul.f32 %v351, %v489
      %v538 = vmul.f32 %v356, %v477
      %v539 = vmul.f32 %v356, %v481
      %v540 = vmul.f32 %v356, %v485
      %v541 = vmul.f32 %v356, %v489
      %v542 = vmul.f32 %v361, %v477
      %v543 = vmul.f32 %v361, %v481
      %v544 = vmul.f32 %v361, %v485
      %v545 = vmul.f32 %v361, %v489
      %v546 = vmul.f32 %v366, %v477
      %v547 = vmul.f32 %v366, %v481
      %v548 = vmul.f32 %v366, %v485
      %v549 = vmul.f32 %v366, %v489
      %v550 = vmul.f32 %v371, %v477
      %v551 = vmul.f32 %v371, %v481
      %v552 = vmul.f32 %v371, %v485
      %v553 = vmul.f32 %v371, %v489
      %v554 = vmul.f32 %v376, %v477
      %v555 = vmul.f32 %v376, %v481
      %v556 = vmul.f32 %v376, %v485
      %v557 = vmul.f32 %v376, %v489
      %v558 = vmul.f32 %v381, %v477
      %v559 = vmul.f32 %v381, %v481
      %v560 = vmul.f32 %v381, %v485
      %v561 = vmul.f32 %v381, %v489
      %v562 = vmul.f32 %v386, %v477
      %v563 = vmul.f32 %v386, %v481
      %v564 = vmul.f32 %v386, %v485
      %v565 = vmul.f32 %v386, %v489
      %v566 = vmul.f32 %v391, %v477
      %v567 = vmul.f32 %v391, %v481
      %v568 = vmul.f32 %v391, %v485
      %v569 = vmul.f32 %v391, %v489
      %v570 = vmul.f32 %v396, %v477
      %v571 = vmul.f32 %v396, %v481
      %v572 = vmul.f32 %v396, %v485
      %v573 = vmul.f32 %v396, %v489
      %v574 = vmul.f32 %v401, %v477
      %v575 = vmul.f32 %v401, %v481
      %v576 = vmul.f32 %v401, %v485
      %v577 = vmul.f32 %v401, %v489
      %v578 = vmul.f32 %v406, %v477
      %v579 = vmul.f32 %v406, %v481
      %v580 = vmul.f32 %v406, %v485
      %v581 = vmul.f32 %v406, %v489
      %v582 = vmul.f32 %v411, %v477
      %v583 = vmul.f32 %v411, %v481
      %v584 = vmul.f32 %v411, %v485
      %v585 = vmul.f32 %v411, %v489
      %v586 = vmul.f32 %v416, %v477
      %v587 = vmul.f32 %v416, %v481
      %v588 = vmul.f32 %v416, %v485
      %v589 = vmul.f32 %v416, %v489
      %v590 = vmul.f32 %v421, %v477
      %v591 = vmul.f32 %v421, %v481
      %v592 = vmul.f32 %v421, %v485
      %v593 = vmul.f32 %v421, %v489
      %v594 = vmul.f32 %v426, %v477
      %v595 = vmul.f32 %v426, %v481
      %v596 = vmul.f32 %v426, %v485
      %v597 = vmul.f32 %v426, %v489
      %v598 = vmul.f32 %v431, %v477
      %v599 = vmul.f32 %v431, %v481
      %v600 = vmul.f32 %v431, %v485
      %v601 = vmul.f32 %v431, %v489
      %v602 = vmul.f32 %v436, %v477
      %v603 = vmul.f32 %v436, %v481
      %v604 = vmul.f32 %v436, %v485
      %v605 = vmul.f32 %v436, %v489
      %v606 = vmul.f32 %v441, %v477
      %v607 = vmul.f32 %v441, %v481
      %v608 = vmul.f32 %v441, %v485
      %v609 = vmul.f32 %v441, %v489
      %v610 = vmul.f32 %v446, %v477
      %v611 = vmul.f32 %v446, %v481
      %v612 = vmul.f32 %v446, %v485
      %v613 = vmul.f32 %v446, %v489
      %v614 = vmul.f32 %v451, %v477
      %v615 = vmul.f32 %v451, %v481
      %v616 = vmul.f32 %v451, %v485
      %v617 = vmul.f32 %v451, %v489
      %618 = vset.pattern.permute.xlu0 1
      %619 = vperm.xlu0 %618, %v260
      %v620 = vpop.permute.xlu0 %619
      %622 = vset.pattern.permute.xlu0 1
      %623 = vperm.xlu0 %622, %v261
      %v624 = vpop.permute.xlu0 %623
      %626 = vset.pattern.permute.xlu0 1
      %627 = vperm.xlu0 %626, %v262
      %v628 = vpop.permute.xlu0 %627
      %630 = vset.pattern.permute.xlu0 1
      %631 = vperm.xlu0 %630, %v263
      %v632 = vpop.permute.xlu0 %631
      %634 = vset.pattern.permute.xlu0 1
      %635 = vperm.xlu0 %634, %v264
      %v636 = vpop.permute.xlu0 %635
      %638 = vset.pattern.permute.xlu0 1
      %639 = vperm.xlu0 %638, %v265
      %v640 = vpop.permute.xlu0 %639
      %642 = vset.pattern.permute.xlu0 1
      %643 = vperm.xlu0 %642, %v266
      %v644 = vpop.permute.xlu0 %643
      %646 = vset.pattern.permute.xlu0 1
      %647 = vperm.xlu0 %646, %v267
      %v648 = vpop.permute.xlu0 %647
      %650 = vset.pattern.permute.xlu0 1
      %651 = vperm.xlu0 %650, %v268
      %v652 = vpop.permute.xlu0 %651
      %654 = vset.pattern.permute.xlu0 1
      %655 = vperm.xlu0 %654, %v269
      %v656 = vpop.permute.xlu0 %655
      %658 = vset.pattern.permute.xlu0 1
      %659 = vperm.xlu0 %658, %v270
      %v660 = vpop.permute.xlu0 %659
      %662 = vset.pattern.permute.xlu0 1
      %663 = vperm.xlu0 %662, %v271
      %v664 = vpop.permute.xlu0 %663
      %666 = vset.pattern.permute.xlu0 1
      %667 = vperm.xlu0 %666, %v272
      %v668 = vpop.permute.xlu0 %667
      %670 = vset.pattern.permute.xlu0 1
      %671 = vperm.xlu0 %670, %v273
      %v672 = vpop.permute.xlu0 %671
      %674 = vset.pattern.permute.xlu0 1
      %675 = vperm.xlu0 %674, %v274
      %v676 = vpop.permute.xlu0 %675
      %678 = vset.pattern.permute.xlu0 1
      %679 = vperm.xlu0 %678, %v275
      %v680 = vpop.permute.xlu0 %679
      %682 = vset.pattern.permute.xlu0 1
      %683 = vperm.xlu0 %682, %v276
      %v684 = vpop.permute.xlu0 %683
      %686 = vset.pattern.permute.xlu0 1
      %687 = vperm.xlu0 %686, %v277
      %v688 = vpop.permute.xlu0 %687
      %690 = vset.pattern.permute.xlu0 1
      %691 = vperm.xlu0 %690, %v278
      %v692 = vpop.permute.xlu0 %691
      %694 = vset.pattern.permute.xlu0 1
      %695 = vperm.xlu0 %694, %v279
      %v696 = vpop.permute.xlu0 %695
      %698 = vset.pattern.permute.xlu0 1
      %699 = vperm.xlu0 %698, %v280
      %v700 = vpop.permute.xlu0 %699
      %702 = vset.pattern.permute.xlu0 1
      %703 = vperm.xlu0 %702, %v281
      %v704 = vpop.permute.xlu0 %703
      %706 = vset.pattern.permute.xlu0 1
      %707 = vperm.xlu0 %706, %v282
      %v708 = vpop.permute.xlu0 %707
      %710 = vset.pattern.permute.xlu0 1
      %711 = vperm.xlu0 %710, %v283
      %v712 = vpop.permute.xlu0 %711
      %714 = vset.pattern.permute.xlu0 1
      %715 = vperm.xlu0 %714, %v284
      %v716 = vpop.permute.xlu0 %715
      %718 = vset.pattern.permute.xlu0 1
      %719 = vperm.xlu0 %718, %v285
      %v720 = vpop.permute.xlu0 %719
      %722 = vset.pattern.permute.xlu0 1
      %723 = vperm.xlu0 %722, %v286
      %v724 = vpop.permute.xlu0 %723
      %726 = vset.pattern.permute.xlu0 1
      %727 = vperm.xlu0 %726, %v287
      %v728 = vpop.permute.xlu0 %727
      %730 = vset.pattern.permute.xlu0 1
      %731 = vperm.xlu0 %730, %v288
      %v732 = vpop.permute.xlu0 %731
      %734 = vset.pattern.permute.xlu0 1
      %735 = vperm.xlu0 %734, %v289
      %v736 = vpop.permute.xlu0 %735
      %738 = vset.pattern.permute.xlu0 1
      %739 = vperm.xlu0 %738, %v290
      %v740 = vpop.permute.xlu0 %739
      %742 = vset.pattern.permute.xlu0 1
      %743 = vperm.xlu0 %742, %v291
      %v744 = vpop.permute.xlu0 %743
      %v746 = vlaneseq
      %v747 = vshrl.u32 %v746, 7
      %v748 = vsub.s32 1, %v747
      %v749 = vrot.slane %v292, %v748
      %v750 = vlaneseq
      %v751 = vshrl.u32 %v750, 7
      %v752 = vsub.s32 3, %v751
      %v753 = vrot.slane %v292, %v752
      %v754 = vlaneseq
      %v755 = vshrl.u32 %v754, 7
      %v756 = vsub.s32 5, %v755
      %v757 = vrot.slane %v292, %v756
      %v758 = vlaneseq
      %v759 = vshrl.u32 %v758, 7
      %v760 = vsub.s32 7, %v759
      %v761 = vrot.slane %v292, %v760
      %v766 = vlaneseq
      %v767 = vshrl.u32 %v766, 7
      %v768 = vsub.s32 1, %v767
      %v769 = vrot.slane %v749, %v768
      %v770 = vlaneseq
      %v771 = vshrl.u32 %v770, 7
      %v772 = vsub.s32 1, %v771
      %v773 = vrot.slane %v753, %v772
      %v774 = vlaneseq
      %v775 = vshrl.u32 %v774, 7
      %v776 = vsub.s32 1, %v775
      %v777 = vrot.slane %v757, %v776
      %v778 = vlaneseq
      %v779 = vshrl.u32 %v778, 7
      %v780 = vsub.s32 1, %v779
      %v781 = vrot.slane %v761, %v780
      %v782 = vmul.f32 %v620, %v769
      %v783 = vmul.f32 %v620, %v773
      %v784 = vmul.f32 %v620, %v777
      %v785 = vmul.f32 %v620, %v781
      %v786 = vmul.f32 %v624, %v769
      %v787 = vmul.f32 %v624, %v773
      %v788 = vmul.f32 %v624, %v777
      %v789 = vmul.f32 %v624, %v781
      %v790 = vmul.f32 %v628, %v769
      %v791 = vmul.f32 %v628, %v773
      %v792 = vmul.f32 %v628, %v777
      %v793 = vmul.f32 %v628, %v781
      %v794 = vmul.f32 %v632, %v769
      %v795 = vmul.f32 %v632, %v773
      %v796 = vmul.f32 %v632, %v777
      %v797 = vmul.f32 %v632, %v781
      %v798 = vmul.f32 %v636, %v769
      %v799 = vmul.f32 %v636, %v773
      %v800 = vmul.f32 %v636, %v777
      %v801 = vmul.f32 %v636, %v781
      %v802 = vmul.f32 %v640, %v769
      %v803 = vmul.f32 %v640, %v773
      %v804 = vmul.f32 %v640, %v777
      %v805 = vmul.f32 %v640, %v781
      %v806 = vmul.f32 %v644, %v769
      %v807 = vmul.f32 %v644, %v773
      %v808 = vmul.f32 %v644, %v777
      %v809 = vmul.f32 %v644, %v781
      %v810 = vmul.f32 %v648, %v769
      %v811 = vmul.f32 %v648, %v773
      %v812 = vmul.f32 %v648, %v777
      %v813 = vmul.f32 %v648, %v781
      %v814 = vmul.f32 %v652, %v769
      %v815 = vmul.f32 %v652, %v773
      %v816 = vmul.f32 %v652, %v777
      %v817 = vmul.f32 %v652, %v781
      %v818 = vmul.f32 %v656, %v769
      %v819 = vmul.f32 %v656, %v773
      %v820 = vmul.f32 %v656, %v777
      %v821 = vmul.f32 %v656, %v781
      %v822 = vmul.f32 %v660, %v769
      %v823 = vmul.f32 %v660, %v773
      %v824 = vmul.f32 %v660, %v777
      %v825 = vmul.f32 %v660, %v781
      %v826 = vmul.f32 %v664, %v769
      %v827 = vmul.f32 %v664, %v773
      %v828 = vmul.f32 %v664, %v777
      %v829 = vmul.f32 %v664, %v781
      %v830 = vmul.f32 %v668, %v769
      %v831 = vmul.f32 %v668, %v773
      %v832 = vmul.f32 %v668, %v777
      %v833 = vmul.f32 %v668, %v781
      %v834 = vmul.f32 %v672, %v769
      %v835 = vmul.f32 %v672, %v773
      %v836 = vmul.f32 %v672, %v777
      %v837 = vmul.f32 %v672, %v781
      %v838 = vmul.f32 %v676, %v769
      %v839 = vmul.f32 %v676, %v773
      %v840 = vmul.f32 %v676, %v777
      %v841 = vmul.f32 %v676, %v781
      %v842 = vmul.f32 %v680, %v769
      %v843 = vmul.f32 %v680, %v773
      %v844 = vmul.f32 %v680, %v777
      %v845 = vmul.f32 %v680, %v781
      %v846 = vmul.f32 %v684, %v769
      %v847 = vmul.f32 %v684, %v773
      %v848 = vmul.f32 %v684, %v777
      %v849 = vmul.f32 %v684, %v781
      %v850 = vmul.f32 %v688, %v769
      %v851 = vmul.f32 %v688, %v773
      %v852 = vmul.f32 %v688, %v777
      %v853 = vmul.f32 %v688, %v781
      %v854 = vmul.f32 %v692, %v769
      %v855 = vmul.f32 %v692, %v773
      %v856 = vmul.f32 %v692, %v777
      %v857 = vmul.f32 %v692, %v781
      %v858 = vmul.f32 %v696, %v769
      %v859 = vmul.f32 %v696, %v773
      %v860 = vmul.f32 %v696, %v777
      %v861 = vmul.f32 %v696, %v781
      %v862 = vmul.f32 %v700, %v769
      %v863 = vmul.f32 %v700, %v773
      %v864 = vmul.f32 %v700, %v777
      %v865 = vmul.f32 %v700, %v781
      %v866 = vmul.f32 %v704, %v769
      %v867 = vmul.f32 %v704, %v773
      %v868 = vmul.f32 %v704, %v777
      %v869 = vmul.f32 %v704, %v781
      %v870 = vmul.f32 %v708, %v769
      %v871 = vmul.f32 %v708, %v773
      %v872 = vmul.f32 %v708, %v777
      %v873 = vmul.f32 %v708, %v781
      %v874 = vmul.f32 %v712, %v769
      %v875 = vmul.f32 %v712, %v773
      %v876 = vmul.f32 %v712, %v777
      %v877 = vmul.f32 %v712, %v781
      %v878 = vmul.f32 %v716, %v769
      %v879 = vmul.f32 %v716, %v773
      %v880 = vmul.f32 %v716, %v777
      %v881 = vmul.f32 %v716, %v781
      %v882 = vmul.f32 %v720, %v769
      %v883 = vmul.f32 %v720, %v773
      %v884 = vmul.f32 %v720, %v777
      %v885 = vmul.f32 %v720, %v781
      %v886 = vmul.f32 %v724, %v769
      %v887 = vmul.f32 %v724, %v773
      %v888 = vmul.f32 %v724, %v777
      %v889 = vmul.f32 %v724, %v781
      %v890 = vmul.f32 %v728, %v769
      %v891 = vmul.f32 %v728, %v773
      %v892 = vmul.f32 %v728, %v777
      %v893 = vmul.f32 %v728, %v781
      %v894 = vmul.f32 %v732, %v769
      %v895 = vmul.f32 %v732, %v773
      %v896 = vmul.f32 %v732, %v777
      %v897 = vmul.f32 %v732, %v781
      %v898 = vmul.f32 %v736, %v769
      %v899 = vmul.f32 %v736, %v773
      %v900 = vmul.f32 %v736, %v777
      %v901 = vmul.f32 %v736, %v781
      %v902 = vmul.f32 %v740, %v769
      %v903 = vmul.f32 %v740, %v773
      %v904 = vmul.f32 %v740, %v777
      %v905 = vmul.f32 %v740, %v781
      %v906 = vmul.f32 %v744, %v769
      %v907 = vmul.f32 %v744, %v773
      %v908 = vmul.f32 %v744, %v777
      %v909 = vmul.f32 %v744, %v781
      %v910 = vadd.f32 %v490, %v782
      %v911 = vadd.f32 %v491, %v783
      %v912 = vadd.f32 %v492, %v784
      %v913 = vadd.f32 %v493, %v785
      %v914 = vadd.f32 %v494, %v786
      %v915 = vadd.f32 %v495, %v787
      %v916 = vadd.f32 %v496, %v788
      %v917 = vadd.f32 %v497, %v789
      %v918 = vadd.f32 %v498, %v790
      %v919 = vadd.f32 %v499, %v791
      %v920 = vadd.f32 %v500, %v792
      %v921 = vadd.f32 %v501, %v793
      %v922 = vadd.f32 %v502, %v794
      %v923 = vadd.f32 %v503, %v795
      %v924 = vadd.f32 %v504, %v796
      %v925 = vadd.f32 %v505, %v797
      %v926 = vadd.f32 %v506, %v798
      %v927 = vadd.f32 %v507, %v799
      %v928 = vadd.f32 %v508, %v800
      %v929 = vadd.f32 %v509, %v801
      %v930 = vadd.f32 %v510, %v802
      %v931 = vadd.f32 %v511, %v803
      %v932 = vadd.f32 %v512, %v804
      %v933 = vadd.f32 %v513, %v805
      %v934 = vadd.f32 %v514, %v806
      %v935 = vadd.f32 %v515, %v807
      %v936 = vadd.f32 %v516, %v808
      %v937 = vadd.f32 %v517, %v809
      %v938 = vadd.f32 %v518, %v810
      %v939 = vadd.f32 %v519, %v811
      %v940 = vadd.f32 %v520, %v812
      %v941 = vadd.f32 %v521, %v813
      %v942 = vadd.f32 %v522, %v814
      %v943 = vadd.f32 %v523, %v815
      %v944 = vadd.f32 %v524, %v816
      %v945 = vadd.f32 %v525, %v817
      %v946 = vadd.f32 %v526, %v818
      %v947 = vadd.f32 %v527, %v819
      %v948 = vadd.f32 %v528, %v820
      %v949 = vadd.f32 %v529, %v821
      %v950 = vadd.f32 %v530, %v822
      %v951 = vadd.f32 %v531, %v823
      %v952 = vadd.f32 %v532, %v824
      %v953 = vadd.f32 %v533, %v825
      %v954 = vadd.f32 %v534, %v826
      %v955 = vadd.f32 %v535, %v827
      %v956 = vadd.f32 %v536, %v828
      %v957 = vadd.f32 %v537, %v829
      %v958 = vadd.f32 %v538, %v830
      %v959 = vadd.f32 %v539, %v831
      %v960 = vadd.f32 %v540, %v832
      %v961 = vadd.f32 %v541, %v833
      %v962 = vadd.f32 %v542, %v834
      %v963 = vadd.f32 %v543, %v835
      %v964 = vadd.f32 %v544, %v836
      %v965 = vadd.f32 %v545, %v837
      %v966 = vadd.f32 %v546, %v838
      %v967 = vadd.f32 %v547, %v839
      %v968 = vadd.f32 %v548, %v840
      %v969 = vadd.f32 %v549, %v841
      %v970 = vadd.f32 %v550, %v842
      %v971 = vadd.f32 %v551, %v843
      %v972 = vadd.f32 %v552, %v844
      %v973 = vadd.f32 %v553, %v845
      %v974 = vadd.f32 %v554, %v846
      %v975 = vadd.f32 %v555, %v847
      %v976 = vadd.f32 %v556, %v848
      %v977 = vadd.f32 %v557, %v849
      %v978 = vadd.f32 %v558, %v850
      %v979 = vadd.f32 %v559, %v851
      %v980 = vadd.f32 %v560, %v852
      %v981 = vadd.f32 %v561, %v853
      %v982 = vadd.f32 %v562, %v854
      %v983 = vadd.f32 %v563, %v855
      %v984 = vadd.f32 %v564, %v856
      %v985 = vadd.f32 %v565, %v857
      %v986 = vadd.f32 %v566, %v858
      %v987 = vadd.f32 %v567, %v859
      %v988 = vadd.f32 %v568, %v860
      %v989 = vadd.f32 %v569, %v861
      %v990 = vadd.f32 %v570, %v862
      %v991 = vadd.f32 %v571, %v863
      %v992 = vadd.f32 %v572, %v864
      %v993 = vadd.f32 %v573, %v865
      %v994 = vadd.f32 %v574, %v866
      %v995 = vadd.f32 %v575, %v867
      %v996 = vadd.f32 %v576, %v868
      %v997 = vadd.f32 %v577, %v869
      %v998 = vadd.f32 %v578, %v870
      %v999 = vadd.f32 %v579, %v871
      %v1000 = vadd.f32 %v580, %v872
      %v1001 = vadd.f32 %v581, %v873
      %v1002 = vadd.f32 %v582, %v874
      %v1003 = vadd.f32 %v583, %v875
      %v1004 = vadd.f32 %v584, %v876
      %v1005 = vadd.f32 %v585, %v877
      %v1006 = vadd.f32 %v586, %v878
      %v1007 = vadd.f32 %v587, %v879
      %v1008 = vadd.f32 %v588, %v880
      %v1009 = vadd.f32 %v589, %v881
      %v1010 = vadd.f32 %v590, %v882
      %v1011 = vadd.f32 %v591, %v883
      %v1012 = vadd.f32 %v592, %v884
      %v1013 = vadd.f32 %v593, %v885
      %v1014 = vadd.f32 %v594, %v886
      %v1015 = vadd.f32 %v595, %v887
      %v1016 = vadd.f32 %v596, %v888
      %v1017 = vadd.f32 %v597, %v889
      %v1018 = vadd.f32 %v598, %v890
      %v1019 = vadd.f32 %v599, %v891
      %v1020 = vadd.f32 %v600, %v892
      %v1021 = vadd.f32 %v601, %v893
      %v1022 = vadd.f32 %v602, %v894
      %v1023 = vadd.f32 %v603, %v895
      %v1024 = vadd.f32 %v604, %v896
      %v1025 = vadd.f32 %v605, %v897
      %v1026 = vadd.f32 %v606, %v898
      %v1027 = vadd.f32 %v607, %v899
      %v1028 = vadd.f32 %v608, %v900
      %v1029 = vadd.f32 %v609, %v901
      %v1030 = vadd.f32 %v610, %v902
      %v1031 = vadd.f32 %v611, %v903
      %v1032 = vadd.f32 %v612, %v904
      %v1033 = vadd.f32 %v613, %v905
      %v1034 = vadd.f32 %v614, %v906
      %v1035 = vadd.f32 %v615, %v907
      %v1036 = vadd.f32 %v616, %v908
      %v1037 = vadd.f32 %v617, %v909
      %v1038 = vlaneseq
      %v1039 = vshrl.u32 %v1038, 7
      %v1040 = vsub.s32 0, %v1039
      %v1041 = vrot.slane %v256, %v1040
      %v1042 = vlaneseq
      %v1043 = vshrl.u32 %v1042, 7
      %v1044 = vsub.s32 0, %v1043
      %v1045 = vrot.slane %v257, %v1044
      %v1046 = vlaneseq
      %v1047 = vshrl.u32 %v1046, 7
      %v1048 = vsub.s32 0, %v1047
      %v1049 = vrot.slane %v258, %v1048
      %v1050 = vlaneseq
      %v1051 = vshrl.u32 %v1050, 7
      %v1052 = vsub.s32 0, %v1051
      %v1053 = vrot.slane %v259, %v1052
      %v1054 = vadd.f32 %v910, %v1041
      %v1055 = vadd.f32 %v911, %v1045
      %v1056 = vadd.f32 %v912, %v1049
      %v1057 = vadd.f32 %v913, %v1053
      %v1058 = vadd.f32 %v914, %v1041
      %v1059 = vadd.f32 %v915, %v1045
      %v1060 = vadd.f32 %v916, %v1049
      %v1061 = vadd.f32 %v917, %v1053
      %v1062 = vadd.f32 %v918, %v1041
      %v1063 = vadd.f32 %v919, %v1045
      %v1064 = vadd.f32 %v920, %v1049
      %v1065 = vadd.f32 %v921, %v1053
      %v1066 = vadd.f32 %v922, %v1041
      %v1067 = vadd.f32 %v923, %v1045
      %v1068 = vadd.f32 %v924, %v1049
      %v1069 = vadd.f32 %v925, %v1053
      %v1070 = vadd.f32 %v926, %v1041
      %v1071 = vadd.f32 %v927, %v1045
      %v1072 = vadd.f32 %v928, %v1049
      %v1073 = vadd.f32 %v929, %v1053
      %v1074 = vadd.f32 %v930, %v1041
      %v1075 = vadd.f32 %v931, %v1045
      %v1076 = vadd.f32 %v932, %v1049
      %v1077 = vadd.f32 %v933, %v1053
      %v1078 = vadd.f32 %v934, %v1041
      %v1079 = vadd.f32 %v935, %v1045
      %v1080 = vadd.f32 %v936, %v1049
      %v1081 = vadd.f32 %v937, %v1053
      %v1082 = vadd.f32 %v938, %v1041
      %v1083 = vadd.f32 %v939, %v1045
      %v1084 = vadd.f32 %v940, %v1049
      %v1085 = vadd.f32 %v941, %v1053
      %v1086 = vadd.f32 %v942, %v1041
      %v1087 = vadd.f32 %v943, %v1045
      %v1088 = vadd.f32 %v944, %v1049
      %v1089 = vadd.f32 %v945, %v1053
      %v1090 = vadd.f32 %v946, %v1041
      %v1091 = vadd.f32 %v947, %v1045
      %v1092 = vadd.f32 %v948, %v1049
      %v1093 = vadd.f32 %v949, %v1053
      %v1094 = vadd.f32 %v950, %v1041
      %v1095 = vadd.f32 %v951, %v1045
      %v1096 = vadd.f32 %v952, %v1049
      %v1097 = vadd.f32 %v953, %v1053
      %v1098 = vadd.f32 %v954, %v1041
      %v1099 = vadd.f32 %v955, %v1045
      %v1100 = vadd.f32 %v956, %v1049
      %v1101 = vadd.f32 %v957, %v1053
      %v1102 = vadd.f32 %v958, %v1041
      %v1103 = vadd.f32 %v959, %v1045
      %v1104 = vadd.f32 %v960, %v1049
      %v1105 = vadd.f32 %v961, %v1053
      %v1106 = vadd.f32 %v962, %v1041
      %v1107 = vadd.f32 %v963, %v1045
      %v1108 = vadd.f32 %v964, %v1049
      %v1109 = vadd.f32 %v965, %v1053
      %v1110 = vadd.f32 %v966, %v1041
      %v1111 = vadd.f32 %v967, %v1045
      %v1112 = vadd.f32 %v968, %v1049
      %v1113 = vadd.f32 %v969, %v1053
      %v1114 = vadd.f32 %v970, %v1041
      %v1115 = vadd.f32 %v971, %v1045
      %v1116 = vadd.f32 %v972, %v1049
      %v1117 = vadd.f32 %v973, %v1053
      %v1118 = vadd.f32 %v974, %v1041
      %v1119 = vadd.f32 %v975, %v1045
      %v1120 = vadd.f32 %v976, %v1049
      %v1121 = vadd.f32 %v977, %v1053
      %v1122 = vadd.f32 %v978, %v1041
      %v1123 = vadd.f32 %v979, %v1045
      %v1124 = vadd.f32 %v980, %v1049
      %v1125 = vadd.f32 %v981, %v1053
      %v1126 = vadd.f32 %v982, %v1041
      %v1127 = vadd.f32 %v983, %v1045
      %v1128 = vadd.f32 %v984, %v1049
      %v1129 = vadd.f32 %v985, %v1053
      %v1130 = vadd.f32 %v986, %v1041
      %v1131 = vadd.f32 %v987, %v1045
      %v1132 = vadd.f32 %v988, %v1049
      %v1133 = vadd.f32 %v989, %v1053
      %v1134 = vadd.f32 %v990, %v1041
      %v1135 = vadd.f32 %v991, %v1045
      %v1136 = vadd.f32 %v992, %v1049
      %v1137 = vadd.f32 %v993, %v1053
      %v1138 = vadd.f32 %v994, %v1041
      %v1139 = vadd.f32 %v995, %v1045
      %v1140 = vadd.f32 %v996, %v1049
      %v1141 = vadd.f32 %v997, %v1053
      %v1142 = vadd.f32 %v998, %v1041
      %v1143 = vadd.f32 %v999, %v1045
      %v1144 = vadd.f32 %v1000, %v1049
      %v1145 = vadd.f32 %v1001, %v1053
      %v1146 = vadd.f32 %v1002, %v1041
      %v1147 = vadd.f32 %v1003, %v1045
      %v1148 = vadd.f32 %v1004, %v1049
      %v1149 = vadd.f32 %v1005, %v1053
      %v1150 = vadd.f32 %v1006, %v1041
      %v1151 = vadd.f32 %v1007, %v1045
      %v1152 = vadd.f32 %v1008, %v1049
      %v1153 = vadd.f32 %v1009, %v1053
      %v1154 = vadd.f32 %v1010, %v1041
      %v1155 = vadd.f32 %v1011, %v1045
      %v1156 = vadd.f32 %v1012, %v1049
      %v1157 = vadd.f32 %v1013, %v1053
      %v1158 = vadd.f32 %v1014, %v1041
      %v1159 = vadd.f32 %v1015, %v1045
      %v1160 = vadd.f32 %v1016, %v1049
      %v1161 = vadd.f32 %v1017, %v1053
      %v1162 = vadd.f32 %v1018, %v1041
      %v1163 = vadd.f32 %v1019, %v1045
      %v1164 = vadd.f32 %v1020, %v1049
      %v1165 = vadd.f32 %v1021, %v1053
      %v1166 = vadd.f32 %v1022, %v1041
      %v1167 = vadd.f32 %v1023, %v1045
      %v1168 = vadd.f32 %v1024, %v1049
      %v1169 = vadd.f32 %v1025, %v1053
      %v1170 = vadd.f32 %v1026, %v1041
      %v1171 = vadd.f32 %v1027, %v1045
      %v1172 = vadd.f32 %v1028, %v1049
      %v1173 = vadd.f32 %v1029, %v1053
      %v1174 = vadd.f32 %v1030, %v1041
      %v1175 = vadd.f32 %v1031, %v1045
      %v1176 = vadd.f32 %v1032, %v1049
      %v1177 = vadd.f32 %v1033, %v1053
      %v1178 = vadd.f32 %v1034, %v1041
      %v1179 = vadd.f32 %v1035, %v1045
      %v1180 = vadd.f32 %v1036, %v1049
      %v1181 = vadd.f32 %v1037, %v1053
      %v1182 = vmax.f32 %v1054, 0.0
      %v1183 = vmax.f32 %v1055, 0.0
      %v1184 = vmax.f32 %v1056, 0.0
      %v1185 = vmax.f32 %v1057, 0.0
      %v1186 = vmax.f32 %v1058, 0.0
      %v1187 = vmax.f32 %v1059, 0.0
      %v1188 = vmax.f32 %v1060, 0.0
      %v1189 = vmax.f32 %v1061, 0.0
      %v1190 = vmax.f32 %v1062, 0.0
      %v1191 = vmax.f32 %v1063, 0.0
      %v1192 = vmax.f32 %v1064, 0.0
      %v1193 = vmax.f32 %v1065, 0.0
      %v1194 = vmax.f32 %v1066, 0.0
      %v1195 = vmax.f32 %v1067, 0.0
      %v1196 = vmax.f32 %v1068, 0.0
      %v1197 = vmax.f32 %v1069, 0.0
      %v1198 = vmax.f32 %v1070, 0.0
      %v1199 = vmax.f32 %v1071, 0.0
      %v1200 = vmax.f32 %v1072, 0.0
      %v1201 = vmax.f32 %v1073, 0.0
      %v1202 = vmax.f32 %v1074, 0.0
      %v1203 = vmax.f32 %v1075, 0.0
      %v1204 = vmax.f32 %v1076, 0.0
      %v1205 = vmax.f32 %v1077, 0.0
      %v1206 = vmax.f32 %v1078, 0.0
      %v1207 = vmax.f32 %v1079, 0.0
      %v1208 = vmax.f32 %v1080, 0.0
      %v1209 = vmax.f32 %v1081, 0.0
      %v1210 = vmax.f32 %v1082, 0.0
      %v1211 = vmax.f32 %v1083, 0.0
      %v1212 = vmax.f32 %v1084, 0.0
      %v1213 = vmax.f32 %v1085, 0.0
      %v1214 = vmax.f32 %v1086, 0.0
      %v1215 = vmax.f32 %v1087, 0.0
      %v1216 = vmax.f32 %v1088, 0.0
      %v1217 = vmax.f32 %v1089, 0.0
      %v1218 = vmax.f32 %v1090, 0.0
      %v1219 = vmax.f32 %v1091, 0.0
      %v1220 = vmax.f32 %v1092, 0.0
      %v1221 = vmax.f32 %v1093, 0.0
      %v1222 = vmax.f32 %v1094, 0.0
      %v1223 = vmax.f32 %v1095, 0.0
      %v1224 = vmax.f32 %v1096, 0.0
      %v1225 = vmax.f32 %v1097, 0.0
      %v1226 = vmax.f32 %v1098, 0.0
      %v1227 = vmax.f32 %v1099, 0.0
      %v1228 = vmax.f32 %v1100, 0.0
      %v1229 = vmax.f32 %v1101, 0.0
      %v1230 = vmax.f32 %v1102, 0.0
      %v1231 = vmax.f32 %v1103, 0.0
      %v1232 = vmax.f32 %v1104, 0.0
      %v1233 = vmax.f32 %v1105, 0.0
      %v1234 = vmax.f32 %v1106, 0.0
      %v1235 = vmax.f32 %v1107, 0.0
      %v1236 = vmax.f32 %v1108, 0.0
      %v1237 = vmax.f32 %v1109, 0.0
      %v1238 = vmax.f32 %v1110, 0.0
      %v1239 = vmax.f32 %v1111, 0.0
      %v1240 = vmax.f32 %v1112, 0.0
      %v1241 = vmax.f32 %v1113, 0.0
      %v1242 = vmax.f32 %v1114, 0.0
      %v1243 = vmax.f32 %v1115, 0.0
      %v1244 = vmax.f32 %v1116, 0.0
      %v1245 = vmax.f32 %v1117, 0.0
      %v1246 = vmax.f32 %v1118, 0.0
      %v1247 = vmax.f32 %v1119, 0.0
      %v1248 = vmax.f32 %v1120, 0.0
      %v1249 = vmax.f32 %v1121, 0.0
      %v1250 = vmax.f32 %v1122, 0.0
      %v1251 = vmax.f32 %v1123, 0.0
      %v1252 = vmax.f32 %v1124, 0.0
      %v1253 = vmax.f32 %v1125, 0.0
      %v1254 = vmax.f32 %v1126, 0.0
      %v1255 = vmax.f32 %v1127, 0.0
      %v1256 = vmax.f32 %v1128, 0.0
      %v1257 = vmax.f32 %v1129, 0.0
      %v1258 = vmax.f32 %v1130, 0.0
      %v1259 = vmax.f32 %v1131, 0.0
      %v1260 = vmax.f32 %v1132, 0.0
      %v1261 = vmax.f32 %v1133, 0.0
      %v1262 = vmax.f32 %v1134, 0.0
      %v1263 = vmax.f32 %v1135, 0.0
      %v1264 = vmax.f32 %v1136, 0.0
      %v1265 = vmax.f32 %v1137, 0.0
      %v1266 = vmax.f32 %v1138, 0.0
      %v1267 = vmax.f32 %v1139, 0.0
      %v1268 = vmax.f32 %v1140, 0.0
      %v1269 = vmax.f32 %v1141, 0.0
      %v1270 = vmax.f32 %v1142, 0.0
      %v1271 = vmax.f32 %v1143, 0.0
      %v1272 = vmax.f32 %v1144, 0.0
      %v1273 = vmax.f32 %v1145, 0.0
      %v1274 = vmax.f32 %v1146, 0.0
      %v1275 = vmax.f32 %v1147, 0.0
      %v1276 = vmax.f32 %v1148, 0.0
      %v1277 = vmax.f32 %v1149, 0.0
      %v1278 = vmax.f32 %v1150, 0.0
      %v1279 = vmax.f32 %v1151, 0.0
      %v1280 = vmax.f32 %v1152, 0.0
      %v1281 = vmax.f32 %v1153, 0.0
      %v1282 = vmax.f32 %v1154, 0.0
      %v1283 = vmax.f32 %v1155, 0.0
      %v1284 = vmax.f32 %v1156, 0.0
      %v1285 = vmax.f32 %v1157, 0.0
      %v1286 = vmax.f32 %v1158, 0.0
      %v1287 = vmax.f32 %v1159, 0.0
      %v1288 = vmax.f32 %v1160, 0.0
      %v1289 = vmax.f32 %v1161, 0.0
      %v1290 = vmax.f32 %v1162, 0.0
      %v1291 = vmax.f32 %v1163, 0.0
      %v1292 = vmax.f32 %v1164, 0.0
      %v1293 = vmax.f32 %v1165, 0.0
      %v1294 = vmax.f32 %v1166, 0.0
      %v1295 = vmax.f32 %v1167, 0.0
      %v1296 = vmax.f32 %v1168, 0.0
      %v1297 = vmax.f32 %v1169, 0.0
      %v1298 = vmax.f32 %v1170, 0.0
      %v1299 = vmax.f32 %v1171, 0.0
      %v1300 = vmax.f32 %v1172, 0.0
      %v1301 = vmax.f32 %v1173, 0.0
      %v1302 = vmax.f32 %v1174, 0.0
      %v1303 = vmax.f32 %v1175, 0.0
      %v1304 = vmax.f32 %v1176, 0.0
      %v1305 = vmax.f32 %v1177, 0.0
      %v1306 = vmax.f32 %v1178, 0.0
      %v1307 = vmax.f32 %v1179, 0.0
      %v1308 = vmax.f32 %v1180, 0.0
      %v1309 = vmax.f32 %v1181, 0.0
      %v1310 = vpack.c.bf16 %v1186, %v1182
      %v1311 = vpack.c.bf16 %v1187, %v1183
      %v1312 = vpack.c.bf16 %v1188, %v1184
      %v1313 = vpack.c.bf16 %v1189, %v1185
      %v1314 = vpack.c.bf16 %v1194, %v1190
      %v1315 = vpack.c.bf16 %v1195, %v1191
      %v1316 = vpack.c.bf16 %v1196, %v1192
      %v1317 = vpack.c.bf16 %v1197, %v1193
      %v1318 = vpack.c.bf16 %v1202, %v1198
      %v1319 = vpack.c.bf16 %v1203, %v1199
      %v1320 = vpack.c.bf16 %v1204, %v1200
      %v1321 = vpack.c.bf16 %v1205, %v1201
      %v1322 = vpack.c.bf16 %v1210, %v1206
      %v1323 = vpack.c.bf16 %v1211, %v1207
      %v1324 = vpack.c.bf16 %v1212, %v1208
      %v1325 = vpack.c.bf16 %v1213, %v1209
      %v1326 = vpack.c.bf16 %v1218, %v1214
      %v1327 = vpack.c.bf16 %v1219, %v1215
      %v1328 = vpack.c.bf16 %v1220, %v1216
      %v1329 = vpack.c.bf16 %v1221, %v1217
      %v1330 = vpack.c.bf16 %v1226, %v1222
      %v1331 = vpack.c.bf16 %v1227, %v1223
      %v1332 = vpack.c.bf16 %v1228, %v1224
      %v1333 = vpack.c.bf16 %v1229, %v1225
      %v1334 = vpack.c.bf16 %v1234, %v1230
      %v1335 = vpack.c.bf16 %v1235, %v1231
      %v1336 = vpack.c.bf16 %v1236, %v1232
      %v1337 = vpack.c.bf16 %v1237, %v1233
      %v1338 = vpack.c.bf16 %v1242, %v1238
      %v1339 = vpack.c.bf16 %v1243, %v1239
      %v1340 = vpack.c.bf16 %v1244, %v1240
      %v1341 = vpack.c.bf16 %v1245, %v1241
      %v1342 = vpack.c.bf16 %v1250, %v1246
      %v1343 = vpack.c.bf16 %v1251, %v1247
      %v1344 = vpack.c.bf16 %v1252, %v1248
      %v1345 = vpack.c.bf16 %v1253, %v1249
      %v1346 = vpack.c.bf16 %v1258, %v1254
      %v1347 = vpack.c.bf16 %v1259, %v1255
      %v1348 = vpack.c.bf16 %v1260, %v1256
      %v1349 = vpack.c.bf16 %v1261, %v1257
      %v1350 = vpack.c.bf16 %v1266, %v1262
      %v1351 = vpack.c.bf16 %v1267, %v1263
      %v1352 = vpack.c.bf16 %v1268, %v1264
      %v1353 = vpack.c.bf16 %v1269, %v1265
      %v1354 = vpack.c.bf16 %v1274, %v1270
      %v1355 = vpack.c.bf16 %v1275, %v1271
      %v1356 = vpack.c.bf16 %v1276, %v1272
      %v1357 = vpack.c.bf16 %v1277, %v1273
      %v1358 = vpack.c.bf16 %v1282, %v1278
      %v1359 = vpack.c.bf16 %v1283, %v1279
      %v1360 = vpack.c.bf16 %v1284, %v1280
      %v1361 = vpack.c.bf16 %v1285, %v1281
      %v1362 = vpack.c.bf16 %v1290, %v1286
      %v1363 = vpack.c.bf16 %v1291, %v1287
      %v1364 = vpack.c.bf16 %v1292, %v1288
      %v1365 = vpack.c.bf16 %v1293, %v1289
      %v1366 = vpack.c.bf16 %v1298, %v1294
      %v1367 = vpack.c.bf16 %v1299, %v1295
      %v1368 = vpack.c.bf16 %v1300, %v1296
      %v1369 = vpack.c.bf16 %v1301, %v1297
      %v1370 = vpack.c.bf16 %v1306, %v1302
      %v1371 = vpack.c.bf16 %v1307, %v1303
      %v1372 = vpack.c.bf16 %v1308, %v1304
      %v1373 = vpack.c.bf16 %v1309, %v1305
      %v1374 = vld [vmem:[%s2] sm:$0xff]
      %v1375 = vld [vmem:[%s2 + $0x8] sm:$0xff]
      %v1376 = vld [vmem:[%s2 + $0x10] sm:$0xff]
      %v1377 = vld [vmem:[%s2 + $0x18] sm:$0xff]
      %v1378 = vld [vmem:[%s2 + $0x20] sm:$0xff]
      %v1379 = vld [vmem:[%s2 + $0x28] sm:$0xff]
      %v1380 = vld [vmem:[%s2 + $0x30] sm:$0xff]
      %v1381 = vld [vmem:[%s2 + $0x38] sm:$0xff]
      %v1382 = vld [vmem:[%s2 + $0x40] sm:$0xff]
      %v1383 = vld [vmem:[%s2 + $0x48] sm:$0xff]
      %v1384 = vld [vmem:[%s2 + $0x50] sm:$0xff]
      %v1385 = vld [vmem:[%s2 + $0x58] sm:$0xff]
      %v1386 = vld [vmem:[%s2 + $0x60] sm:$0xff]
      %v1387 = vld [vmem:[%s2 + $0x68] sm:$0xff]
      %v1388 = vld [vmem:[%s2 + $0x70] sm:$0xff]
      %v1389 = vld [vmem:[%s2 + $0x78] sm:$0xff]
      %v1390 = vld [vmem:[%s2 + $0x80] sm:$0xff]
      %v1391 = vld [vmem:[%s2 + $0x88] sm:$0xff]
      %v1392 = vld [vmem:[%s2 + $0x90] sm:$0xff]
      %v1393 = vld [vmem:[%s2 + $0x98] sm:$0xff]
      %v1394 = vld [vmem:[%s2 + $0xa0] sm:$0xff]
      %v1395 = vld [vmem:[%s2 + $0xa8] sm:$0xff]
      %v1396 = vld [vmem:[%s2 + $0xb0] sm:$0xff]
      %v1397 = vld [vmem:[%s2 + $0xb8] sm:$0xff]
      %v1398 = vld [vmem:[%s2 + $0xc0] sm:$0xff]
      %v1399 = vld [vmem:[%s2 + $0xc8] sm:$0xff]
      %v1400 = vld [vmem:[%s2 + $0xd0] sm:$0xff]
      %v1401 = vld [vmem:[%s2 + $0xd8] sm:$0xff]
      %v1402 = vld [vmem:[%s2 + $0xe0] sm:$0xff]
      %v1403 = vld [vmem:[%s2 + $0xe8] sm:$0xff]
      %v1404 = vld [vmem:[%s2 + $0xf0] sm:$0xff]
      %v1405 = vld [vmem:[%s2 + $0xf8] sm:$0xff]
      %v1406 = vld [vmem:[%s2 + $0x100] sm:$0xff]
      %v1407 = vld [vmem:[%s2 + $0x108] sm:$0xff]
      %v1408 = vld [vmem:[%s2 + $0x110] sm:$0xff]
      %v1409 = vld [vmem:[%s2 + $0x118] sm:$0xff]
      %v1410 = vld [vmem:[%s2 + $0x120] sm:$0xff]
      %v1411 = vld [vmem:[%s2 + $0x128] sm:$0xff]
      %v1412 = vld [vmem:[%s2 + $0x130] sm:$0xff]
      %v1413 = vld [vmem:[%s2 + $0x138] sm:$0xff]
      %v1414 = vld [vmem:[%s2 + $0x140] sm:$0xff]
      %v1415 = vld [vmem:[%s2 + $0x148] sm:$0xff]
      %v1416 = vld [vmem:[%s2 + $0x150] sm:$0xff]
      %v1417 = vld [vmem:[%s2 + $0x158] sm:$0xff]
      %v1418 = vld [vmem:[%s2 + $0x160] sm:$0xff]
      %v1419 = vld [vmem:[%s2 + $0x168] sm:$0xff]
      %v1420 = vld [vmem:[%s2 + $0x170] sm:$0xff]
      %v1421 = vld [vmem:[%s2 + $0x178] sm:$0xff]
      %v1422 = vld [vmem:[%s2 + $0x180] sm:$0xff]
      %v1423 = vld [vmem:[%s2 + $0x188] sm:$0xff]
      %v1424 = vld [vmem:[%s2 + $0x190] sm:$0xff]
      %v1425 = vld [vmem:[%s2 + $0x198] sm:$0xff]
      %v1426 = vld [vmem:[%s2 + $0x1a0] sm:$0xff]
      %v1427 = vld [vmem:[%s2 + $0x1a8] sm:$0xff]
      %v1428 = vld [vmem:[%s2 + $0x1b0] sm:$0xff]
      %v1429 = vld [vmem:[%s2 + $0x1b8] sm:$0xff]
      %v1430 = vld [vmem:[%s2 + $0x1c0] sm:$0xff]
      %v1431 = vld [vmem:[%s2 + $0x1c8] sm:$0xff]
      %v1432 = vld [vmem:[%s2 + $0x1d0] sm:$0xff]
      %v1433 = vld [vmem:[%s2 + $0x1d8] sm:$0xff]
      %v1434 = vld [vmem:[%s2 + $0x1e0] sm:$0xff]
      %v1435 = vld [vmem:[%s2 + $0x1e8] sm:$0xff]
      %v1436 = vld [vmem:[%s2 + $0x1f0] sm:$0xff]
      %v1437 = vld [vmem:[%s2 + $0x1f8] sm:$0xff]
      %v1438 = vld [vmem:[%s2 + $0x200] sm:$0xff]
      %v1439 = vld [vmem:[%s2 + $0x208] sm:$0xff]
      %v1440 = vld [vmem:[%s2 + $0x210] sm:$0xff]
      %v1441 = vld [vmem:[%s2 + $0x218] sm:$0xff]
      %v1442 = vld [vmem:[%s2 + $0x220] sm:$0xff]
      %v1443 = vld [vmem:[%s2 + $0x228] sm:$0xff]
      %v1444 = vld [vmem:[%s2 + $0x230] sm:$0xff]
      %v1445 = vld [vmem:[%s2 + $0x238] sm:$0xff]
      %v1446 = vld [vmem:[%s2 + $0x240] sm:$0xff]
      %v1447 = vld [vmem:[%s2 + $0x248] sm:$0xff]
      %v1448 = vld [vmem:[%s2 + $0x250] sm:$0xff]
      %v1449 = vld [vmem:[%s2 + $0x258] sm:$0xff]
      %v1450 = vld [vmem:[%s2 + $0x260] sm:$0xff]
      %v1451 = vld [vmem:[%s2 + $0x268] sm:$0xff]
      %v1452 = vld [vmem:[%s2 + $0x270] sm:$0xff]
      %v1453 = vld [vmem:[%s2 + $0x278] sm:$0xff]
      %v1454 = vld [vmem:[%s2 + $0x280] sm:$0xff]
      %v1455 = vld [vmem:[%s2 + $0x288] sm:$0xff]
      %v1456 = vld [vmem:[%s2 + $0x290] sm:$0xff]
      %v1457 = vld [vmem:[%s2 + $0x298] sm:$0xff]
      %v1458 = vld [vmem:[%s2 + $0x2a0] sm:$0xff]
      %v1459 = vld [vmem:[%s2 + $0x2a8] sm:$0xff]
      %v1460 = vld [vmem:[%s2 + $0x2b0] sm:$0xff]
      %v1461 = vld [vmem:[%s2 + $0x2b8] sm:$0xff]
      %v1462 = vld [vmem:[%s2 + $0x2c0] sm:$0xff]
      %v1463 = vld [vmem:[%s2 + $0x2c8] sm:$0xff]
      %v1464 = vld [vmem:[%s2 + $0x2d0] sm:$0xff]
      %v1465 = vld [vmem:[%s2 + $0x2d8] sm:$0xff]
      %v1466 = vld [vmem:[%s2 + $0x2e0] sm:$0xff]
      %v1467 = vld [vmem:[%s2 + $0x2e8] sm:$0xff]
      %v1468 = vld [vmem:[%s2 + $0x2f0] sm:$0xff]
      %v1469 = vld [vmem:[%s2 + $0x2f8] sm:$0xff]
      %v1470 = vld [vmem:[%s2 + $0x300] sm:$0xff]
      %v1471 = vld [vmem:[%s2 + $0x308] sm:$0xff]
      %v1472 = vld [vmem:[%s2 + $0x310] sm:$0xff]
      %v1473 = vld [vmem:[%s2 + $0x318] sm:$0xff]
      %v1474 = vld [vmem:[%s2 + $0x320] sm:$0xff]
      %v1475 = vld [vmem:[%s2 + $0x328] sm:$0xff]
      %v1476 = vld [vmem:[%s2 + $0x330] sm:$0xff]
      %v1477 = vld [vmem:[%s2 + $0x338] sm:$0xff]
      %v1478 = vld [vmem:[%s2 + $0x340] sm:$0xff]
      %v1479 = vld [vmem:[%s2 + $0x348] sm:$0xff]
      %v1480 = vld [vmem:[%s2 + $0x350] sm:$0xff]
      %v1481 = vld [vmem:[%s2 + $0x358] sm:$0xff]
      %v1482 = vld [vmem:[%s2 + $0x360] sm:$0xff]
      %v1483 = vld [vmem:[%s2 + $0x368] sm:$0xff]
      %v1484 = vld [vmem:[%s2 + $0x370] sm:$0xff]
      %v1485 = vld [vmem:[%s2 + $0x378] sm:$0xff]
      %v1486 = vld [vmem:[%s2 + $0x380] sm:$0xff]
      %v1487 = vld [vmem:[%s2 + $0x388] sm:$0xff]
      %v1488 = vld [vmem:[%s2 + $0x390] sm:$0xff]
      %v1489 = vld [vmem:[%s2 + $0x398] sm:$0xff]
      %v1490 = vld [vmem:[%s2 + $0x3a0] sm:$0xff]
      %v1491 = vld [vmem:[%s2 + $0x3a8] sm:$0xff]
      %v1492 = vld [vmem:[%s2 + $0x3b0] sm:$0xff]
      %v1493 = vld [vmem:[%s2 + $0x3b8] sm:$0xff]
      %v1494 = vld [vmem:[%s2 + $0x3c0] sm:$0xff]
      %v1495 = vld [vmem:[%s2 + $0x3c8] sm:$0xff]
      %v1496 = vld [vmem:[%s2 + $0x3d0] sm:$0xff]
      %v1497 = vld [vmem:[%s2 + $0x3d8] sm:$0xff]
      %v1498 = vld [vmem:[%s2 + $0x3e0] sm:$0xff]
      %v1499 = vld [vmem:[%s2 + $0x3e8] sm:$0xff]
      %v1500 = vld [vmem:[%s2 + $0x3f0] sm:$0xff]
      %v1501 = vld [vmem:[%s2 + $0x3f8] sm:$0xff]
      %v1502 = vlaneseq
      %v1503 = vshrl.u32 %v1502, 7
      %v1504 = vsub.s32 1, %v1503
      %v1505 = vrot.slane %v256, %v1504
      %v1506 = vlaneseq
      %v1507 = vshrl.u32 %v1506, 7
      %v1508 = vsub.s32 1, %v1507
      %v1509 = vrot.slane %v257, %v1508
      %v1510 = vlaneseq
      %v1511 = vshrl.u32 %v1510, 7
      %v1512 = vsub.s32 1, %v1511
      %v1513 = vrot.slane %v258, %v1512
      %v1514 = vlaneseq
      %v1515 = vshrl.u32 %v1514, 7
      %v1516 = vsub.s32 1, %v1515
      %v1517 = vrot.slane %v259, %v1516
      %v1646 = vunpack.c.l.b16 %v1374
      %v1647 = vunpack.c.h.b16 %v1374
      %v1648 = vunpack.c.l.b16 %v1375
      %v1649 = vunpack.c.h.b16 %v1375
      %v1650 = vunpack.c.l.b16 %v1376
      %v1651 = vunpack.c.h.b16 %v1376
      %v1652 = vunpack.c.l.b16 %v1377
      %v1653 = vunpack.c.h.b16 %v1377
      %v1654 = vunpack.c.l.b16 %v1378
      %v1655 = vunpack.c.h.b16 %v1378
      %v1656 = vunpack.c.l.b16 %v1379
      %v1657 = vunpack.c.h.b16 %v1379
      %v1658 = vunpack.c.l.b16 %v1380
      %v1659 = vunpack.c.h.b16 %v1380
      %v1660 = vunpack.c.l.b16 %v1381
      %v1661 = vunpack.c.h.b16 %v1381
      %v1662 = vunpack.c.l.b16 %v1382
      %v1663 = vunpack.c.h.b16 %v1382
      %v1664 = vunpack.c.l.b16 %v1383
      %v1665 = vunpack.c.h.b16 %v1383
      %v1666 = vunpack.c.l.b16 %v1384
      %v1667 = vunpack.c.h.b16 %v1384
      %v1668 = vunpack.c.l.b16 %v1385
      %v1669 = vunpack.c.h.b16 %v1385
      %v1670 = vunpack.c.l.b16 %v1386
      %v1671 = vunpack.c.h.b16 %v1386
      %v1672 = vunpack.c.l.b16 %v1387
      %v1673 = vunpack.c.h.b16 %v1387
      %v1674 = vunpack.c.l.b16 %v1388
      %v1675 = vunpack.c.h.b16 %v1388
      %v1676 = vunpack.c.l.b16 %v1389
      %v1677 = vunpack.c.h.b16 %v1389
      %v1678 = vunpack.c.l.b16 %v1390
      %v1679 = vunpack.c.h.b16 %v1390
      %v1680 = vunpack.c.l.b16 %v1391
      %v1681 = vunpack.c.h.b16 %v1391
      %v1682 = vunpack.c.l.b16 %v1392
      %v1683 = vunpack.c.h.b16 %v1392
      %v1684 = vunpack.c.l.b16 %v1393
      %v1685 = vunpack.c.h.b16 %v1393
      %v1686 = vunpack.c.l.b16 %v1394
      %v1687 = vunpack.c.h.b16 %v1394
      %v1688 = vunpack.c.l.b16 %v1395
      %v1689 = vunpack.c.h.b16 %v1395
      %v1690 = vunpack.c.l.b16 %v1396
      %v1691 = vunpack.c.h.b16 %v1396
      %v1692 = vunpack.c.l.b16 %v1397
      %v1693 = vunpack.c.h.b16 %v1397
      %v1694 = vunpack.c.l.b16 %v1398
      %v1695 = vunpack.c.h.b16 %v1398
      %v1696 = vunpack.c.l.b16 %v1399
      %v1697 = vunpack.c.h.b16 %v1399
      %v1698 = vunpack.c.l.b16 %v1400
      %v1699 = vunpack.c.h.b16 %v1400
      %v1700 = vunpack.c.l.b16 %v1401
      %v1701 = vunpack.c.h.b16 %v1401
      %v1702 = vunpack.c.l.b16 %v1402
      %v1703 = vunpack.c.h.b16 %v1402
      %v1704 = vunpack.c.l.b16 %v1403
      %v1705 = vunpack.c.h.b16 %v1403
      %v1706 = vunpack.c.l.b16 %v1404
      %v1707 = vunpack.c.h.b16 %v1404
      %v1708 = vunpack.c.l.b16 %v1405
      %v1709 = vunpack.c.h.b16 %v1405
      %v1710 = vunpack.c.l.b16 %v1406
      %v1711 = vunpack.c.h.b16 %v1406
      %v1712 = vunpack.c.l.b16 %v1407
      %v1713 = vunpack.c.h.b16 %v1407
      %v1714 = vunpack.c.l.b16 %v1408
      %v1715 = vunpack.c.h.b16 %v1408
      %v1716 = vunpack.c.l.b16 %v1409
      %v1717 = vunpack.c.h.b16 %v1409
      %v1718 = vunpack.c.l.b16 %v1410
      %v1719 = vunpack.c.h.b16 %v1410
      %v1720 = vunpack.c.l.b16 %v1411
      %v1721 = vunpack.c.h.b16 %v1411
      %v1722 = vunpack.c.l.b16 %v1412
      %v1723 = vunpack.c.h.b16 %v1412
      %v1724 = vunpack.c.l.b16 %v1413
      %v1725 = vunpack.c.h.b16 %v1413
      %v1726 = vunpack.c.l.b16 %v1414
      %v1727 = vunpack.c.h.b16 %v1414
      %v1728 = vunpack.c.l.b16 %v1415
      %v1729 = vunpack.c.h.b16 %v1415
      %v1730 = vunpack.c.l.b16 %v1416
      %v1731 = vunpack.c.h.b16 %v1416
      %v1732 = vunpack.c.l.b16 %v1417
      %v1733 = vunpack.c.h.b16 %v1417
      %v1734 = vunpack.c.l.b16 %v1418
      %v1735 = vunpack.c.h.b16 %v1418
      %v1736 = vunpack.c.l.b16 %v1419
      %v1737 = vunpack.c.h.b16 %v1419
      %v1738 = vunpack.c.l.b16 %v1420
      %v1739 = vunpack.c.h.b16 %v1420
      %v1740 = vunpack.c.l.b16 %v1421
      %v1741 = vunpack.c.h.b16 %v1421
      %v1742 = vunpack.c.l.b16 %v1422
      %v1743 = vunpack.c.h.b16 %v1422
      %v1744 = vunpack.c.l.b16 %v1423
      %v1745 = vunpack.c.h.b16 %v1423
      %v1746 = vunpack.c.l.b16 %v1424
      %v1747 = vunpack.c.h.b16 %v1424
      %v1748 = vunpack.c.l.b16 %v1425
      %v1749 = vunpack.c.h.b16 %v1425
      %v1750 = vunpack.c.l.b16 %v1426
      %v1751 = vunpack.c.h.b16 %v1426
      %v1752 = vunpack.c.l.b16 %v1427
      %v1753 = vunpack.c.h.b16 %v1427
      %v1754 = vunpack.c.l.b16 %v1428
      %v1755 = vunpack.c.h.b16 %v1428
      %v1756 = vunpack.c.l.b16 %v1429
      %v1757 = vunpack.c.h.b16 %v1429
      %v1758 = vunpack.c.l.b16 %v1430
      %v1759 = vunpack.c.h.b16 %v1430
      %v1760 = vunpack.c.l.b16 %v1431
      %v1761 = vunpack.c.h.b16 %v1431
      %v1762 = vunpack.c.l.b16 %v1432
      %v1763 = vunpack.c.h.b16 %v1432
      %v1764 = vunpack.c.l.b16 %v1433
      %v1765 = vunpack.c.h.b16 %v1433
      %v1766 = vunpack.c.l.b16 %v1434
      %v1767 = vunpack.c.h.b16 %v1434
      %v1768 = vunpack.c.l.b16 %v1435
      %v1769 = vunpack.c.h.b16 %v1435
      %v1770 = vunpack.c.l.b16 %v1436
      %v1771 = vunpack.c.h.b16 %v1436
      %v1772 = vunpack.c.l.b16 %v1437
      %v1773 = vunpack.c.h.b16 %v1437
      %v1774 = vunpack.c.l.b16 %v1438
      %v1775 = vunpack.c.h.b16 %v1438
      %v1776 = vunpack.c.l.b16 %v1439
      %v1777 = vunpack.c.h.b16 %v1439
      %v1778 = vunpack.c.l.b16 %v1440
      %v1779 = vunpack.c.h.b16 %v1440
      %v1780 = vunpack.c.l.b16 %v1441
      %v1781 = vunpack.c.h.b16 %v1441
      %v1782 = vunpack.c.l.b16 %v1442
      %v1783 = vunpack.c.h.b16 %v1442
      %v1784 = vunpack.c.l.b16 %v1443
      %v1785 = vunpack.c.h.b16 %v1443
      %v1786 = vunpack.c.l.b16 %v1444
      %v1787 = vunpack.c.h.b16 %v1444
      %v1788 = vunpack.c.l.b16 %v1445
      %v1789 = vunpack.c.h.b16 %v1445
      %v1790 = vunpack.c.l.b16 %v1446
      %v1791 = vunpack.c.h.b16 %v1446
      %v1792 = vunpack.c.l.b16 %v1447
      %v1793 = vunpack.c.h.b16 %v1447
      %v1794 = vunpack.c.l.b16 %v1448
      %v1795 = vunpack.c.h.b16 %v1448
      %v1796 = vunpack.c.l.b16 %v1449
      %v1797 = vunpack.c.h.b16 %v1449
      %v1798 = vunpack.c.l.b16 %v1450
      %v1799 = vunpack.c.h.b16 %v1450
      %v1800 = vunpack.c.l.b16 %v1451
      %v1801 = vunpack.c.h.b16 %v1451
      %v1802 = vunpack.c.l.b16 %v1452
      %v1803 = vunpack.c.h.b16 %v1452
      %v1804 = vunpack.c.l.b16 %v1453
      %v1805 = vunpack.c.h.b16 %v1453
      %v1806 = vunpack.c.l.b16 %v1454
      %v1807 = vunpack.c.h.b16 %v1454
      %v1808 = vunpack.c.l.b16 %v1455
      %v1809 = vunpack.c.h.b16 %v1455
      %v1810 = vunpack.c.l.b16 %v1456
      %v1811 = vunpack.c.h.b16 %v1456
      %v1812 = vunpack.c.l.b16 %v1457
      %v1813 = vunpack.c.h.b16 %v1457
      %v1814 = vunpack.c.l.b16 %v1458
      %v1815 = vunpack.c.h.b16 %v1458
      %v1816 = vunpack.c.l.b16 %v1459
      %v1817 = vunpack.c.h.b16 %v1459
      %v1818 = vunpack.c.l.b16 %v1460
      %v1819 = vunpack.c.h.b16 %v1460
      %v1820 = vunpack.c.l.b16 %v1461
      %v1821 = vunpack.c.h.b16 %v1461
      %v1822 = vunpack.c.l.b16 %v1462
      %v1823 = vunpack.c.h.b16 %v1462
      %v1824 = vunpack.c.l.b16 %v1463
      %v1825 = vunpack.c.h.b16 %v1463
      %v1826 = vunpack.c.l.b16 %v1464
      %v1827 = vunpack.c.h.b16 %v1464
      %v1828 = vunpack.c.l.b16 %v1465
      %v1829 = vunpack.c.h.b16 %v1465
      %v1830 = vunpack.c.l.b16 %v1466
      %v1831 = vunpack.c.h.b16 %v1466
      %v1832 = vunpack.c.l.b16 %v1467
      %v1833 = vunpack.c.h.b16 %v1467
      %v1834 = vunpack.c.l.b16 %v1468
      %v1835 = vunpack.c.h.b16 %v1468
      %v1836 = vunpack.c.l.b16 %v1469
      %v1837 = vunpack.c.h.b16 %v1469
      %v1838 = vunpack.c.l.b16 %v1470
      %v1839 = vunpack.c.h.b16 %v1470
      %v1840 = vunpack.c.l.b16 %v1471
      %v1841 = vunpack.c.h.b16 %v1471
      %v1842 = vunpack.c.l.b16 %v1472
      %v1843 = vunpack.c.h.b16 %v1472
      %v1844 = vunpack.c.l.b16 %v1473
      %v1845 = vunpack.c.h.b16 %v1473
      %v1846 = vunpack.c.l.b16 %v1474
      %v1847 = vunpack.c.h.b16 %v1474
      %v1848 = vunpack.c.l.b16 %v1475
      %v1849 = vunpack.c.h.b16 %v1475
      %v1850 = vunpack.c.l.b16 %v1476
      %v1851 = vunpack.c.h.b16 %v1476
      %v1852 = vunpack.c.l.b16 %v1477
      %v1853 = vunpack.c.h.b16 %v1477
      %v1854 = vunpack.c.l.b16 %v1478
      %v1855 = vunpack.c.h.b16 %v1478
      %v1856 = vunpack.c.l.b16 %v1479
      %v1857 = vunpack.c.h.b16 %v1479
      %v1858 = vunpack.c.l.b16 %v1480
      %v1859 = vunpack.c.h.b16 %v1480
      %v1860 = vunpack.c.l.b16 %v1481
      %v1861 = vunpack.c.h.b16 %v1481
      %v1862 = vunpack.c.l.b16 %v1482
      %v1863 = vunpack.c.h.b16 %v1482
      %v1864 = vunpack.c.l.b16 %v1483
      %v1865 = vunpack.c.h.b16 %v1483
      %v1866 = vunpack.c.l.b16 %v1484
      %v1867 = vunpack.c.h.b16 %v1484
      %v1868 = vunpack.c.l.b16 %v1485
      %v1869 = vunpack.c.h.b16 %v1485
      %v1870 = vunpack.c.l.b16 %v1486
      %v1871 = vunpack.c.h.b16 %v1486
      %v1872 = vunpack.c.l.b16 %v1487
      %v1873 = vunpack.c.h.b16 %v1487
      %v1874 = vunpack.c.l.b16 %v1488
      %v1875 = vunpack.c.h.b16 %v1488
      %v1876 = vunpack.c.l.b16 %v1489
      %v1877 = vunpack.c.h.b16 %v1489
      %v1878 = vunpack.c.l.b16 %v1490
      %v1879 = vunpack.c.h.b16 %v1490
      %v1880 = vunpack.c.l.b16 %v1491
      %v1881 = vunpack.c.h.b16 %v1491
      %v1882 = vunpack.c.l.b16 %v1492
      %v1883 = vunpack.c.h.b16 %v1492
      %v1884 = vunpack.c.l.b16 %v1493
      %v1885 = vunpack.c.h.b16 %v1493
      %v1886 = vunpack.c.l.b16 %v1494
      %v1887 = vunpack.c.h.b16 %v1494
      %v1888 = vunpack.c.l.b16 %v1495
      %v1889 = vunpack.c.h.b16 %v1495
      %v1890 = vunpack.c.l.b16 %v1496
      %v1891 = vunpack.c.h.b16 %v1496
      %v1892 = vunpack.c.l.b16 %v1497
      %v1893 = vunpack.c.h.b16 %v1497
      %v1894 = vunpack.c.l.b16 %v1498
      %v1895 = vunpack.c.h.b16 %v1498
      %v1896 = vunpack.c.l.b16 %v1499
      %v1897 = vunpack.c.h.b16 %v1499
      %v1898 = vunpack.c.l.b16 %v1500
      %v1899 = vunpack.c.h.b16 %v1500
      %v1900 = vunpack.c.l.b16 %v1501
      %v1901 = vunpack.c.h.b16 %v1501
      %v1902 = vpack.c.b16 %v1650, %v1646
      %v1903 = vpack.c.b16 %v1651, %v1647
      %v1904 = vpack.c.b16 %v1652, %v1648
      %v1905 = vpack.c.b16 %v1653, %v1649
      %v1906 = vpack.c.b16 %v1658, %v1654
      %v1907 = vpack.c.b16 %v1659, %v1655
      %v1908 = vpack.c.b16 %v1660, %v1656
      %v1909 = vpack.c.b16 %v1661, %v1657
      %v1910 = vpack.c.b16 %v1666, %v1662
      %v1911 = vpack.c.b16 %v1667, %v1663
      %v1912 = vpack.c.b16 %v1668, %v1664
      %v1913 = vpack.c.b16 %v1669, %v1665
      %v1914 = vpack.c.b16 %v1674, %v1670
      %v1915 = vpack.c.b16 %v1675, %v1671
      %v1916 = vpack.c.b16 %v1676, %v1672
      %v1917 = vpack.c.b16 %v1677, %v1673
      %v1918 = vpack.c.b16 %v1682, %v1678
      %v1919 = vpack.c.b16 %v1683, %v1679
      %v1920 = vpack.c.b16 %v1684, %v1680
      %v1921 = vpack.c.b16 %v1685, %v1681
      %v1922 = vpack.c.b16 %v1690, %v1686
      %v1923 = vpack.c.b16 %v1691, %v1687
      %v1924 = vpack.c.b16 %v1692, %v1688
      %v1925 = vpack.c.b16 %v1693, %v1689
      %v1926 = vpack.c.b16 %v1698, %v1694
      %v1927 = vpack.c.b16 %v1699, %v1695
      %v1928 = vpack.c.b16 %v1700, %v1696
      %v1929 = vpack.c.b16 %v1701, %v1697
      %v1930 = vpack.c.b16 %v1706, %v1702
      %v1931 = vpack.c.b16 %v1707, %v1703
      %v1932 = vpack.c.b16 %v1708, %v1704
      %v1933 = vpack.c.b16 %v1709, %v1705
      %v1934 = vpack.c.b16 %v1714, %v1710
      %v1935 = vpack.c.b16 %v1715, %v1711
      %v1936 = vpack.c.b16 %v1716, %v1712
      %v1937 = vpack.c.b16 %v1717, %v1713
      %v1938 = vpack.c.b16 %v1722, %v1718
      %v1939 = vpack.c.b16 %v1723, %v1719
      %v1940 = vpack.c.b16 %v1724, %v1720
      %v1941 = vpack.c.b16 %v1725, %v1721
      %v1942 = vpack.c.b16 %v1730, %v1726
      %v1943 = vpack.c.b16 %v1731, %v1727
      %v1944 = vpack.c.b16 %v1732, %v1728
      %v1945 = vpack.c.b16 %v1733, %v1729
      %v1946 = vpack.c.b16 %v1738, %v1734
      %v1947 = vpack.c.b16 %v1739, %v1735
      %v1948 = vpack.c.b16 %v1740, %v1736
      %v1949 = vpack.c.b16 %v1741, %v1737
      %v1950 = vpack.c.b16 %v1746, %v1742
      %v1951 = vpack.c.b16 %v1747, %v1743
      %v1952 = vpack.c.b16 %v1748, %v1744
      %v1953 = vpack.c.b16 %v1749, %v1745
      %v1954 = vpack.c.b16 %v1754, %v1750
      %v1955 = vpack.c.b16 %v1755, %v1751
      %v1956 = vpack.c.b16 %v1756, %v1752
      %v1957 = vpack.c.b16 %v1757, %v1753
      %v1958 = vpack.c.b16 %v1762, %v1758
      %v1959 = vpack.c.b16 %v1763, %v1759
      %v1960 = vpack.c.b16 %v1764, %v1760
      %v1961 = vpack.c.b16 %v1765, %v1761
      %v1962 = vpack.c.b16 %v1770, %v1766
      %v1963 = vpack.c.b16 %v1771, %v1767
      %v1964 = vpack.c.b16 %v1772, %v1768
      %v1965 = vpack.c.b16 %v1773, %v1769
      %v1966 = vpack.c.b16 %v1778, %v1774
      %v1967 = vpack.c.b16 %v1779, %v1775
      %v1968 = vpack.c.b16 %v1780, %v1776
      %v1969 = vpack.c.b16 %v1781, %v1777
      %v1970 = vpack.c.b16 %v1786, %v1782
      %v1971 = vpack.c.b16 %v1787, %v1783
      %v1972 = vpack.c.b16 %v1788, %v1784
      %v1973 = vpack.c.b16 %v1789, %v1785
      %v1974 = vpack.c.b16 %v1794, %v1790
      %v1975 = vpack.c.b16 %v1795, %v1791
      %v1976 = vpack.c.b16 %v1796, %v1792
      %v1977 = vpack.c.b16 %v1797, %v1793
      %v1978 = vpack.c.b16 %v1802, %v1798
      %v1979 = vpack.c.b16 %v1803, %v1799
      %v1980 = vpack.c.b16 %v1804, %v1800
      %v1981 = vpack.c.b16 %v1805, %v1801
      %v1982 = vpack.c.b16 %v1810, %v1806
      %v1983 = vpack.c.b16 %v1811, %v1807
      %v1984 = vpack.c.b16 %v1812, %v1808
      %v1985 = vpack.c.b16 %v1813, %v1809
      %v1986 = vpack.c.b16 %v1818, %v1814
      %v1987 = vpack.c.b16 %v1819, %v1815
      %v1988 = vpack.c.b16 %v1820, %v1816
      %v1989 = vpack.c.b16 %v1821, %v1817
      %v1990 = vpack.c.b16 %v1826, %v1822
      %v1991 = vpack.c.b16 %v1827, %v1823
      %v1992 = vpack.c.b16 %v1828, %v1824
      %v1993 = vpack.c.b16 %v1829, %v1825
      %v1994 = vpack.c.b16 %v1834, %v1830
      %v1995 = vpack.c.b16 %v1835, %v1831
      %v1996 = vpack.c.b16 %v1836, %v1832
      %v1997 = vpack.c.b16 %v1837, %v1833
      %v1998 = vpack.c.b16 %v1842, %v1838
      %v1999 = vpack.c.b16 %v1843, %v1839
      %v2000 = vpack.c.b16 %v1844, %v1840
      %v2001 = vpack.c.b16 %v1845, %v1841
      %v2002 = vpack.c.b16 %v1850, %v1846
      %v2003 = vpack.c.b16 %v1851, %v1847
      %v2004 = vpack.c.b16 %v1852, %v1848
      %v2005 = vpack.c.b16 %v1853, %v1849
      %v2006 = vpack.c.b16 %v1858, %v1854
      %v2007 = vpack.c.b16 %v1859, %v1855
      %v2008 = vpack.c.b16 %v1860, %v1856
      %v2009 = vpack.c.b16 %v1861, %v1857
      %v2010 = vpack.c.b16 %v1866, %v1862
      %v2011 = vpack.c.b16 %v1867, %v1863
      %v2012 = vpack.c.b16 %v1868, %v1864
      %v2013 = vpack.c.b16 %v1869, %v1865
      %v2014 = vpack.c.b16 %v1874, %v1870
      %v2015 = vpack.c.b16 %v1875, %v1871
      %v2016 = vpack.c.b16 %v1876, %v1872
      %v2017 = vpack.c.b16 %v1877, %v1873
      %v2018 = vpack.c.b16 %v1882, %v1878
      %v2019 = vpack.c.b16 %v1883, %v1879
      %v2020 = vpack.c.b16 %v1884, %v1880
      %v2021 = vpack.c.b16 %v1885, %v1881
      %v2022 = vpack.c.b16 %v1890, %v1886
      %v2023 = vpack.c.b16 %v1891, %v1887
      %v2024 = vpack.c.b16 %v1892, %v1888
      %v2025 = vpack.c.b16 %v1893, %v1889
      %v2026 = vpack.c.b16 %v1898, %v1894
      %v2027 = vpack.c.b16 %v1899, %v1895
      %v2028 = vpack.c.b16 %v1900, %v1896
      %v2029 = vpack.c.b16 %v1901, %v1897
      %2158 = vmatprep.subr.bf16.mxu0 %v1903
      %2159 = vmatpush1.bf16.msra.mxu0 %v1902
      %2160 = vmatprep.subr.bf16.mxu0 %v1907
      %2161 = vmatpush1.bf16.msra.mxu0 %v1906
      %2162 = vmatprep.subr.bf16.mxu0 %v1911
      %2163 = vmatpush1.bf16.msra.mxu0 %v1910
      %2164 = vmatprep.subr.bf16.mxu0 %v1915
      %2165 = vmatpush1.bf16.msra.mxu0 %v1914
      %2166 = vmatprep.subr.bf16.mxu0 %v1919
      %2167 = vmatpush1.bf16.msra.mxu0 %v1918
      %2168 = vmatprep.subr.bf16.mxu0 %v1923
      %2169 = vmatpush1.bf16.msra.mxu0 %v1922
      %2170 = vmatprep.subr.bf16.mxu0 %v1927
      %2171 = vmatpush1.bf16.msra.mxu0 %v1926
      %2172 = vmatprep.subr.bf16.mxu0 %v1931
      %2173 = vmatpush1.bf16.msra.mxu0 %v1930
      %2174 = vmatprep.subr.bf16.mxu0 %v1935
      %2175 = vmatpush1.bf16.msra.mxu0 %v1934
      %2176 = vmatprep.subr.bf16.mxu0 %v1939
      %2177 = vmatpush1.bf16.msra.mxu0 %v1938
      %2178 = vmatprep.subr.bf16.mxu0 %v1943
      %2179 = vmatpush1.bf16.msra.mxu0 %v1942
      %2180 = vmatprep.subr.bf16.mxu0 %v1947
      %2181 = vmatpush1.bf16.msra.mxu0 %v1946
      %2182 = vmatprep.subr.bf16.mxu0 %v1951
      %2183 = vmatpush1.bf16.msra.mxu0 %v1950
      %2184 = vmatprep.subr.bf16.mxu0 %v1955
      %2185 = vmatpush1.bf16.msra.mxu0 %v1954
      %2186 = vmatprep.subr.bf16.mxu0 %v1959
      %2187 = vmatpush1.bf16.msra.mxu0 %v1958
      %2188 = vmatprep.subr.bf16.mxu0 %v1963
      %2189 = vmatpush1.bf16.msra.mxu0 %v1962
      %2190 = vmatprep.mubr.bf16.mxu0 %v1311
      %2191 = vmatmul.mubr.bf16.gmra.mrb[0].mxu0 %v1310
      %v2192 = vpop.f32.mrb[0].mxu0
      %v2193 = vadd.f32 %v1505, %v2192
      %v2194 = vpop.f32.mrb[0].mxu0
      %v2195 = vadd.f32 %v1509, %v2194
      %v2196 = vpop.f32.mrb[0].mxu0
      %v2197 = vadd.f32 %v1505, %v2196
      %v2198 = vpop.f32.mrb[0].mxu0
      %v2199 = vadd.f32 %v1509, %v2198
      %2200 = vmatprep.mubr.bf16.mxu0 %v1315
      %2201 = vmatmul.mubr.bf16.gmra.mrb[0].mxu0 %v1314
      %v2202 = vpop.f32.mrb[0].mxu0
      %v2203 = vadd.f32 %v1505, %v2202
      %v2204 = vpop.f32.mrb[0].mxu0
      %v2205 = vadd.f32 %v1509, %v2204
      %v2206 = vpop.f32.mrb[0].mxu0
      %v2207 = vadd.f32 %v1505, %v2206
      %v2208 = vpop.f32.mrb[0].mxu0
      %v2209 = vadd.f32 %v1509, %v2208
      %2210 = vmatprep.mubr.bf16.mxu0 %v1319
      %2211 = vmatmul.mubr.bf16.gmra.mrb[0].mxu0 %v1318
      %v2212 = vpop.f32.mrb[0].mxu0
      %v2213 = vadd.f32 %v1505, %v2212
      %v2214 = vpop.f32.mrb[0].mxu0
      %v2215 = vadd.f32 %v1509, %v2214
      %v2216 = vpop.f32.mrb[0].mxu0
      %v2217 = vadd.f32 %v1505, %v2216
      %v2218 = vpop.f32.mrb[0].mxu0
      %v2219 = vadd.f32 %v1509, %v2218
      %2220 = vmatprep.mubr.bf16.mxu0 %v1323
      %2221 = vmatmul.mubr.bf16.gmra.mrb[0].mxu0 %v1322
      %v2222 = vpop.f32.mrb[0].mxu0
      %v2223 = vadd.f32 %v1505, %v2222
      %v2224 = vpop.f32.mrb[0].mxu0
      %v2225 = vadd.f32 %v1509, %v2224
      %v2226 = vpop.f32.mrb[0].mxu0
      %v2227 = vadd.f32 %v1505, %v2226
      %v2228 = vpop.f32.mrb[0].mxu0
      %v2229 = vadd.f32 %v1509, %v2228
      %2230 = vmatprep.mubr.bf16.mxu0 %v1327
      %2231 = vmatmul.mubr.bf16.gmra.mrb[0].mxu0 %v1326
      %v2232 = vpop.f32.mrb[0].mxu0
      %v2233 = vadd.f32 %v1505, %v2232
      %v2234 = vpop.f32.mrb[0].mxu0
      %v2235 = vadd.f32 %v1509, %v2234
      %v2236 = vpop.f32.mrb[0].mxu0
      %v2237 = vadd.f32 %v1505, %v2236
      %v2238 = vpop.f32.mrb[0].mxu0
      %v2239 = vadd.f32 %v1509, %v2238
      %2240 = vmatprep.mubr.bf16.mxu0 %v1331
      %2241 = vmatmul.mubr.bf16.gmra.mrb[0].mxu0 %v1330
      %v2242 = vpop.f32.mrb[0].mxu0
      %v2243 = vadd.f32 %v1505, %v2242
      %v2244 = vpop.f32.mrb[0].mxu0
      %v2245 = vadd.f32 %v1509, %v2244
      %v2246 = vpop.f32.mrb[0].mxu0
      %v2247 = vadd.f32 %v1505, %v2246
      %v2248 = vpop.f32.mrb[0].mxu0
      %v2249 = vadd.f32 %v1509, %v2248
      %2250 = vmatprep.mubr.bf16.mxu0 %v1335
      %2251 = vmatmul.mubr.bf16.gmra.mrb[0].mxu0 %v1334
      %v2252 = vpop.f32.mrb[0].mxu0
      %v2253 = vadd.f32 %v1505, %v2252
      %v2254 = vpop.f32.mrb[0].mxu0
      %v2255 = vadd.f32 %v1509, %v2254
      %v2256 = vpop.f32.mrb[0].mxu0
      %v2257 = vadd.f32 %v1505, %v2256
      %v2258 = vpop.f32.mrb[0].mxu0
      %v2259 = vadd.f32 %v1509, %v2258
      %2260 = vmatprep.mubr.bf16.mxu0 %v1339
      %2261 = vmatmul.mubr.bf16.gmra.mrb[0].mxu0 %v1338
      %v2262 = vpop.f32.mrb[0].mxu0
      %v2263 = vadd.f32 %v1505, %v2262
      %v2264 = vpop.f32.mrb[0].mxu0
      %v2265 = vadd.f32 %v1509, %v2264
      %v2266 = vpop.f32.mrb[0].mxu0
      %v2267 = vadd.f32 %v1505, %v2266
      %v2268 = vpop.f32.mrb[0].mxu0
      %v2269 = vadd.f32 %v1509, %v2268
      %2270 = vmatprep.mubr.bf16.mxu0 %v1343
      %2271 = vmatmul.mubr.bf16.gmra.mrb[0].mxu0 %v1342
      %v2272 = vpop.f32.mrb[0].mxu0
      %v2273 = vadd.f32 %v1505, %v2272
      %v2274 = vpop.f32.mrb[0].mxu0
      %v2275 = vadd.f32 %v1509, %v2274
      %v2276 = vpop.f32.mrb[0].mxu0
      %v2277 = vadd.f32 %v1505, %v2276
      %v2278 = vpop.f32.mrb[0].mxu0
      %v2279 = vadd.f32 %v1509, %v2278
      %2280 = vmatprep.mubr.bf16.mxu0 %v1347
      %2281 = vmatmul.mubr.bf16.gmra.mrb[0].mxu0 %v1346
      %v2282 = vpop.f32.mrb[0].mxu0
      %v2283 = vadd.f32 %v1505, %v2282
      %v2284 = vpop.f32.mrb[0].mxu0
      %v2285 = vadd.f32 %v1509, %v2284
      %v2286 = vpop.f32.mrb[0].mxu0
      %v2287 = vadd.f32 %v1505, %v2286
      %v2288 = vpop.f32.mrb[0].mxu0
      %v2289 = vadd.f32 %v1509, %v2288
      %2290 = vmatprep.mubr.bf16.mxu0 %v1351
      %2291 = vmatmul.mubr.bf16.gmra.mrb[0].mxu0 %v1350
      %v2292 = vpop.f32.mrb[0].mxu0
      %v2293 = vadd.f32 %v1505, %v2292
      %v2294 = vpop.f32.mrb[0].mxu0
      %v2295 = vadd.f32 %v1509, %v2294
      %v2296 = vpop.f32.mrb[0].mxu0
      %v2297 = vadd.f32 %v1505, %v2296
      %v2298 = vpop.f32.mrb[0].mxu0
      %v2299 = vadd.f32 %v1509, %v2298
      %2300 = vmatprep.mubr.bf16.mxu0 %v1355
      %2301 = vmatmul.mubr.bf16.gmra.mrb[0].mxu0 %v1354
      %v2302 = vpop.f32.mrb[0].mxu0
      %v2303 = vadd.f32 %v1505, %v2302
      %v2304 = vpop.f32.mrb[0].mxu0
      %v2305 = vadd.f32 %v1509, %v2304
      %v2306 = vpop.f32.mrb[0].mxu0
      %v2307 = vadd.f32 %v1505, %v2306
      %v2308 = vpop.f32.mrb[0].mxu0
      %v2309 = vadd.f32 %v1509, %v2308
      %2310 = vmatprep.mubr.bf16.mxu0 %v1359
      %2311 = vmatmul.mubr.bf16.gmra.mrb[0].mxu0 %v1358
      %v2312 = vpop.f32.mrb[0].mxu0
      %v2313 = vadd.f32 %v1505, %v2312
      %v2314 = vpop.f32.mrb[0].mxu0
      %v2315 = vadd.f32 %v1509, %v2314
      %v2316 = vpop.f32.mrb[0].mxu0
      %v2317 = vadd.f32 %v1505, %v2316
      %v2318 = vpop.f32.mrb[0].mxu0
      %v2319 = vadd.f32 %v1509, %v2318
      %2320 = vmatprep.mubr.bf16.mxu0 %v1363
      %2321 = vmatmul.mubr.bf16.gmra.mrb[0].mxu0 %v1362
      %v2322 = vpop.f32.mrb[0].mxu0
      %v2323 = vadd.f32 %v1505, %v2322
      %v2324 = vpop.f32.mrb[0].mxu0
      %v2325 = vadd.f32 %v1509, %v2324
      %v2326 = vpop.f32.mrb[0].mxu0
      %v2327 = vadd.f32 %v1505, %v2326
      %v2328 = vpop.f32.mrb[0].mxu0
      %v2329 = vadd.f32 %v1509, %v2328
      %2330 = vmatprep.mubr.bf16.mxu0 %v1367
      %2331 = vmatmul.mubr.bf16.gmra.mrb[0].mxu0 %v1366
      %v2332 = vpop.f32.mrb[0].mxu0
      %v2333 = vadd.f32 %v1505, %v2332
      %v2334 = vpop.f32.mrb[0].mxu0
      %v2335 = vadd.f32 %v1509, %v2334
      %v2336 = vpop.f32.mrb[0].mxu0
      %v2337 = vadd.f32 %v1505, %v2336
      %v2338 = vpop.f32.mrb[0].mxu0
      %v2339 = vadd.f32 %v1509, %v2338
      %2340 = vmatprep.mubr.bf16.mxu0 %v1371
      %2341 = vmatmul.mubr.bf16.gmra.mrb[0].mxu0 %v1370
      %v2342 = vpop.f32.mrb[0].mxu0
      %v2343 = vadd.f32 %v1505, %v2342
      %v2344 = vpop.f32.mrb[0].mxu0
      %v2345 = vadd.f32 %v1509, %v2344
      %v2346 = vpop.f32.mrb[0].mxu0
      %v2347 = vadd.f32 %v1505, %v2346
      %v2348 = vpop.f32.mrb[0].mxu0
      %v2349 = vadd.f32 %v1509, %v2348
      %2350 = vdwg.mxu0
      %2351 = vmatprep.subr.bf16.mxu0 %v1967
      %2352 = vmatpush1.bf16.msra.mxu0 %v1966
      %2353 = vmatprep.subr.bf16.mxu0 %v1971
      %2354 = vmatpush1.bf16.msra.mxu0 %v1970
      %2355 = vmatprep.subr.bf16.mxu0 %v1975
      %2356 = vmatpush1.bf16.msra.mxu0 %v1974
      %2357 = vmatprep.subr.bf16.mxu0 %v1979
      %2358 = vmatpush1.bf16.msra.mxu0 %v1978
      %2359 = vmatprep.subr.bf16.mxu0 %v1983
      %2360 = vmatpush1.bf16.msra.mxu0 %v1982
      %2361 = vmatprep.subr.bf16.mxu0 %v1987
      %2362 = vmatpush1.bf16.msra.mxu0 %v1986
      %2363 = vmatprep.subr.bf16.mxu0 %v1991
      %2364 = vmatpush1.bf16.msra.mxu0 %v1990
      %2365 = vmatprep.subr.bf16.mxu0 %v1995
      %2366 = vmatpush1.bf16.msra.mxu0 %v1994
      %2367 = vmatprep.subr.bf16.mxu0 %v1999
      %2368 = vmatpush1.bf16.msra.mxu0 %v1998
      %2369 = vmatprep.subr.bf16.mxu0 %v2003
      %2370 = vmatpush1.bf16.msra.mxu0 %v2002
      %2371 = vmatprep.subr.bf16.mxu0 %v2007
      %2372 = vmatpush1.bf16.msra.mxu0 %v2006
      %2373 = vmatprep.subr.bf16.mxu0 %v2011
      %2374 = vmatpush1.bf16.msra.mxu0 %v2010
      %2375 = vmatprep.subr.bf16.mxu0 %v2015
      %2376 = vmatpush1.bf16.msra.mxu0 %v2014
      %2377 = vmatprep.subr.bf16.mxu0 %v2019
      %2378 = vmatpush1.bf16.msra.mxu0 %v2018
      %2379 = vmatprep.subr.bf16.mxu0 %v2023
      %2380 = vmatpush1.bf16.msra.mxu0 %v2022
      %2381 = vmatprep.subr.bf16.mxu0 %v2027
      %2382 = vmatpush1.bf16.msra.mxu0 %v2026
      %2383 = vmatprep.mubr.bf16.mxu0 %v1313
      %2384 = vmatmul.mubr.bf16.gmra.mrb[0].mxu0 %v1312
      %v2385 = vpop.f32.mrb[0].mxu0
      %v2386 = vadd.f32 %v2193, %v2385
      %v2387 = vpop.f32.mrb[0].mxu0
      %v2388 = vadd.f32 %v2195, %v2387
      %v2389 = vpop.f32.mrb[0].mxu0
      %v2390 = vadd.f32 %v2197, %v2389
      %v2391 = vpop.f32.mrb[0].mxu0
      %v2392 = vadd.f32 %v2199, %v2391
      %2393 = vmatprep.mubr.bf16.mxu0 %v1317
      %2394 = vmatmul.mubr.bf16.gmra.mrb[0].mxu0 %v1316
      %v2395 = vpop.f32.mrb[0].mxu0
      %v2396 = vadd.f32 %v2203, %v2395
      %v2397 = vpop.f32.mrb[0].mxu0
      %v2398 = vadd.f32 %v2205, %v2397
      %v2399 = vpop.f32.mrb[0].mxu0
      %v2400 = vadd.f32 %v2207, %v2399
      %v2401 = vpop.f32.mrb[0].mxu0
      %v2402 = vadd.f32 %v2209, %v2401
      %2403 = vmatprep.mubr.bf16.mxu0 %v1321
      %2404 = vmatmul.mubr.bf16.gmra.mrb[0].mxu0 %v1320
      %v2405 = vpop.f32.mrb[0].mxu0
      %v2406 = vadd.f32 %v2213, %v2405
      %v2407 = vpop.f32.mrb[0].mxu0
      %v2408 = vadd.f32 %v2215, %v2407
      %v2409 = vpop.f32.mrb[0].mxu0
      %v2410 = vadd.f32 %v2217, %v2409
      %v2411 = vpop.f32.mrb[0].mxu0
      %v2412 = vadd.f32 %v2219, %v2411
      %2413 = vmatprep.mubr.bf16.mxu0 %v1325
      %2414 = vmatmul.mubr.bf16.gmra.mrb[0].mxu0 %v1324
      %v2415 = vpop.f32.mrb[0].mxu0
      %v2416 = vadd.f32 %v2223, %v2415
      %v2417 = vpop.f32.mrb[0].mxu0
      %v2418 = vadd.f32 %v2225, %v2417
      %v2419 = vpop.f32.mrb[0].mxu0
      %v2420 = vadd.f32 %v2227, %v2419
      %v2421 = vpop.f32.mrb[0].mxu0
      %v2422 = vadd.f32 %v2229, %v2421
      %2423 = vmatprep.mubr.bf16.mxu0 %v1329
      %2424 = vmatmul.mubr.bf16.gmra.mrb[0].mxu0 %v1328
      %v2425 = vpop.f32.mrb[0].mxu0
      %v2426 = vadd.f32 %v2233, %v2425
      %v2427 = vpop.f32.mrb[0].mxu0
      %v2428 = vadd.f32 %v2235, %v2427
      %v2429 = vpop.f32.mrb[0].mxu0
      %v2430 = vadd.f32 %v2237, %v2429
      %v2431 = vpop.f32.mrb[0].mxu0
      %v2432 = vadd.f32 %v2239, %v2431
      %2433 = vmatprep.mubr.bf16.mxu0 %v1333
      %2434 = vmatmul.mubr.bf16.gmra.mrb[0].mxu0 %v1332
      %v2435 = vpop.f32.mrb[0].mxu0
      %v2436 = vadd.f32 %v2243, %v2435
      %v2437 = vpop.f32.mrb[0].mxu0
      %v2438 = vadd.f32 %v2245, %v2437
      %v2439 = vpop.f32.mrb[0].mxu0
      %v2440 = vadd.f32 %v2247, %v2439
      %v2441 = vpop.f32.mrb[0].mxu0
      %v2442 = vadd.f32 %v2249, %v2441
      %2443 = vmatprep.mubr.bf16.mxu0 %v1337
      %2444 = vmatmul.mubr.bf16.gmra.mrb[0].mxu0 %v1336
      %v2445 = vpop.f32.mrb[0].mxu0
      %v2446 = vadd.f32 %v2253, %v2445
      %v2447 = vpop.f32.mrb[0].mxu0
      %v2448 = vadd.f32 %v2255, %v2447
      %v2449 = vpop.f32.mrb[0].mxu0
      %v2450 = vadd.f32 %v2257, %v2449
      %v2451 = vpop.f32.mrb[0].mxu0
      %v2452 = vadd.f32 %v2259, %v2451
      %2453 = vmatprep.mubr.bf16.mxu0 %v1341
      %2454 = vmatmul.mubr.bf16.gmra.mrb[0].mxu0 %v1340
      %v2455 = vpop.f32.mrb[0].mxu0
      %v2456 = vadd.f32 %v2263, %v2455
      %v2457 = vpop.f32.mrb[0].mxu0
      %v2458 = vadd.f32 %v2265, %v2457
      %v2459 = vpop.f32.mrb[0].mxu0
      %v2460 = vadd.f32 %v2267, %v2459
      %v2461 = vpop.f32.mrb[0].mxu0
      %v2462 = vadd.f32 %v2269, %v2461
      %2463 = vmatprep.mubr.bf16.mxu0 %v1345
      %2464 = vmatmul.mubr.bf16.gmra.mrb[0].mxu0 %v1344
      %v2465 = vpop.f32.mrb[0].mxu0
      %v2466 = vadd.f32 %v2273, %v2465
      %v2467 = vpop.f32.mrb[0].mxu0
      %v2468 = vadd.f32 %v2275, %v2467
      %v2469 = vpop.f32.mrb[0].mxu0
      %v2470 = vadd.f32 %v2277, %v2469
      %v2471 = vpop.f32.mrb[0].mxu0
      %v2472 = vadd.f32 %v2279, %v2471
      %2473 = vmatprep.mubr.bf16.mxu0 %v1349
      %2474 = vmatmul.mubr.bf16.gmra.mrb[0].mxu0 %v1348
      %v2475 = vpop.f32.mrb[0].mxu0
      %v2476 = vadd.f32 %v2283, %v2475
      %v2477 = vpop.f32.mrb[0].mxu0
      %v2478 = vadd.f32 %v2285, %v2477
      %v2479 = vpop.f32.mrb[0].mxu0
      %v2480 = vadd.f32 %v2287, %v2479
      %v2481 = vpop.f32.mrb[0].mxu0
      %v2482 = vadd.f32 %v2289, %v2481
      %2483 = vmatprep.mubr.bf16.mxu0 %v1353
      %2484 = vmatmul.mubr.bf16.gmra.mrb[0].mxu0 %v1352
      %v2485 = vpop.f32.mrb[0].mxu0
      %v2486 = vadd.f32 %v2293, %v2485
      %v2487 = vpop.f32.mrb[0].mxu0
      %v2488 = vadd.f32 %v2295, %v2487
      %v2489 = vpop.f32.mrb[0].mxu0
      %v2490 = vadd.f32 %v2297, %v2489
      %v2491 = vpop.f32.mrb[0].mxu0
      %v2492 = vadd.f32 %v2299, %v2491
      %2493 = vmatprep.mubr.bf16.mxu0 %v1357
      %2494 = vmatmul.mubr.bf16.gmra.mrb[0].mxu0 %v1356
      %v2495 = vpop.f32.mrb[0].mxu0
      %v2496 = vadd.f32 %v2303, %v2495
      %v2497 = vpop.f32.mrb[0].mxu0
      %v2498 = vadd.f32 %v2305, %v2497
      %v2499 = vpop.f32.mrb[0].mxu0
      %v2500 = vadd.f32 %v2307, %v2499
      %v2501 = vpop.f32.mrb[0].mxu0
      %v2502 = vadd.f32 %v2309, %v2501
      %2503 = vmatprep.mubr.bf16.mxu0 %v1361
      %2504 = vmatmul.mubr.bf16.gmra.mrb[0].mxu0 %v1360
      %v2505 = vpop.f32.mrb[0].mxu0
      %v2506 = vadd.f32 %v2313, %v2505
      %v2507 = vpop.f32.mrb[0].mxu0
      %v2508 = vadd.f32 %v2315, %v2507
      %v2509 = vpop.f32.mrb[0].mxu0
      %v2510 = vadd.f32 %v2317, %v2509
      %v2511 = vpop.f32.mrb[0].mxu0
      %v2512 = vadd.f32 %v2319, %v2511
      %2513 = vmatprep.mubr.bf16.mxu0 %v1365
      %2514 = vmatmul.mubr.bf16.gmra.mrb[0].mxu0 %v1364
      %v2515 = vpop.f32.mrb[0].mxu0
      %v2516 = vadd.f32 %v2323, %v2515
      %v2517 = vpop.f32.mrb[0].mxu0
      %v2518 = vadd.f32 %v2325, %v2517
      %v2519 = vpop.f32.mrb[0].mxu0
      %v2520 = vadd.f32 %v2327, %v2519
      %v2521 = vpop.f32.mrb[0].mxu0
      %v2522 = vadd.f32 %v2329, %v2521
      %2523 = vmatprep.mubr.bf16.mxu0 %v1369
      %2524 = vmatmul.mubr.bf16.gmra.mrb[0].mxu0 %v1368
      %v2525 = vpop.f32.mrb[0].mxu0
      %v2526 = vadd.f32 %v2333, %v2525
      %v2527 = vpop.f32.mrb[0].mxu0
      %v2528 = vadd.f32 %v2335, %v2527
      %v2529 = vpop.f32.mrb[0].mxu0
      %v2530 = vadd.f32 %v2337, %v2529
      %v2531 = vpop.f32.mrb[0].mxu0
      %v2532 = vadd.f32 %v2339, %v2531
      %2533 = vmatprep.mubr.bf16.mxu0 %v1373
      %2534 = vmatmul.mubr.bf16.gmra.mrb[0].mxu0 %v1372
      %v2535 = vpop.f32.mrb[0].mxu0
      %v2536 = vadd.f32 %v2343, %v2535
      %v2537 = vpop.f32.mrb[0].mxu0
      %v2538 = vadd.f32 %v2345, %v2537
      %v2539 = vpop.f32.mrb[0].mxu0
      %v2540 = vadd.f32 %v2347, %v2539
      %v2541 = vpop.f32.mrb[0].mxu0
      %v2542 = vadd.f32 %v2349, %v2541
      %2543 = vdwg.mxu0
      %2544 = vmatprep.subr.bf16.mxu0 %v1905
      %2545 = vmatpush1.bf16.msra.mxu0 %v1904
      %2546 = vmatprep.subr.bf16.mxu0 %v1909
      %2547 = vmatpush1.bf16.msra.mxu0 %v1908
      %2548 = vmatprep.subr.bf16.mxu0 %v1913
      %2549 = vmatpush1.bf16.msra.mxu0 %v1912
      %2550 = vmatprep.subr.bf16.mxu0 %v1917
      %2551 = vmatpush1.bf16.msra.mxu0 %v1916
      %2552 = vmatprep.subr.bf16.mxu0 %v1921
      %2553 = vmatpush1.bf16.msra.mxu0 %v1920
      %2554 = vmatprep.subr.bf16.mxu0 %v1925
      %2555 = vmatpush1.bf16.msra.mxu0 %v1924
      %2556 = vmatprep.subr.bf16.mxu0 %v1929
      %2557 = vmatpush1.bf16.msra.mxu0 %v1928
      %2558 = vmatprep.subr.bf16.mxu0 %v1933
      %2559 = vmatpush1.bf16.msra.mxu0 %v1932
      %2560 = vmatprep.subr.bf16.mxu0 %v1937
      %2561 = vmatpush1.bf16.msra.mxu0 %v1936
      %2562 = vmatprep.subr.bf16.mxu0 %v1941
      %2563 = vmatpush1.bf16.msra.mxu0 %v1940
      %2564 = vmatprep.subr.bf16.mxu0 %v1945
      %2565 = vmatpush1.bf16.msra.mxu0 %v1944
      %2566 = vmatprep.subr.bf16.mxu0 %v1949
      %2567 = vmatpush1.bf16.msra.mxu0 %v1948
      %2568 = vmatprep.subr.bf16.mxu0 %v1953
      %2569 = vmatpush1.bf16.msra.mxu0 %v1952
      %2570 = vmatprep.subr.bf16.mxu0 %v1957
      %2571 = vmatpush1.bf16.msra.mxu0 %v1956
      %2572 = vmatprep.subr.bf16.mxu0 %v1961
      %2573 = vmatpush1.bf16.msra.mxu0 %v1960
      %2574 = vmatprep.subr.bf16.mxu0 %v1965
      %2575 = vmatpush1.bf16.msra.mxu0 %v1964
      %2576 = vmatprep.mubr.bf16.mxu0 %v1311
      %2577 = vmatmul.mubr.bf16.gmra.mrb[0].mxu0 %v1310
      %v2578 = vpop.f32.mrb[0].mxu0
      %v2579 = vadd.f32 %v1513, %v2578
      %v2580 = vpop.f32.mrb[0].mxu0
      %v2581 = vadd.f32 %v1517, %v2580
      %v2582 = vpop.f32.mrb[0].mxu0
      %v2583 = vadd.f32 %v1513, %v2582
      %v2584 = vpop.f32.mrb[0].mxu0
      %v2585 = vadd.f32 %v1517, %v2584
      %2586 = vmatprep.mubr.bf16.mxu0 %v1315
      %2587 = vmatmul.mubr.bf16.gmra.mrb[0].mxu0 %v1314
      %v2588 = vpop.f32.mrb[0].mxu0
      %v2589 = vadd.f32 %v1513, %v2588
      %v2590 = vpop.f32.mrb[0].mxu0
      %v2591 = vadd.f32 %v1517, %v2590
      %v2592 = vpop.f32.mrb[0].mxu0
      %v2593 = vadd.f32 %v1513, %v2592
      %v2594 = vpop.f32.mrb[0].mxu0
      %v2595 = vadd.f32 %v1517, %v2594
      %2596 = vmatprep.mubr.bf16.mxu0 %v1319
      %2597 = vmatmul.mubr.bf16.gmra.mrb[0].mxu0 %v1318
      %v2598 = vpop.f32.mrb[0].mxu0
      %v2599 = vadd.f32 %v1513, %v2598
      %v2600 = vpop.f32.mrb[0].mxu0
      %v2601 = vadd.f32 %v1517, %v2600
      %v2602 = vpop.f32.mrb[0].mxu0
      %v2603 = vadd.f32 %v1513, %v2602
      %v2604 = vpop.f32.mrb[0].mxu0
      %v2605 = vadd.f32 %v1517, %v2604
      %2606 = vmatprep.mubr.bf16.mxu0 %v1323
      %2607 = vmatmul.mubr.bf16.gmra.mrb[0].mxu0 %v1322
      %v2608 = vpop.f32.mrb[0].mxu0
      %v2609 = vadd.f32 %v1513, %v2608
      %v2610 = vpop.f32.mrb[0].mxu0
      %v2611 = vadd.f32 %v1517, %v2610
      %v2612 = vpop.f32.mrb[0].mxu0
      %v2613 = vadd.f32 %v1513, %v2612
      %v2614 = vpop.f32.mrb[0].mxu0
      %v2615 = vadd.f32 %v1517, %v2614
      %2616 = vmatprep.mubr.bf16.mxu0 %v1327
      %2617 = vmatmul.mubr.bf16.gmra.mrb[0].mxu0 %v1326
      %v2618 = vpop.f32.mrb[0].mxu0
      %v2619 = vadd.f32 %v1513, %v2618
      %v2620 = vpop.f32.mrb[0].mxu0
      %v2621 = vadd.f32 %v1517, %v2620
      %v2622 = vpop.f32.mrb[0].mxu0
      %v2623 = vadd.f32 %v1513, %v2622
      %v2624 = vpop.f32.mrb[0].mxu0
      %v2625 = vadd.f32 %v1517, %v2624
      %2626 = vmatprep.mubr.bf16.mxu0 %v1331
      %2627 = vmatmul.mubr.bf16.gmra.mrb[0].mxu0 %v1330
      %v2628 = vpop.f32.mrb[0].mxu0
      %v2629 = vadd.f32 %v1513, %v2628
      %v2630 = vpop.f32.mrb[0].mxu0
      %v2631 = vadd.f32 %v1517, %v2630
      %v2632 = vpop.f32.mrb[0].mxu0
      %v2633 = vadd.f32 %v1513, %v2632
      %v2634 = vpop.f32.mrb[0].mxu0
      %v2635 = vadd.f32 %v1517, %v2634
      %2636 = vmatprep.mubr.bf16.mxu0 %v1335
      %2637 = vmatmul.mubr.bf16.gmra.mrb[0].mxu0 %v1334
      %v2638 = vpop.f32.mrb[0].mxu0
      %v2639 = vadd.f32 %v1513, %v2638
      %v2640 = vpop.f32.mrb[0].mxu0
      %v2641 = vadd.f32 %v1517, %v2640
      %v2642 = vpop.f32.mrb[0].mxu0
      %v2643 = vadd.f32 %v1513, %v2642
      %v2644 = vpop.f32.mrb[0].mxu0
      %v2645 = vadd.f32 %v1517, %v2644
      %2646 = vmatprep.mubr.bf16.mxu0 %v1339
      %2647 = vmatmul.mubr.bf16.gmra.mrb[0].mxu0 %v1338
      %v2648 = vpop.f32.mrb[0].mxu0
      %v2649 = vadd.f32 %v1513, %v2648
      %v2650 = vpop.f32.mrb[0].mxu0
      %v2651 = vadd.f32 %v1517, %v2650
      %v2652 = vpop.f32.mrb[0].mxu0
      %v2653 = vadd.f32 %v1513, %v2652
      %v2654 = vpop.f32.mrb[0].mxu0
      %v2655 = vadd.f32 %v1517, %v2654
      %2656 = vmatprep.mubr.bf16.mxu0 %v1343
      %2657 = vmatmul.mubr.bf16.gmra.mrb[0].mxu0 %v1342
      %v2658 = vpop.f32.mrb[0].mxu0
      %v2659 = vadd.f32 %v1513, %v2658
      %v2660 = vpop.f32.mrb[0].mxu0
      %v2661 = vadd.f32 %v1517, %v2660
      %v2662 = vpop.f32.mrb[0].mxu0
      %v2663 = vadd.f32 %v1513, %v2662
      %v2664 = vpop.f32.mrb[0].mxu0
      %v2665 = vadd.f32 %v1517, %v2664
      %2666 = vmatprep.mubr.bf16.mxu0 %v1347
      %2667 = vmatmul.mubr.bf16.gmra.mrb[0].mxu0 %v1346
      %v2668 = vpop.f32.mrb[0].mxu0
      %v2669 = vadd.f32 %v1513, %v2668
      %v2670 = vpop.f32.mrb[0].mxu0
      %v2671 = vadd.f32 %v1517, %v2670
      %v2672 = vpop.f32.mrb[0].mxu0
      %v2673 = vadd.f32 %v1513, %v2672
      %v2674 = vpop.f32.mrb[0].mxu0
      %v2675 = vadd.f32 %v1517, %v2674
      %2676 = vmatprep.mubr.bf16.mxu0 %v1351
      %2677 = vmatmul.mubr.bf16.gmra.mrb[0].mxu0 %v1350
      %v2678 = vpop.f32.mrb[0].mxu0
      %v2679 = vadd.f32 %v1513, %v2678
      %v2680 = vpop.f32.mrb[0].mxu0
      %v2681 = vadd.f32 %v1517, %v2680
      %v2682 = vpop.f32.mrb[0].mxu0
      %v2683 = vadd.f32 %v1513, %v2682
      %v2684 = vpop.f32.mrb[0].mxu0
      %v2685 = vadd.f32 %v1517, %v2684
      %2686 = vmatprep.mubr.bf16.mxu0 %v1355
      %2687 = vmatmul.mubr.bf16.gmra.mrb[0].mxu0 %v1354
      %v2688 = vpop.f32.mrb[0].mxu0
      %v2689 = vadd.f32 %v1513, %v2688
      %v2690 = vpop.f32.mrb[0].mxu0
      %v2691 = vadd.f32 %v1517, %v2690
      %v2692 = vpop.f32.mrb[0].mxu0
      %v2693 = vadd.f32 %v1513, %v2692
      %v2694 = vpop.f32.mrb[0].mxu0
      %v2695 = vadd.f32 %v1517, %v2694
      %2696 = vmatprep.mubr.bf16.mxu0 %v1359
      %2697 = vmatmul.mubr.bf16.gmra.mrb[0].mxu0 %v1358
      %v2698 = vpop.f32.mrb[0].mxu0
      %v2699 = vadd.f32 %v1513, %v2698
      %v2700 = vpop.f32.mrb[0].mxu0
      %v2701 = vadd.f32 %v1517, %v2700
      %v2702 = vpop.f32.mrb[0].mxu0
      %v2703 = vadd.f32 %v1513, %v2702
      %v2704 = vpop.f32.mrb[0].mxu0
      %v2705 = vadd.f32 %v1517, %v2704
      %2706 = vmatprep.mubr.bf16.mxu0 %v1363
      %2707 = vmatmul.mubr.bf16.gmra.mrb[0].mxu0 %v1362
      %v2708 = vpop.f32.mrb[0].mxu0
      %v2709 = vadd.f32 %v1513, %v2708
      %v2710 = vpop.f32.mrb[0].mxu0
      %v2711 = vadd.f32 %v1517, %v2710
      %v2712 = vpop.f32.mrb[0].mxu0
      %v2713 = vadd.f32 %v1513, %v2712
      %v2714 = vpop.f32.mrb[0].mxu0
      %v2715 = vadd.f32 %v1517, %v2714
      %2716 = vmatprep.mubr.bf16.mxu0 %v1367
      %2717 = vmatmul.mubr.bf16.gmra.mrb[0].mxu0 %v1366
      %v2718 = vpop.f32.mrb[0].mxu0
      %v2719 = vadd.f32 %v1513, %v2718
      %v2720 = vpop.f32.mrb[0].mxu0
      %v2721 = vadd.f32 %v1517, %v2720
      %v2722 = vpop.f32.mrb[0].mxu0
      %v2723 = vadd.f32 %v1513, %v2722
      %v2724 = vpop.f32.mrb[0].mxu0
      %v2725 = vadd.f32 %v1517, %v2724
      %2726 = vmatprep.mubr.bf16.mxu0 %v1371
      %2727 = vmatmul.mubr.bf16.gmra.mrb[0].mxu0 %v1370
      %v2728 = vpop.f32.mrb[0].mxu0
      %v2729 = vadd.f32 %v1513, %v2728
      %v2730 = vpop.f32.mrb[0].mxu0
      %v2731 = vadd.f32 %v1517, %v2730
      %v2732 = vpop.f32.mrb[0].mxu0
      %v2733 = vadd.f32 %v1513, %v2732
      %v2734 = vpop.f32.mrb[0].mxu0
      %v2735 = vadd.f32 %v1517, %v2734
      %2736 = vdwg.mxu0
      %2737 = vmatprep.subr.bf16.mxu0 %v1969
      %2738 = vmatpush1.bf16.msra.mxu0 %v1968
      %2739 = vmatprep.subr.bf16.mxu0 %v1973
      %2740 = vmatpush1.bf16.msra.mxu0 %v1972
      %2741 = vmatprep.subr.bf16.mxu0 %v1977
      %2742 = vmatpush1.bf16.msra.mxu0 %v1976
      %2743 = vmatprep.subr.bf16.mxu0 %v1981
      %2744 = vmatpush1.bf16.msra.mxu0 %v1980
      %2745 = vmatprep.subr.bf16.mxu0 %v1985
      %2746 = vmatpush1.bf16.msra.mxu0 %v1984
      %2747 = vmatprep.subr.bf16.mxu0 %v1989
      %2748 = vmatpush1.bf16.msra.mxu0 %v1988
      %2749 = vmatprep.subr.bf16.mxu0 %v1993
      %2750 = vmatpush1.bf16.msra.mxu0 %v1992
      %2751 = vmatprep.subr.bf16.mxu0 %v1997
      %2752 = vmatpush1.bf16.msra.mxu0 %v1996
      %2753 = vmatprep.subr.bf16.mxu0 %v2001
      %2754 = vmatpush1.bf16.msra.mxu0 %v2000
      %2755 = vmatprep.subr.bf16.mxu0 %v2005
      %2756 = vmatpush1.bf16.msra.mxu0 %v2004
      %2757 = vmatprep.subr.bf16.mxu0 %v2009
      %2758 = vmatpush1.bf16.msra.mxu0 %v2008
      %2759 = vmatprep.subr.bf16.mxu0 %v2013
      %2760 = vmatpush1.bf16.msra.mxu0 %v2012
      %2761 = vmatprep.subr.bf16.mxu0 %v2017
      %2762 = vmatpush1.bf16.msra.mxu0 %v2016
      %2763 = vmatprep.subr.bf16.mxu0 %v2021
      %2764 = vmatpush1.bf16.msra.mxu0 %v2020
      %2765 = vmatprep.subr.bf16.mxu0 %v2025
      %2766 = vmatpush1.bf16.msra.mxu0 %v2024
      %2767 = vmatprep.subr.bf16.mxu0 %v2029
      %2768 = vmatpush1.bf16.msra.mxu0 %v2028
      %2769 = vmatprep.mubr.bf16.mxu0 %v1313
      %2770 = vmatmul.mubr.bf16.gmra.mrb[0].mxu0 %v1312
      %v2771 = vpop.f32.mrb[0].mxu0
      %v2772 = vadd.f32 %v2579, %v2771
      %v2773 = vpop.f32.mrb[0].mxu0
      %v2774 = vadd.f32 %v2581, %v2773
      %v2775 = vpop.f32.mrb[0].mxu0
      %v2776 = vadd.f32 %v2583, %v2775
      %v2777 = vpop.f32.mrb[0].mxu0
      %v2778 = vadd.f32 %v2585, %v2777
      %2779 = vmatprep.mubr.bf16.mxu0 %v1317
      %2780 = vmatmul.mubr.bf16.gmra.mrb[0].mxu0 %v1316
      %v2781 = vpop.f32.mrb[0].mxu0
      %v2782 = vadd.f32 %v2589, %v2781
      %v2783 = vpop.f32.mrb[0].mxu0
      %v2784 = vadd.f32 %v2591, %v2783
      %v2785 = vpop.f32.mrb[0].mxu0
      %v2786 = vadd.f32 %v2593, %v2785
      %v2787 = vpop.f32.mrb[0].mxu0
      %v2788 = vadd.f32 %v2595, %v2787
      %2789 = vmatprep.mubr.bf16.mxu0 %v1321
      %2790 = vmatmul.mubr.bf16.gmra.mrb[0].mxu0 %v1320
      %v2791 = vpop.f32.mrb[0].mxu0
      %v2792 = vadd.f32 %v2599, %v2791
      %v2793 = vpop.f32.mrb[0].mxu0
      %v2794 = vadd.f32 %v2601, %v2793
      %v2795 = vpop.f32.mrb[0].mxu0
      %v2796 = vadd.f32 %v2603, %v2795
      %v2797 = vpop.f32.mrb[0].mxu0
      %v2798 = vadd.f32 %v2605, %v2797
      %2799 = vmatprep.mubr.bf16.mxu0 %v1325
      %2800 = vmatmul.mubr.bf16.gmra.mrb[0].mxu0 %v1324
      %v2801 = vpop.f32.mrb[0].mxu0
      %v2802 = vadd.f32 %v2609, %v2801
      %v2803 = vpop.f32.mrb[0].mxu0
      %v2804 = vadd.f32 %v2611, %v2803
      %v2805 = vpop.f32.mrb[0].mxu0
      %v2806 = vadd.f32 %v2613, %v2805
      %v2807 = vpop.f32.mrb[0].mxu0
      %v2808 = vadd.f32 %v2615, %v2807
      %2809 = vmatprep.mubr.bf16.mxu0 %v1329
      %2810 = vmatmul.mubr.bf16.gmra.mrb[0].mxu0 %v1328
      %v2811 = vpop.f32.mrb[0].mxu0
      %v2812 = vadd.f32 %v2619, %v2811
      %v2813 = vpop.f32.mrb[0].mxu0
      %v2814 = vadd.f32 %v2621, %v2813
      %v2815 = vpop.f32.mrb[0].mxu0
      %v2816 = vadd.f32 %v2623, %v2815
      %v2817 = vpop.f32.mrb[0].mxu0
      %v2818 = vadd.f32 %v2625, %v2817
      %2819 = vmatprep.mubr.bf16.mxu0 %v1333
      %2820 = vmatmul.mubr.bf16.gmra.mrb[0].mxu0 %v1332
      %v2821 = vpop.f32.mrb[0].mxu0
      %v2822 = vadd.f32 %v2629, %v2821
      %v2823 = vpop.f32.mrb[0].mxu0
      %v2824 = vadd.f32 %v2631, %v2823
      %v2825 = vpop.f32.mrb[0].mxu0
      %v2826 = vadd.f32 %v2633, %v2825
      %v2827 = vpop.f32.mrb[0].mxu0
      %v2828 = vadd.f32 %v2635, %v2827
      %2829 = vmatprep.mubr.bf16.mxu0 %v1337
      %2830 = vmatmul.mubr.bf16.gmra.mrb[0].mxu0 %v1336
      %v2831 = vpop.f32.mrb[0].mxu0
      %v2832 = vadd.f32 %v2639, %v2831
      %v2833 = vpop.f32.mrb[0].mxu0
      %v2834 = vadd.f32 %v2641, %v2833
      %v2835 = vpop.f32.mrb[0].mxu0
      %v2836 = vadd.f32 %v2643, %v2835
      %v2837 = vpop.f32.mrb[0].mxu0
      %v2838 = vadd.f32 %v2645, %v2837
      %2839 = vmatprep.mubr.bf16.mxu0 %v1341
      %2840 = vmatmul.mubr.bf16.gmra.mrb[0].mxu0 %v1340
      %v2841 = vpop.f32.mrb[0].mxu0
      %v2842 = vadd.f32 %v2649, %v2841
      %v2843 = vpop.f32.mrb[0].mxu0
      %v2844 = vadd.f32 %v2651, %v2843
      %v2845 = vpop.f32.mrb[0].mxu0
      %v2846 = vadd.f32 %v2653, %v2845
      %v2847 = vpop.f32.mrb[0].mxu0
      %v2848 = vadd.f32 %v2655, %v2847
      %2849 = vmatprep.mubr.bf16.mxu0 %v1345
      %2850 = vmatmul.mubr.bf16.gmra.mrb[0].mxu0 %v1344
      %v2851 = vpop.f32.mrb[0].mxu0
      %v2852 = vadd.f32 %v2659, %v2851
      %v2853 = vpop.f32.mrb[0].mxu0
      %v2854 = vadd.f32 %v2661, %v2853
      %v2855 = vpop.f32.mrb[0].mxu0
      %v2856 = vadd.f32 %v2663, %v2855
      %v2857 = vpop.f32.mrb[0].mxu0
      %v2858 = vadd.f32 %v2665, %v2857
      %2859 = vmatprep.mubr.bf16.mxu0 %v1349
      %2860 = vmatmul.mubr.bf16.gmra.mrb[0].mxu0 %v1348
      %v2861 = vpop.f32.mrb[0].mxu0
      %v2862 = vadd.f32 %v2669, %v2861
      %v2863 = vpop.f32.mrb[0].mxu0
      %v2864 = vadd.f32 %v2671, %v2863
      %v2865 = vpop.f32.mrb[0].mxu0
      %v2866 = vadd.f32 %v2673, %v2865
      %v2867 = vpop.f32.mrb[0].mxu0
      %v2868 = vadd.f32 %v2675, %v2867
      %2869 = vmatprep.mubr.bf16.mxu0 %v1353
      %2870 = vmatmul.mubr.bf16.gmra.mrb[0].mxu0 %v1352
      %v2871 = vpop.f32.mrb[0].mxu0
      %v2872 = vadd.f32 %v2679, %v2871
      %v2873 = vpop.f32.mrb[0].mxu0
      %v2874 = vadd.f32 %v2681, %v2873
      %v2875 = vpop.f32.mrb[0].mxu0
      %v2876 = vadd.f32 %v2683, %v2875
      %v2877 = vpop.f32.mrb[0].mxu0
      %v2878 = vadd.f32 %v2685, %v2877
      %2879 = vmatprep.mubr.bf16.mxu0 %v1357
      %2880 = vmatmul.mubr.bf16.gmra.mrb[0].mxu0 %v1356
      %v2881 = vpop.f32.mrb[0].mxu0
      %v2882 = vadd.f32 %v2689, %v2881
      %v2883 = vpop.f32.mrb[0].mxu0
      %v2884 = vadd.f32 %v2691, %v2883
      %v2885 = vpop.f32.mrb[0].mxu0
      %v2886 = vadd.f32 %v2693, %v2885
      %v2887 = vpop.f32.mrb[0].mxu0
      %v2888 = vadd.f32 %v2695, %v2887
      %2889 = vmatprep.mubr.bf16.mxu0 %v1361
      %2890 = vmatmul.mubr.bf16.gmra.mrb[0].mxu0 %v1360
      %v2891 = vpop.f32.mrb[0].mxu0
      %v2892 = vadd.f32 %v2699, %v2891
      %v2893 = vpop.f32.mrb[0].mxu0
      %v2894 = vadd.f32 %v2701, %v2893
      %v2895 = vpop.f32.mrb[0].mxu0
      %v2896 = vadd.f32 %v2703, %v2895
      %v2897 = vpop.f32.mrb[0].mxu0
      %v2898 = vadd.f32 %v2705, %v2897
      %2899 = vmatprep.mubr.bf16.mxu0 %v1365
      %2900 = vmatmul.mubr.bf16.gmra.mrb[0].mxu0 %v1364
      %v2901 = vpop.f32.mrb[0].mxu0
      %v2902 = vadd.f32 %v2709, %v2901
      %v2903 = vpop.f32.mrb[0].mxu0
      %v2904 = vadd.f32 %v2711, %v2903
      %v2905 = vpop.f32.mrb[0].mxu0
      %v2906 = vadd.f32 %v2713, %v2905
      %v2907 = vpop.f32.mrb[0].mxu0
      %v2908 = vadd.f32 %v2715, %v2907
      %2909 = vmatprep.mubr.bf16.mxu0 %v1369
      %2910 = vmatmul.mubr.bf16.gmra.mrb[0].mxu0 %v1368
      %v2911 = vpop.f32.mrb[0].mxu0
      %v2912 = vadd.f32 %v2719, %v2911
      %v2913 = vpop.f32.mrb[0].mxu0
      %v2914 = vadd.f32 %v2721, %v2913
      %v2915 = vpop.f32.mrb[0].mxu0
      %v2916 = vadd.f32 %v2723, %v2915
      %v2917 = vpop.f32.mrb[0].mxu0
      %v2918 = vadd.f32 %v2725, %v2917
      %2919 = vmatprep.mubr.bf16.mxu0 %v1373
      %2920 = vmatmul.mubr.bf16.gmra.mrb[0].mxu0 %v1372
      %v2921 = vpop.f32.mrb[0].mxu0
      %v2922 = vadd.f32 %v2729, %v2921
      %v2923 = vpop.f32.mrb[0].mxu0
      %v2924 = vadd.f32 %v2731, %v2923
      %v2925 = vpop.f32.mrb[0].mxu0
      %v2926 = vadd.f32 %v2733, %v2925
      %v2927 = vpop.f32.mrb[0].mxu0
      %v2928 = vadd.f32 %v2735, %v2927
      %2929 = vdwg.mxu0
      %v2930 = vmax.f32 %v2386, 0.0
      %v2931 = vmax.f32 %v2388, 0.0
      %v2932 = vmax.f32 %v2772, 0.0
      %v2933 = vmax.f32 %v2774, 0.0
      %v2934 = vmax.f32 %v2390, 0.0
      %v2935 = vmax.f32 %v2392, 0.0
      %v2936 = vmax.f32 %v2776, 0.0
      %v2937 = vmax.f32 %v2778, 0.0
      %v2938 = vmax.f32 %v2396, 0.0
      %v2939 = vmax.f32 %v2398, 0.0
      %v2940 = vmax.f32 %v2782, 0.0
      %v2941 = vmax.f32 %v2784, 0.0
      %v2942 = vmax.f32 %v2400, 0.0
      %v2943 = vmax.f32 %v2402, 0.0
      %v2944 = vmax.f32 %v2786, 0.0
      %v2945 = vmax.f32 %v2788, 0.0
      %v2946 = vmax.f32 %v2406, 0.0
      %v2947 = vmax.f32 %v2408, 0.0
      %v2948 = vmax.f32 %v2792, 0.0
      %v2949 = vmax.f32 %v2794, 0.0
      %v2950 = vmax.f32 %v2410, 0.0
      %v2951 = vmax.f32 %v2412, 0.0
      %v2952 = vmax.f32 %v2796, 0.0
      %v2953 = vmax.f32 %v2798, 0.0
      %v2954 = vmax.f32 %v2416, 0.0
      %v2955 = vmax.f32 %v2418, 0.0
      %v2956 = vmax.f32 %v2802, 0.0
      %v2957 = vmax.f32 %v2804, 0.0
      %v2958 = vmax.f32 %v2420, 0.0
      %v2959 = vmax.f32 %v2422, 0.0
      %v2960 = vmax.f32 %v2806, 0.0
      %v2961 = vmax.f32 %v2808, 0.0
      %v2962 = vmax.f32 %v2426, 0.0
      %v2963 = vmax.f32 %v2428, 0.0
      %v2964 = vmax.f32 %v2812, 0.0
      %v2965 = vmax.f32 %v2814, 0.0
      %v2966 = vmax.f32 %v2430, 0.0
      %v2967 = vmax.f32 %v2432, 0.0
      %v2968 = vmax.f32 %v2816, 0.0
      %v2969 = vmax.f32 %v2818, 0.0
      %v2970 = vmax.f32 %v2436, 0.0
      %v2971 = vmax.f32 %v2438, 0.0
      %v2972 = vmax.f32 %v2822, 0.0
      %v2973 = vmax.f32 %v2824, 0.0
      %v2974 = vmax.f32 %v2440, 0.0
      %v2975 = vmax.f32 %v2442, 0.0
      %v2976 = vmax.f32 %v2826, 0.0
      %v2977 = vmax.f32 %v2828, 0.0
      %v2978 = vmax.f32 %v2446, 0.0
      %v2979 = vmax.f32 %v2448, 0.0
      %v2980 = vmax.f32 %v2832, 0.0
      %v2981 = vmax.f32 %v2834, 0.0
      %v2982 = vmax.f32 %v2450, 0.0
      %v2983 = vmax.f32 %v2452, 0.0
      %v2984 = vmax.f32 %v2836, 0.0
      %v2985 = vmax.f32 %v2838, 0.0
      %v2986 = vmax.f32 %v2456, 0.0
      %v2987 = vmax.f32 %v2458, 0.0
      %v2988 = vmax.f32 %v2842, 0.0
      %v2989 = vmax.f32 %v2844, 0.0
      %v2990 = vmax.f32 %v2460, 0.0
      %v2991 = vmax.f32 %v2462, 0.0
      %v2992 = vmax.f32 %v2846, 0.0
      %v2993 = vmax.f32 %v2848, 0.0
      %v2994 = vmax.f32 %v2466, 0.0
      %v2995 = vmax.f32 %v2468, 0.0
      %v2996 = vmax.f32 %v2852, 0.0
      %v2997 = vmax.f32 %v2854, 0.0
      %v2998 = vmax.f32 %v2470, 0.0
      %v2999 = vmax.f32 %v2472, 0.0
      %v3000 = vmax.f32 %v2856, 0.0
      %v3001 = vmax.f32 %v2858, 0.0
      %v3002 = vmax.f32 %v2476, 0.0
      %v3003 = vmax.f32 %v2478, 0.0
      %v3004 = vmax.f32 %v2862, 0.0
      %v3005 = vmax.f32 %v2864, 0.0
      %v3006 = vmax.f32 %v2480, 0.0
      %v3007 = vmax.f32 %v2482, 0.0
      %v3008 = vmax.f32 %v2866, 0.0
      %v3009 = vmax.f32 %v2868, 0.0
      %v3010 = vmax.f32 %v2486, 0.0
      %v3011 = vmax.f32 %v2488, 0.0
      %v3012 = vmax.f32 %v2872, 0.0
      %v3013 = vmax.f32 %v2874, 0.0
      %v3014 = vmax.f32 %v2490, 0.0
      %v3015 = vmax.f32 %v2492, 0.0
      %v3016 = vmax.f32 %v2876, 0.0
      %v3017 = vmax.f32 %v2878, 0.0
      %v3018 = vmax.f32 %v2496, 0.0
      %v3019 = vmax.f32 %v2498, 0.0
      %v3020 = vmax.f32 %v2882, 0.0
      %v3021 = vmax.f32 %v2884, 0.0
      %v3022 = vmax.f32 %v2500, 0.0
      %v3023 = vmax.f32 %v2502, 0.0
      %v3024 = vmax.f32 %v2886, 0.0
      %v3025 = vmax.f32 %v2888, 0.0
      %v3026 = vmax.f32 %v2506, 0.0
      %v3027 = vmax.f32 %v2508, 0.0
      %v3028 = vmax.f32 %v2892, 0.0
      %v3029 = vmax.f32 %v2894, 0.0
      %v3030 = vmax.f32 %v2510, 0.0
      %v3031 = vmax.f32 %v2512, 0.0
      %v3032 = vmax.f32 %v2896, 0.0
      %v3033 = vmax.f32 %v2898, 0.0
      %v3034 = vmax.f32 %v2516, 0.0
      %v3035 = vmax.f32 %v2518, 0.0
      %v3036 = vmax.f32 %v2902, 0.0
      %v3037 = vmax.f32 %v2904, 0.0
      %v3038 = vmax.f32 %v2520, 0.0
      %v3039 = vmax.f32 %v2522, 0.0
      %v3040 = vmax.f32 %v2906, 0.0
      %v3041 = vmax.f32 %v2908, 0.0
      %v3042 = vmax.f32 %v2526, 0.0
      %v3043 = vmax.f32 %v2528, 0.0
      %v3044 = vmax.f32 %v2912, 0.0
      %v3045 = vmax.f32 %v2914, 0.0
      %v3046 = vmax.f32 %v2530, 0.0
      %v3047 = vmax.f32 %v2532, 0.0
      %v3048 = vmax.f32 %v2916, 0.0
      %v3049 = vmax.f32 %v2918, 0.0
      %v3050 = vmax.f32 %v2536, 0.0
      %v3051 = vmax.f32 %v2538, 0.0
      %v3052 = vmax.f32 %v2922, 0.0
      %v3053 = vmax.f32 %v2924, 0.0
      %v3054 = vmax.f32 %v2540, 0.0
      %v3055 = vmax.f32 %v2542, 0.0
      %v3056 = vmax.f32 %v2926, 0.0
      %v3057 = vmax.f32 %v2928, 0.0
      %v3058 = vpack.c.bf16 %v2934, %v2930
      %v3059 = vpack.c.bf16 %v2935, %v2931
      %v3060 = vpack.c.bf16 %v2936, %v2932
      %v3061 = vpack.c.bf16 %v2937, %v2933
      %v3062 = vpack.c.bf16 %v2942, %v2938
      %v3063 = vpack.c.bf16 %v2943, %v2939
      %v3064 = vpack.c.bf16 %v2944, %v2940
      %v3065 = vpack.c.bf16 %v2945, %v2941
      %v3066 = vpack.c.bf16 %v2950, %v2946
      %v3067 = vpack.c.bf16 %v2951, %v2947
      %v3068 = vpack.c.bf16 %v2952, %v2948
      %v3069 = vpack.c.bf16 %v2953, %v2949
      %v3070 = vpack.c.bf16 %v2958, %v2954
      %v3071 = vpack.c.bf16 %v2959, %v2955
      %v3072 = vpack.c.bf16 %v2960, %v2956
      %v3073 = vpack.c.bf16 %v2961, %v2957
      %v3074 = vpack.c.bf16 %v2966, %v2962
      %v3075 = vpack.c.bf16 %v2967, %v2963
      %v3076 = vpack.c.bf16 %v2968, %v2964
      %v3077 = vpack.c.bf16 %v2969, %v2965
      %v3078 = vpack.c.bf16 %v2974, %v2970
      %v3079 = vpack.c.bf16 %v2975, %v2971
      %v3080 = vpack.c.bf16 %v2976, %v2972
      %v3081 = vpack.c.bf16 %v2977, %v2973
      %v3082 = vpack.c.bf16 %v2982, %v2978
      %v3083 = vpack.c.bf16 %v2983, %v2979
      %v3084 = vpack.c.bf16 %v2984, %v2980
      %v3085 = vpack.c.bf16 %v2985, %v2981
      %v3086 = vpack.c.bf16 %v2990, %v2986
      %v3087 = vpack.c.bf16 %v2991, %v2987
      %v3088 = vpack.c.bf16 %v2992, %v2988
      %v3089 = vpack.c.bf16 %v2993, %v2989
      %v3090 = vpack.c.bf16 %v2998, %v2994
      %v3091 = vpack.c.bf16 %v2999, %v2995
      %v3092 = vpack.c.bf16 %v3000, %v2996
      %v3093 = vpack.c.bf16 %v3001, %v2997
      %v3094 = vpack.c.bf16 %v3006, %v3002
      %v3095 = vpack.c.bf16 %v3007, %v3003
      %v3096 = vpack.c.bf16 %v3008, %v3004
      %v3097 = vpack.c.bf16 %v3009, %v3005
      %v3098 = vpack.c.bf16 %v3014, %v3010
      %v3099 = vpack.c.bf16 %v3015, %v3011
      %v3100 = vpack.c.bf16 %v3016, %v3012
      %v3101 = vpack.c.bf16 %v3017, %v3013
      %v3102 = vpack.c.bf16 %v3022, %v3018
      %v3103 = vpack.c.bf16 %v3023, %v3019
      %v3104 = vpack.c.bf16 %v3024, %v3020
      %v3105 = vpack.c.bf16 %v3025, %v3021
      %v3106 = vpack.c.bf16 %v3030, %v3026
      %v3107 = vpack.c.bf16 %v3031, %v3027
      %v3108 = vpack.c.bf16 %v3032, %v3028
      %v3109 = vpack.c.bf16 %v3033, %v3029
      %v3110 = vpack.c.bf16 %v3038, %v3034
      %v3111 = vpack.c.bf16 %v3039, %v3035
      %v3112 = vpack.c.bf16 %v3040, %v3036
      %v3113 = vpack.c.bf16 %v3041, %v3037
      %v3114 = vpack.c.bf16 %v3046, %v3042
      %v3115 = vpack.c.bf16 %v3047, %v3043
      %v3116 = vpack.c.bf16 %v3048, %v3044
      %v3117 = vpack.c.bf16 %v3049, %v3045
      %v3118 = vpack.c.bf16 %v3054, %v3050
      %v3119 = vpack.c.bf16 %v3055, %v3051
      %v3120 = vpack.c.bf16 %v3056, %v3052
      %v3121 = vpack.c.bf16 %v3057, %v3053
      %v3122 = vld [vmem:[%s3] sm:$0xff]
      %v3123 = vld [vmem:[%s3 + $0x8] sm:$0xff]
      %v3124 = vld [vmem:[%s3 + $0x10] sm:$0xff]
      %v3125 = vld [vmem:[%s3 + $0x18] sm:$0xff]
      %v3126 = vld [vmem:[%s3 + $0x20] sm:$0xff]
      %v3127 = vld [vmem:[%s3 + $0x28] sm:$0xff]
      %v3128 = vld [vmem:[%s3 + $0x30] sm:$0xff]
      %v3129 = vld [vmem:[%s3 + $0x38] sm:$0xff]
      %v3130 = vld [vmem:[%s3 + $0x40] sm:$0xff]
      %v3131 = vld [vmem:[%s3 + $0x48] sm:$0xff]
      %v3132 = vld [vmem:[%s3 + $0x50] sm:$0xff]
      %v3133 = vld [vmem:[%s3 + $0x58] sm:$0xff]
      %v3134 = vld [vmem:[%s3 + $0x60] sm:$0xff]
      %v3135 = vld [vmem:[%s3 + $0x68] sm:$0xff]
      %v3136 = vld [vmem:[%s3 + $0x70] sm:$0xff]
      %v3137 = vld [vmem:[%s3 + $0x78] sm:$0xff]
      %v3138 = vld [vmem:[%s3 + $0x80] sm:$0xff]
      %v3139 = vld [vmem:[%s3 + $0x88] sm:$0xff]
      %v3140 = vld [vmem:[%s3 + $0x90] sm:$0xff]
      %v3141 = vld [vmem:[%s3 + $0x98] sm:$0xff]
      %v3142 = vld [vmem:[%s3 + $0xa0] sm:$0xff]
      %v3143 = vld [vmem:[%s3 + $0xa8] sm:$0xff]
      %v3144 = vld [vmem:[%s3 + $0xb0] sm:$0xff]
      %v3145 = vld [vmem:[%s3 + $0xb8] sm:$0xff]
      %v3146 = vld [vmem:[%s3 + $0xc0] sm:$0xff]
      %v3147 = vld [vmem:[%s3 + $0xc8] sm:$0xff]
      %v3148 = vld [vmem:[%s3 + $0xd0] sm:$0xff]
      %v3149 = vld [vmem:[%s3 + $0xd8] sm:$0xff]
      %v3150 = vld [vmem:[%s3 + $0xe0] sm:$0xff]
      %v3151 = vld [vmem:[%s3 + $0xe8] sm:$0xff]
      %v3152 = vld [vmem:[%s3 + $0xf0] sm:$0xff]
      %v3153 = vld [vmem:[%s3 + $0xf8] sm:$0xff]
      %v3154 = vld [vmem:[%s3 + $0x100] sm:$0xff]
      %v3155 = vld [vmem:[%s3 + $0x108] sm:$0xff]
      %v3156 = vld [vmem:[%s3 + $0x110] sm:$0xff]
      %v3157 = vld [vmem:[%s3 + $0x118] sm:$0xff]
      %v3158 = vld [vmem:[%s3 + $0x120] sm:$0xff]
      %v3159 = vld [vmem:[%s3 + $0x128] sm:$0xff]
      %v3160 = vld [vmem:[%s3 + $0x130] sm:$0xff]
      %v3161 = vld [vmem:[%s3 + $0x138] sm:$0xff]
      %v3162 = vld [vmem:[%s3 + $0x140] sm:$0xff]
      %v3163 = vld [vmem:[%s3 + $0x148] sm:$0xff]
      %v3164 = vld [vmem:[%s3 + $0x150] sm:$0xff]
      %v3165 = vld [vmem:[%s3 + $0x158] sm:$0xff]
      %v3166 = vld [vmem:[%s3 + $0x160] sm:$0xff]
      %v3167 = vld [vmem:[%s3 + $0x168] sm:$0xff]
      %v3168 = vld [vmem:[%s3 + $0x170] sm:$0xff]
      %v3169 = vld [vmem:[%s3 + $0x178] sm:$0xff]
      %v3170 = vld [vmem:[%s3 + $0x180] sm:$0xff]
      %v3171 = vld [vmem:[%s3 + $0x188] sm:$0xff]
      %v3172 = vld [vmem:[%s3 + $0x190] sm:$0xff]
      %v3173 = vld [vmem:[%s3 + $0x198] sm:$0xff]
      %v3174 = vld [vmem:[%s3 + $0x1a0] sm:$0xff]
      %v3175 = vld [vmem:[%s3 + $0x1a8] sm:$0xff]
      %v3176 = vld [vmem:[%s3 + $0x1b0] sm:$0xff]
      %v3177 = vld [vmem:[%s3 + $0x1b8] sm:$0xff]
      %v3178 = vld [vmem:[%s3 + $0x1c0] sm:$0xff]
      %v3179 = vld [vmem:[%s3 + $0x1c8] sm:$0xff]
      %v3180 = vld [vmem:[%s3 + $0x1d0] sm:$0xff]
      %v3181 = vld [vmem:[%s3 + $0x1d8] sm:$0xff]
      %v3182 = vld [vmem:[%s3 + $0x1e0] sm:$0xff]
      %v3183 = vld [vmem:[%s3 + $0x1e8] sm:$0xff]
      %v3184 = vld [vmem:[%s3 + $0x1f0] sm:$0xff]
      %v3185 = vld [vmem:[%s3 + $0x1f8] sm:$0xff]
      %v3186 = vld [vmem:[%s3 + $0x200] sm:$0xff]
      %v3187 = vld [vmem:[%s3 + $0x208] sm:$0xff]
      %v3188 = vld [vmem:[%s3 + $0x210] sm:$0xff]
      %v3189 = vld [vmem:[%s3 + $0x218] sm:$0xff]
      %v3190 = vld [vmem:[%s3 + $0x220] sm:$0xff]
      %v3191 = vld [vmem:[%s3 + $0x228] sm:$0xff]
      %v3192 = vld [vmem:[%s3 + $0x230] sm:$0xff]
      %v3193 = vld [vmem:[%s3 + $0x238] sm:$0xff]
      %v3194 = vld [vmem:[%s3 + $0x240] sm:$0xff]
      %v3195 = vld [vmem:[%s3 + $0x248] sm:$0xff]
      %v3196 = vld [vmem:[%s3 + $0x250] sm:$0xff]
      %v3197 = vld [vmem:[%s3 + $0x258] sm:$0xff]
      %v3198 = vld [vmem:[%s3 + $0x260] sm:$0xff]
      %v3199 = vld [vmem:[%s3 + $0x268] sm:$0xff]
      %v3200 = vld [vmem:[%s3 + $0x270] sm:$0xff]
      %v3201 = vld [vmem:[%s3 + $0x278] sm:$0xff]
      %v3202 = vld [vmem:[%s3 + $0x280] sm:$0xff]
      %v3203 = vld [vmem:[%s3 + $0x288] sm:$0xff]
      %v3204 = vld [vmem:[%s3 + $0x290] sm:$0xff]
      %v3205 = vld [vmem:[%s3 + $0x298] sm:$0xff]
      %v3206 = vld [vmem:[%s3 + $0x2a0] sm:$0xff]
      %v3207 = vld [vmem:[%s3 + $0x2a8] sm:$0xff]
      %v3208 = vld [vmem:[%s3 + $0x2b0] sm:$0xff]
      %v3209 = vld [vmem:[%s3 + $0x2b8] sm:$0xff]
      %v3210 = vld [vmem:[%s3 + $0x2c0] sm:$0xff]
      %v3211 = vld [vmem:[%s3 + $0x2c8] sm:$0xff]
      %v3212 = vld [vmem:[%s3 + $0x2d0] sm:$0xff]
      %v3213 = vld [vmem:[%s3 + $0x2d8] sm:$0xff]
      %v3214 = vld [vmem:[%s3 + $0x2e0] sm:$0xff]
      %v3215 = vld [vmem:[%s3 + $0x2e8] sm:$0xff]
      %v3216 = vld [vmem:[%s3 + $0x2f0] sm:$0xff]
      %v3217 = vld [vmem:[%s3 + $0x2f8] sm:$0xff]
      %v3218 = vld [vmem:[%s3 + $0x300] sm:$0xff]
      %v3219 = vld [vmem:[%s3 + $0x308] sm:$0xff]
      %v3220 = vld [vmem:[%s3 + $0x310] sm:$0xff]
      %v3221 = vld [vmem:[%s3 + $0x318] sm:$0xff]
      %v3222 = vld [vmem:[%s3 + $0x320] sm:$0xff]
      %v3223 = vld [vmem:[%s3 + $0x328] sm:$0xff]
      %v3224 = vld [vmem:[%s3 + $0x330] sm:$0xff]
      %v3225 = vld [vmem:[%s3 + $0x338] sm:$0xff]
      %v3226 = vld [vmem:[%s3 + $0x340] sm:$0xff]
      %v3227 = vld [vmem:[%s3 + $0x348] sm:$0xff]
      %v3228 = vld [vmem:[%s3 + $0x350] sm:$0xff]
      %v3229 = vld [vmem:[%s3 + $0x358] sm:$0xff]
      %v3230 = vld [vmem:[%s3 + $0x360] sm:$0xff]
      %v3231 = vld [vmem:[%s3 + $0x368] sm:$0xff]
      %v3232 = vld [vmem:[%s3 + $0x370] sm:$0xff]
      %v3233 = vld [vmem:[%s3 + $0x378] sm:$0xff]
      %v3234 = vld [vmem:[%s3 + $0x380] sm:$0xff]
      %v3235 = vld [vmem:[%s3 + $0x388] sm:$0xff]
      %v3236 = vld [vmem:[%s3 + $0x390] sm:$0xff]
      %v3237 = vld [vmem:[%s3 + $0x398] sm:$0xff]
      %v3238 = vld [vmem:[%s3 + $0x3a0] sm:$0xff]
      %v3239 = vld [vmem:[%s3 + $0x3a8] sm:$0xff]
      %v3240 = vld [vmem:[%s3 + $0x3b0] sm:$0xff]
      %v3241 = vld [vmem:[%s3 + $0x3b8] sm:$0xff]
      %v3242 = vld [vmem:[%s3 + $0x3c0] sm:$0xff]
      %v3243 = vld [vmem:[%s3 + $0x3c8] sm:$0xff]
      %v3244 = vld [vmem:[%s3 + $0x3d0] sm:$0xff]
      %v3245 = vld [vmem:[%s3 + $0x3d8] sm:$0xff]
      %v3246 = vld [vmem:[%s3 + $0x3e0] sm:$0xff]
      %v3247 = vld [vmem:[%s3 + $0x3e8] sm:$0xff]
      %v3248 = vld [vmem:[%s3 + $0x3f0] sm:$0xff]
      %v3249 = vld [vmem:[%s3 + $0x3f8] sm:$0xff]
      %v3250 = vlaneseq
      %v3251 = vshrl.u32 %v3250, 7
      %v3252 = vsub.s32 2, %v3251
      %v3253 = vrot.slane %v256, %v3252
      %v3254 = vlaneseq
      %v3255 = vshrl.u32 %v3254, 7
      %v3256 = vsub.s32 2, %v3255
      %v3257 = vrot.slane %v257, %v3256
      %v3258 = vlaneseq
      %v3259 = vshrl.u32 %v3258, 7
      %v3260 = vsub.s32 2, %v3259
      %v3261 = vrot.slane %v258, %v3260
      %v3262 = vlaneseq
      %v3263 = vshrl.u32 %v3262, 7
      %v3264 = vsub.s32 2, %v3263
      %v3265 = vrot.slane %v259, %v3264
      %v3394 = vunpack.c.l.b16 %v3122
      %v3395 = vunpack.c.h.b16 %v3122
      %v3396 = vunpack.c.l.b16 %v3123
      %v3397 = vunpack.c.h.b16 %v3123
      %v3398 = vunpack.c.l.b16 %v3124
      %v3399 = vunpack.c.h.b16 %v3124
      %v3400 = vunpack.c.l.b16 %v3125
      %v3401 = vunpack.c.h.b16 %v3125
      %v3402 = vunpack.c.l.b16 %v3126
      %v3403 = vunpack.c.h.b16 %v3126
      %v3404 = vunpack.c.l.b16 %v3127
      %v3405 = vunpack.c.h.b16 %v3127
      %v3406 = vunpack.c.l.b16 %v3128
      %v3407 = vunpack.c.h.b16 %v3128
      %v3408 = vunpack.c.l.b16 %v3129
      %v3409 = vunpack.c.h.b16 %v3129
      %v3410 = vunpack.c.l.b16 %v3130
      %v3411 = vunpack.c.h.b16 %v3130
      %v3412 = vunpack.c.l.b16 %v3131
      %v3413 = vunpack.c.h.b16 %v3131
      %v3414 = vunpack.c.l.b16 %v3132
      %v3415 = vunpack.c.h.b16 %v3132
      %v3416 = vunpack.c.l.b16 %v3133
      %v3417 = vunpack.c.h.b16 %v3133
      %v3418 = vunpack.c.l.b16 %v3134
      %v3419 = vunpack.c.h.b16 %v3134
      %v3420 = vunpack.c.l.b16 %v3135
      %v3421 = vunpack.c.h.b16 %v3135
      %v3422 = vunpack.c.l.b16 %v3136
      %v3423 = vunpack.c.h.b16 %v3136
      %v3424 = vunpack.c.l.b16 %v3137
      %v3425 = vunpack.c.h.b16 %v3137
      %v3426 = vunpack.c.l.b16 %v3138
      %v3427 = vunpack.c.h.b16 %v3138
      %v3428 = vunpack.c.l.b16 %v3139
      %v3429 = vunpack.c.h.b16 %v3139
      %v3430 = vunpack.c.l.b16 %v3140
      %v3431 = vunpack.c.h.b16 %v3140
      %v3432 = vunpack.c.l.b16 %v3141
      %v3433 = vunpack.c.h.b16 %v3141
      %v3434 = vunpack.c.l.b16 %v3142
      %v3435 = vunpack.c.h.b16 %v3142
      %v3436 = vunpack.c.l.b16 %v3143
      %v3437 = vunpack.c.h.b16 %v3143
      %v3438 = vunpack.c.l.b16 %v3144
      %v3439 = vunpack.c.h.b16 %v3144
      %v3440 = vunpack.c.l.b16 %v3145
      %v3441 = vunpack.c.h.b16 %v3145
      %v3442 = vunpack.c.l.b16 %v3146
      %v3443 = vunpack.c.h.b16 %v3146
      %v3444 = vunpack.c.l.b16 %v3147
      %v3445 = vunpack.c.h.b16 %v3147
      %v3446 = vunpack.c.l.b16 %v3148
      %v3447 = vunpack.c.h.b16 %v3148
      %v3448 = vunpack.c.l.b16 %v3149
      %v3449 = vunpack.c.h.b16 %v3149
      %v3450 = vunpack.c.l.b16 %v3150
      %v3451 = vunpack.c.h.b16 %v3150
      %v3452 = vunpack.c.l.b16 %v3151
      %v3453 = vunpack.c.h.b16 %v3151
      %v3454 = vunpack.c.l.b16 %v3152
      %v3455 = vunpack.c.h.b16 %v3152
      %v3456 = vunpack.c.l.b16 %v3153
      %v3457 = vunpack.c.h.b16 %v3153
      %v3458 = vunpack.c.l.b16 %v3154
      %v3459 = vunpack.c.h.b16 %v3154
      %v3460 = vunpack.c.l.b16 %v3155
      %v3461 = vunpack.c.h.b16 %v3155
      %v3462 = vunpack.c.l.b16 %v3156
      %v3463 = vunpack.c.h.b16 %v3156
      %v3464 = vunpack.c.l.b16 %v3157
      %v3465 = vunpack.c.h.b16 %v3157
      %v3466 = vunpack.c.l.b16 %v3158
      %v3467 = vunpack.c.h.b16 %v3158
      %v3468 = vunpack.c.l.b16 %v3159
      %v3469 = vunpack.c.h.b16 %v3159
      %v3470 = vunpack.c.l.b16 %v3160
      %v3471 = vunpack.c.h.b16 %v3160
      %v3472 = vunpack.c.l.b16 %v3161
      %v3473 = vunpack.c.h.b16 %v3161
      %v3474 = vunpack.c.l.b16 %v3162
      %v3475 = vunpack.c.h.b16 %v3162
      %v3476 = vunpack.c.l.b16 %v3163
      %v3477 = vunpack.c.h.b16 %v3163
      %v3478 = vunpack.c.l.b16 %v3164
      %v3479 = vunpack.c.h.b16 %v3164
      %v3480 = vunpack.c.l.b16 %v3165
      %v3481 = vunpack.c.h.b16 %v3165
      %v3482 = vunpack.c.l.b16 %v3166
      %v3483 = vunpack.c.h.b16 %v3166
      %v3484 = vunpack.c.l.b16 %v3167
      %v3485 = vunpack.c.h.b16 %v3167
      %v3486 = vunpack.c.l.b16 %v3168
      %v3487 = vunpack.c.h.b16 %v3168
      %v3488 = vunpack.c.l.b16 %v3169
      %v3489 = vunpack.c.h.b16 %v3169
      %v3490 = vunpack.c.l.b16 %v3170
      %v3491 = vunpack.c.h.b16 %v3170
      %v3492 = vunpack.c.l.b16 %v3171
      %v3493 = vunpack.c.h.b16 %v3171
      %v3494 = vunpack.c.l.b16 %v3172
      %v3495 = vunpack.c.h.b16 %v3172
      %v3496 = vunpack.c.l.b16 %v3173
      %v3497 = vunpack.c.h.b16 %v3173
      %v3498 = vunpack.c.l.b16 %v3174
      %v3499 = vunpack.c.h.b16 %v3174
      %v3500 = vunpack.c.l.b16 %v3175
      %v3501 = vunpack.c.h.b16 %v3175
      %v3502 = vunpack.c.l.b16 %v3176
      %v3503 = vunpack.c.h.b16 %v3176
      %v3504 = vunpack.c.l.b16 %v3177
      %v3505 = vunpack.c.h.b16 %v3177
      %v3506 = vunpack.c.l.b16 %v3178
      %v3507 = vunpack.c.h.b16 %v3178
      %v3508 = vunpack.c.l.b16 %v3179
      %v3509 = vunpack.c.h.b16 %v3179
      %v3510 = vunpack.c.l.b16 %v3180
      %v3511 = vunpack.c.h.b16 %v3180
      %v3512 = vunpack.c.l.b16 %v3181
      %v3513 = vunpack.c.h.b16 %v3181
      %v3514 = vunpack.c.l.b16 %v3182
      %v3515 = vunpack.c.h.b16 %v3182
      %v3516 = vunpack.c.l.b16 %v3183
      %v3517 = vunpack.c.h.b16 %v3183
      %v3518 = vunpack.c.l.b16 %v3184
      %v3519 = vunpack.c.h.b16 %v3184
      %v3520 = vunpack.c.l.b16 %v3185
      %v3521 = vunpack.c.h.b16 %v3185
      %v3522 = vunpack.c.l.b16 %v3186
      %v3523 = vunpack.c.h.b16 %v3186
      %v3524 = vunpack.c.l.b16 %v3187
      %v3525 = vunpack.c.h.b16 %v3187
      %v3526 = vunpack.c.l.b16 %v3188
      %v3527 = vunpack.c.h.b16 %v3188
      %v3528 = vunpack.c.l.b16 %v3189
      %v3529 = vunpack.c.h.b16 %v3189
      %v3530 = vunpack.c.l.b16 %v3190
      %v3531 = vunpack.c.h.b16 %v3190
      %v3532 = vunpack.c.l.b16 %v3191
      %v3533 = vunpack.c.h.b16 %v3191
      %v3534 = vunpack.c.l.b16 %v3192
      %v3535 = vunpack.c.h.b16 %v3192
      %v3536 = vunpack.c.l.b16 %v3193
      %v3537 = vunpack.c.h.b16 %v3193
      %v3538 = vunpack.c.l.b16 %v3194
      %v3539 = vunpack.c.h.b16 %v3194
      %v3540 = vunpack.c.l.b16 %v3195
      %v3541 = vunpack.c.h.b16 %v3195
      %v3542 = vunpack.c.l.b16 %v3196
      %v3543 = vunpack.c.h.b16 %v3196
      %v3544 = vunpack.c.l.b16 %v3197
      %v3545 = vunpack.c.h.b16 %v3197
      %v3546 = vunpack.c.l.b16 %v3198
      %v3547 = vunpack.c.h.b16 %v3198
      %v3548 = vunpack.c.l.b16 %v3199
      %v3549 = vunpack.c.h.b16 %v3199
      %v3550 = vunpack.c.l.b16 %v3200
      %v3551 = vunpack.c.h.b16 %v3200
      %v3552 = vunpack.c.l.b16 %v3201
      %v3553 = vunpack.c.h.b16 %v3201
      %v3554 = vunpack.c.l.b16 %v3202
      %v3555 = vunpack.c.h.b16 %v3202
      %v3556 = vunpack.c.l.b16 %v3203
      %v3557 = vunpack.c.h.b16 %v3203
      %v3558 = vunpack.c.l.b16 %v3204
      %v3559 = vunpack.c.h.b16 %v3204
      %v3560 = vunpack.c.l.b16 %v3205
      %v3561 = vunpack.c.h.b16 %v3205
      %v3562 = vunpack.c.l.b16 %v3206
      %v3563 = vunpack.c.h.b16 %v3206
      %v3564 = vunpack.c.l.b16 %v3207
      %v3565 = vunpack.c.h.b16 %v3207
      %v3566 = vunpack.c.l.b16 %v3208
      %v3567 = vunpack.c.h.b16 %v3208
      %v3568 = vunpack.c.l.b16 %v3209
      %v3569 = vunpack.c.h.b16 %v3209
      %v3570 = vunpack.c.l.b16 %v3210
      %v3571 = vunpack.c.h.b16 %v3210
      %v3572 = vunpack.c.l.b16 %v3211
      %v3573 = vunpack.c.h.b16 %v3211
      %v3574 = vunpack.c.l.b16 %v3212
      %v3575 = vunpack.c.h.b16 %v3212
      %v3576 = vunpack.c.l.b16 %v3213
      %v3577 = vunpack.c.h.b16 %v3213
      %v3578 = vunpack.c.l.b16 %v3214
      %v3579 = vunpack.c.h.b16 %v3214
      %v3580 = vunpack.c.l.b16 %v3215
      %v3581 = vunpack.c.h.b16 %v3215
      %v3582 = vunpack.c.l.b16 %v3216
      %v3583 = vunpack.c.h.b16 %v3216
      %v3584 = vunpack.c.l.b16 %v3217
      %v3585 = vunpack.c.h.b16 %v3217
      %v3586 = vunpack.c.l.b16 %v3218
      %v3587 = vunpack.c.h.b16 %v3218
      %v3588 = vunpack.c.l.b16 %v3219
      %v3589 = vunpack.c.h.b16 %v3219
      %v3590 = vunpack.c.l.b16 %v3220
      %v3591 = vunpack.c.h.b16 %v3220
      %v3592 = vunpack.c.l.b16 %v3221
      %v3593 = vunpack.c.h.b16 %v3221
      %v3594 = vunpack.c.l.b16 %v3222
      %v3595 = vunpack.c.h.b16 %v3222
      %v3596 = vunpack.c.l.b16 %v3223
      %v3597 = vunpack.c.h.b16 %v3223
      %v3598 = vunpack.c.l.b16 %v3224
      %v3599 = vunpack.c.h.b16 %v3224
      %v3600 = vunpack.c.l.b16 %v3225
      %v3601 = vunpack.c.h.b16 %v3225
      %v3602 = vunpack.c.l.b16 %v3226
      %v3603 = vunpack.c.h.b16 %v3226
      %v3604 = vunpack.c.l.b16 %v3227
      %v3605 = vunpack.c.h.b16 %v3227
      %v3606 = vunpack.c.l.b16 %v3228
      %v3607 = vunpack.c.h.b16 %v3228
      %v3608 = vunpack.c.l.b16 %v3229
      %v3609 = vunpack.c.h.b16 %v3229
      %v3610 = vunpack.c.l.b16 %v3230
      %v3611 = vunpack.c.h.b16 %v3230
      %v3612 = vunpack.c.l.b16 %v3231
      %v3613 = vunpack.c.h.b16 %v3231
      %v3614 = vunpack.c.l.b16 %v3232
      %v3615 = vunpack.c.h.b16 %v3232
      %v3616 = vunpack.c.l.b16 %v3233
      %v3617 = vunpack.c.h.b16 %v3233
      %v3618 = vunpack.c.l.b16 %v3234
      %v3619 = vunpack.c.h.b16 %v3234
      %v3620 = vunpack.c.l.b16 %v3235
      %v3621 = vunpack.c.h.b16 %v3235
      %v3622 = vunpack.c.l.b16 %v3236
      %v3623 = vunpack.c.h.b16 %v3236
      %v3624 = vunpack.c.l.b16 %v3237
      %v3625 = vunpack.c.h.b16 %v3237
      %v3626 = vunpack.c.l.b16 %v3238
      %v3627 = vunpack.c.h.b16 %v3238
      %v3628 = vunpack.c.l.b16 %v3239
      %v3629 = vunpack.c.h.b16 %v3239
      %v3630 = vunpack.c.l.b16 %v3240
      %v3631 = vunpack.c.h.b16 %v3240
      %v3632 = vunpack.c.l.b16 %v3241
      %v3633 = vunpack.c.h.b16 %v3241
      %v3634 = vunpack.c.l.b16 %v3242
      %v3635 = vunpack.c.h.b16 %v3242
      %v3636 = vunpack.c.l.b16 %v3243
      %v3637 = vunpack.c.h.b16 %v3243
      %v3638 = vunpack.c.l.b16 %v3244
      %v3639 = vunpack.c.h.b16 %v3244
      %v3640 = vunpack.c.l.b16 %v3245
      %v3641 = vunpack.c.h.b16 %v3245
      %v3642 = vunpack.c.l.b16 %v3246
      %v3643 = vunpack.c.h.b16 %v3246
      %v3644 = vunpack.c.l.b16 %v3247
      %v3645 = vunpack.c.h.b16 %v3247
      %v3646 = vunpack.c.l.b16 %v3248
      %v3647 = vunpack.c.h.b16 %v3248
      %v3648 = vunpack.c.l.b16 %v3249
      %v3649 = vunpack.c.h.b16 %v3249
      %v3650 = vpack.c.b16 %v3398, %v3394
      %v3651 = vpack.c.b16 %v3399, %v3395
      %v3652 = vpack.c.b16 %v3400, %v3396
      %v3653 = vpack.c.b16 %v3401, %v3397
      %v3654 = vpack.c.b16 %v3406, %v3402
      %v3655 = vpack.c.b16 %v3407, %v3403
      %v3656 = vpack.c.b16 %v3408, %v3404
      %v3657 = vpack.c.b16 %v3409, %v3405
      %v3658 = vpack.c.b16 %v3414, %v3410
      %v3659 = vpack.c.b16 %v3415, %v3411
      %v3660 = vpack.c.b16 %v3416, %v3412
      %v3661 = vpack.c.b16 %v3417, %v3413
      %v3662 = vpack.c.b16 %v3422, %v3418
      %v3663 = vpack.c.b16 %v3423, %v3419
      %v3664 = vpack.c.b16 %v3424, %v3420
      %v3665 = vpack.c.b16 %v3425, %v3421
      %v3666 = vpack.c.b16 %v3430, %v3426
      %v3667 = vpack.c.b16 %v3431, %v3427
      %v3668 = vpack.c.b16 %v3432, %v3428
      %v3669 = vpack.c.b16 %v3433, %v3429
      %v3670 = vpack.c.b16 %v3438, %v3434
      %v3671 = vpack.c.b16 %v3439, %v3435
      %v3672 = vpack.c.b16 %v3440, %v3436
      %v3673 = vpack.c.b16 %v3441, %v3437
      %v3674 = vpack.c.b16 %v3446, %v3442
      %v3675 = vpack.c.b16 %v3447, %v3443
      %v3676 = vpack.c.b16 %v3448, %v3444
      %v3677 = vpack.c.b16 %v3449, %v3445
      %v3678 = vpack.c.b16 %v3454, %v3450
      %v3679 = vpack.c.b16 %v3455, %v3451
      %v3680 = vpack.c.b16 %v3456, %v3452
      %v3681 = vpack.c.b16 %v3457, %v3453
      %v3682 = vpack.c.b16 %v3462, %v3458
      %v3683 = vpack.c.b16 %v3463, %v3459
      %v3684 = vpack.c.b16 %v3464, %v3460
      %v3685 = vpack.c.b16 %v3465, %v3461
      %v3686 = vpack.c.b16 %v3470, %v3466
      %v3687 = vpack.c.b16 %v3471, %v3467
      %v3688 = vpack.c.b16 %v3472, %v3468
      %v3689 = vpack.c.b16 %v3473, %v3469
      %v3690 = vpack.c.b16 %v3478, %v3474
      %v3691 = vpack.c.b16 %v3479, %v3475
      %v3692 = vpack.c.b16 %v3480, %v3476
      %v3693 = vpack.c.b16 %v3481, %v3477
      %v3694 = vpack.c.b16 %v3486, %v3482
      %v3695 = vpack.c.b16 %v3487, %v3483
      %v3696 = vpack.c.b16 %v3488, %v3484
      %v3697 = vpack.c.b16 %v3489, %v3485
      %v3698 = vpack.c.b16 %v3494, %v3490
      %v3699 = vpack.c.b16 %v3495, %v3491
      %v3700 = vpack.c.b16 %v3496, %v3492
      %v3701 = vpack.c.b16 %v3497, %v3493
      %v3702 = vpack.c.b16 %v3502, %v3498
      %v3703 = vpack.c.b16 %v3503, %v3499
      %v3704 = vpack.c.b16 %v3504, %v3500
      %v3705 = vpack.c.b16 %v3505, %v3501
      %v3706 = vpack.c.b16 %v3510, %v3506
      %v3707 = vpack.c.b16 %v3511, %v3507
      %v3708 = vpack.c.b16 %v3512, %v3508
      %v3709 = vpack.c.b16 %v3513, %v3509
      %v3710 = vpack.c.b16 %v3518, %v3514
      %v3711 = vpack.c.b16 %v3519, %v3515
      %v3712 = vpack.c.b16 %v3520, %v3516
      %v3713 = vpack.c.b16 %v3521, %v3517
      %v3714 = vpack.c.b16 %v3526, %v3522
      %v3715 = vpack.c.b16 %v3527, %v3523
      %v3716 = vpack.c.b16 %v3528, %v3524
      %v3717 = vpack.c.b16 %v3529, %v3525
      %v3718 = vpack.c.b16 %v3534, %v3530
      %v3719 = vpack.c.b16 %v3535, %v3531
      %v3720 = vpack.c.b16 %v3536, %v3532
      %v3721 = vpack.c.b16 %v3537, %v3533
      %v3722 = vpack.c.b16 %v3542, %v3538
      %v3723 = vpack.c.b16 %v3543, %v3539
      %v3724 = vpack.c.b16 %v3544, %v3540
      %v3725 = vpack.c.b16 %v3545, %v3541
      %v3726 = vpack.c.b16 %v3550, %v3546
      %v3727 = vpack.c.b16 %v3551, %v3547
      %v3728 = vpack.c.b16 %v3552, %v3548
      %v3729 = vpack.c.b16 %v3553, %v3549
      %v3730 = vpack.c.b16 %v3558, %v3554
      %v3731 = vpack.c.b16 %v3559, %v3555
      %v3732 = vpack.c.b16 %v3560, %v3556
      %v3733 = vpack.c.b16 %v3561, %v3557
      %v3734 = vpack.c.b16 %v3566, %v3562
      %v3735 = vpack.c.b16 %v3567, %v3563
      %v3736 = vpack.c.b16 %v3568, %v3564
      %v3737 = vpack.c.b16 %v3569, %v3565
      %v3738 = vpack.c.b16 %v3574, %v3570
      %v3739 = vpack.c.b16 %v3575, %v3571
      %v3740 = vpack.c.b16 %v3576, %v3572
      %v3741 = vpack.c.b16 %v3577, %v3573
      %v3742 = vpack.c.b16 %v3582, %v3578
      %v3743 = vpack.c.b16 %v3583, %v3579
      %v3744 = vpack.c.b16 %v3584, %v3580
      %v3745 = vpack.c.b16 %v3585, %v3581
      %v3746 = vpack.c.b16 %v3590, %v3586
      %v3747 = vpack.c.b16 %v3591, %v3587
      %v3748 = vpack.c.b16 %v3592, %v3588
      %v3749 = vpack.c.b16 %v3593, %v3589
      %v3750 = vpack.c.b16 %v3598, %v3594
      %v3751 = vpack.c.b16 %v3599, %v3595
      %v3752 = vpack.c.b16 %v3600, %v3596
      %v3753 = vpack.c.b16 %v3601, %v3597
      %v3754 = vpack.c.b16 %v3606, %v3602
      %v3755 = vpack.c.b16 %v3607, %v3603
      %v3756 = vpack.c.b16 %v3608, %v3604
      %v3757 = vpack.c.b16 %v3609, %v3605
      %v3758 = vpack.c.b16 %v3614, %v3610
      %v3759 = vpack.c.b16 %v3615, %v3611
      %v3760 = vpack.c.b16 %v3616, %v3612
      %v3761 = vpack.c.b16 %v3617, %v3613
      %v3762 = vpack.c.b16 %v3622, %v3618
      %v3763 = vpack.c.b16 %v3623, %v3619
      %v3764 = vpack.c.b16 %v3624, %v3620
      %v3765 = vpack.c.b16 %v3625, %v3621
      %v3766 = vpack.c.b16 %v3630, %v3626
      %v3767 = vpack.c.b16 %v3631, %v3627
      %v3768 = vpack.c.b16 %v3632, %v3628
      %v3769 = vpack.c.b16 %v3633, %v3629
      %v3770 = vpack.c.b16 %v3638, %v3634
      %v3771 = vpack.c.b16 %v3639, %v3635
      %v3772 = vpack.c.b16 %v3640, %v3636
      %v3773 = vpack.c.b16 %v3641, %v3637
      %v3774 = vpack.c.b16 %v3646, %v3642
      %v3775 = vpack.c.b16 %v3647, %v3643
      %v3776 = vpack.c.b16 %v3648, %v3644
      %v3777 = vpack.c.b16 %v3649, %v3645
      %3906 = vmatprep.subr.bf16.mxu0 %v3651
      %3907 = vmatpush1.bf16.msra.mxu0 %v3650
      %3908 = vmatprep.subr.bf16.mxu0 %v3655
      %3909 = vmatpush1.bf16.msra.mxu0 %v3654
      %3910 = vmatprep.subr.bf16.mxu0 %v3659
      %3911 = vmatpush1.bf16.msra.mxu0 %v3658
      %3912 = vmatprep.subr.bf16.mxu0 %v3663
      %3913 = vmatpush1.bf16.msra.mxu0 %v3662
      %3914 = vmatprep.subr.bf16.mxu0 %v3667
      %3915 = vmatpush1.bf16.msra.mxu0 %v3666
      %3916 = vmatprep.subr.bf16.mxu0 %v3671
      %3917 = vmatpush1.bf16.msra.mxu0 %v3670
      %3918 = vmatprep.subr.bf16.mxu0 %v3675
      %3919 = vmatpush1.bf16.msra.mxu0 %v3674
      %3920 = vmatprep.subr.bf16.mxu0 %v3679
      %3921 = vmatpush1.bf16.msra.mxu0 %v3678
      %3922 = vmatprep.subr.bf16.mxu0 %v3683
      %3923 = vmatpush1.bf16.msra.mxu0 %v3682
      %3924 = vmatprep.subr.bf16.mxu0 %v3687
      %3925 = vmatpush1.bf16.msra.mxu0 %v3686
      %3926 = vmatprep.subr.bf16.mxu0 %v3691
      %3927 = vmatpush1.bf16.msra.mxu0 %v3690
      %3928 = vmatprep.subr.bf16.mxu0 %v3695
      %3929 = vmatpush1.bf16.msra.mxu0 %v3694
      %3930 = vmatprep.subr.bf16.mxu0 %v3699
      %3931 = vmatpush1.bf16.msra.mxu0 %v3698
      %3932 = vmatprep.subr.bf16.mxu0 %v3703
      %3933 = vmatpush1.bf16.msra.mxu0 %v3702
      %3934 = vmatprep.subr.bf16.mxu0 %v3707
      %3935 = vmatpush1.bf16.msra.mxu0 %v3706
      %3936 = vmatprep.subr.bf16.mxu0 %v3711
      %3937 = vmatpush1.bf16.msra.mxu0 %v3710
      %3938 = vmatprep.mubr.bf16.mxu0 %v3059
      %3939 = vmatmul.mubr.bf16.gmra.mrb[0].mxu0 %v3058
      %v3940 = vpop.f32.mrb[0].mxu0
      %v3941 = vadd.f32 %v3253, %v3940
      %v3942 = vpop.f32.mrb[0].mxu0
      %v3943 = vadd.f32 %v3257, %v3942
      %v3944 = vpop.f32.mrb[0].mxu0
      %v3945 = vadd.f32 %v3253, %v3944
      %v3946 = vpop.f32.mrb[0].mxu0
      %v3947 = vadd.f32 %v3257, %v3946
      %3948 = vmatprep.mubr.bf16.mxu0 %v3063
      %3949 = vmatmul.mubr.bf16.gmra.mrb[0].mxu0 %v3062
      %v3950 = vpop.f32.mrb[0].mxu0
      %v3951 = vadd.f32 %v3253, %v3950
      %v3952 = vpop.f32.mrb[0].mxu0
      %v3953 = vadd.f32 %v3257, %v3952
      %v3954 = vpop.f32.mrb[0].mxu0
      %v3955 = vadd.f32 %v3253, %v3954
      %v3956 = vpop.f32.mrb[0].mxu0
      %v3957 = vadd.f32 %v3257, %v3956
      %3958 = vmatprep.mubr.bf16.mxu0 %v3067
      %3959 = vmatmul.mubr.bf16.gmra.mrb[0].mxu0 %v3066
      %v3960 = vpop.f32.mrb[0].mxu0
      %v3961 = vadd.f32 %v3253, %v3960
      %v3962 = vpop.f32.mrb[0].mxu0
      %v3963 = vadd.f32 %v3257, %v3962
      %v3964 = vpop.f32.mrb[0].mxu0
      %v3965 = vadd.f32 %v3253, %v3964
      %v3966 = vpop.f32.mrb[0].mxu0
      %v3967 = vadd.f32 %v3257, %v3966
      %3968 = vmatprep.mubr.bf16.mxu0 %v3071
      %3969 = vmatmul.mubr.bf16.gmra.mrb[0].mxu0 %v3070
      %v3970 = vpop.f32.mrb[0].mxu0
      %v3971 = vadd.f32 %v3253, %v3970
      %v3972 = vpop.f32.mrb[0].mxu0
      %v3973 = vadd.f32 %v3257, %v3972
      %v3974 = vpop.f32.mrb[0].mxu0
      %v3975 = vadd.f32 %v3253, %v3974
      %v3976 = vpop.f32.mrb[0].mxu0
      %v3977 = vadd.f32 %v3257, %v3976
      %3978 = vmatprep.mubr.bf16.mxu0 %v3075
      %3979 = vmatmul.mubr.bf16.gmra.mrb[0].mxu0 %v3074
      %v3980 = vpop.f32.mrb[0].mxu0
      %v3981 = vadd.f32 %v3253, %v3980
      %v3982 = vpop.f32.mrb[0].mxu0
      %v3983 = vadd.f32 %v3257, %v3982
      %v3984 = vpop.f32.mrb[0].mxu0
      %v3985 = vadd.f32 %v3253, %v3984
      %v3986 = vpop.f32.mrb[0].mxu0
      %v3987 = vadd.f32 %v3257, %v3986
      %3988 = vmatprep.mubr.bf16.mxu0 %v3079
      %3989 = vmatmul.mubr.bf16.gmra.mrb[0].mxu0 %v3078
      %v3990 = vpop.f32.mrb[0].mxu0
      %v3991 = vadd.f32 %v3253, %v3990
      %v3992 = vpop.f32.mrb[0].mxu0
      %v3993 = vadd.f32 %v3257, %v3992
      %v3994 = vpop.f32.mrb[0].mxu0
      %v3995 = vadd.f32 %v3253, %v3994
      %v3996 = vpop.f32.mrb[0].mxu0
      %v3997 = vadd.f32 %v3257, %v3996
      %3998 = vmatprep.mubr.bf16.mxu0 %v3083
      %3999 = vmatmul.mubr.bf16.gmra.mrb[0].mxu0 %v3082
      %v4000 = vpop.f32.mrb[0].mxu0
      %v4001 = vadd.f32 %v3253, %v4000
      %v4002 = vpop.f32.mrb[0].mxu0
      %v4003 = vadd.f32 %v3257, %v4002
      %v4004 = vpop.f32.mrb[0].mxu0
      %v4005 = vadd.f32 %v3253, %v4004
      %v4006 = vpop.f32.mrb[0].mxu0
      %v4007 = vadd.f32 %v3257, %v4006
      %4008 = vmatprep.mubr.bf16.mxu0 %v3087
      %4009 = vmatmul.mubr.bf16.gmra.mrb[0].mxu0 %v3086
      %v4010 = vpop.f32.mrb[0].mxu0
      %v4011 = vadd.f32 %v3253, %v4010
      %v4012 = vpop.f32.mrb[0].mxu0
      %v4013 = vadd.f32 %v3257, %v4012
      %v4014 = vpop.f32.mrb[0].mxu0
      %v4015 = vadd.f32 %v3253, %v4014
      %v4016 = vpop.f32.mrb[0].mxu0
      %v4017 = vadd.f32 %v3257, %v4016
      %4018 = vmatprep.mubr.bf16.mxu0 %v3091
      %4019 = vmatmul.mubr.bf16.gmra.mrb[0].mxu0 %v3090
      %v4020 = vpop.f32.mrb[0].mxu0
      %v4021 = vadd.f32 %v3253, %v4020
      %v4022 = vpop.f32.mrb[0].mxu0
      %v4023 = vadd.f32 %v3257, %v4022
      %v4024 = vpop.f32.mrb[0].mxu0
      %v4025 = vadd.f32 %v3253, %v4024
      %v4026 = vpop.f32.mrb[0].mxu0
      %v4027 = vadd.f32 %v3257, %v4026
      %4028 = vmatprep.mubr.bf16.mxu0 %v3095
      %4029 = vmatmul.mubr.bf16.gmra.mrb[0].mxu0 %v3094
      %v4030 = vpop.f32.mrb[0].mxu0
      %v4031 = vadd.f32 %v3253, %v4030
      %v4032 = vpop.f32.mrb[0].mxu0
      %v4033 = vadd.f32 %v3257, %v4032
      %v4034 = vpop.f32.mrb[0].mxu0
      %v4035 = vadd.f32 %v3253, %v4034
      %v4036 = vpop.f32.mrb[0].mxu0
      %v4037 = vadd.f32 %v3257, %v4036
      %4038 = vmatprep.mubr.bf16.mxu0 %v3099
      %4039 = vmatmul.mubr.bf16.gmra.mrb[0].mxu0 %v3098
      %v4040 = vpop.f32.mrb[0].mxu0
      %v4041 = vadd.f32 %v3253, %v4040
      %v4042 = vpop.f32.mrb[0].mxu0
      %v4043 = vadd.f32 %v3257, %v4042
      %v4044 = vpop.f32.mrb[0].mxu0
      %v4045 = vadd.f32 %v3253, %v4044
      %v4046 = vpop.f32.mrb[0].mxu0
      %v4047 = vadd.f32 %v3257, %v4046
      %4048 = vmatprep.mubr.bf16.mxu0 %v3103
      %4049 = vmatmul.mubr.bf16.gmra.mrb[0].mxu0 %v3102
      %v4050 = vpop.f32.mrb[0].mxu0
      %v4051 = vadd.f32 %v3253, %v4050
      %v4052 = vpop.f32.mrb[0].mxu0
      %v4053 = vadd.f32 %v3257, %v4052
      %v4054 = vpop.f32.mrb[0].mxu0
      %v4055 = vadd.f32 %v3253, %v4054
      %v4056 = vpop.f32.mrb[0].mxu0
      %v4057 = vadd.f32 %v3257, %v4056
      %4058 = vmatprep.mubr.bf16.mxu0 %v3107
      %4059 = vmatmul.mubr.bf16.gmra.mrb[0].mxu0 %v3106
      %v4060 = vpop.f32.mrb[0].mxu0
      %v4061 = vadd.f32 %v3253, %v4060
      %v4062 = vpop.f32.mrb[0].mxu0
      %v4063 = vadd.f32 %v3257, %v4062
      %v4064 = vpop.f32.mrb[0].mxu0
      %v4065 = vadd.f32 %v3253, %v4064
      %v4066 = vpop.f32.mrb[0].mxu0
      %v4067 = vadd.f32 %v3257, %v4066
      %4068 = vmatprep.mubr.bf16.mxu0 %v3111
      %4069 = vmatmul.mubr.bf16.gmra.mrb[0].mxu0 %v3110
      %v4070 = vpop.f32.mrb[0].mxu0
      %v4071 = vadd.f32 %v3253, %v4070
      %v4072 = vpop.f32.mrb[0].mxu0
      %v4073 = vadd.f32 %v3257, %v4072
      %v4074 = vpop.f32.mrb[0].mxu0
      %v4075 = vadd.f32 %v3253, %v4074
      %v4076 = vpop.f32.mrb[0].mxu0
      %v4077 = vadd.f32 %v3257, %v4076
      %4078 = vmatprep.mubr.bf16.mxu0 %v3115
      %4079 = vmatmul.mubr.bf16.gmra.mrb[0].mxu0 %v3114
      %v4080 = vpop.f32.mrb[0].mxu0
      %v4081 = vadd.f32 %v3253, %v4080
      %v4082 = vpop.f32.mrb[0].mxu0
      %v4083 = vadd.f32 %v3257, %v4082
      %v4084 = vpop.f32.mrb[0].mxu0
      %v4085 = vadd.f32 %v3253, %v4084
      %v4086 = vpop.f32.mrb[0].mxu0
      %v4087 = vadd.f32 %v3257, %v4086
      %4088 = vmatprep.mubr.bf16.mxu0 %v3119
      %4089 = vmatmul.mubr.bf16.gmra.mrb[0].mxu0 %v3118
      %v4090 = vpop.f32.mrb[0].mxu0
      %v4091 = vadd.f32 %v3253, %v4090
      %v4092 = vpop.f32.mrb[0].mxu0
      %v4093 = vadd.f32 %v3257, %v4092
      %v4094 = vpop.f32.mrb[0].mxu0
      %v4095 = vadd.f32 %v3253, %v4094
      %v4096 = vpop.f32.mrb[0].mxu0
      %v4097 = vadd.f32 %v3257, %v4096
      %4098 = vdwg.mxu0
      %4099 = vmatprep.subr.bf16.mxu0 %v3715
      %4100 = vmatpush1.bf16.msra.mxu0 %v3714
      %4101 = vmatprep.subr.bf16.mxu0 %v3719
      %4102 = vmatpush1.bf16.msra.mxu0 %v3718
      %4103 = vmatprep.subr.bf16.mxu0 %v3723
      %4104 = vmatpush1.bf16.msra.mxu0 %v3722
      %4105 = vmatprep.subr.bf16.mxu0 %v3727
      %4106 = vmatpush1.bf16.msra.mxu0 %v3726
      %4107 = vmatprep.subr.bf16.mxu0 %v3731
      %4108 = vmatpush1.bf16.msra.mxu0 %v3730
      %4109 = vmatprep.subr.bf16.mxu0 %v3735
      %4110 = vmatpush1.bf16.msra.mxu0 %v3734
      %4111 = vmatprep.subr.bf16.mxu0 %v3739
      %4112 = vmatpush1.bf16.msra.mxu0 %v3738
      %4113 = vmatprep.subr.bf16.mxu0 %v3743
      %4114 = vmatpush1.bf16.msra.mxu0 %v3742
      %4115 = vmatprep.subr.bf16.mxu0 %v3747
      %4116 = vmatpush1.bf16.msra.mxu0 %v3746
      %4117 = vmatprep.subr.bf16.mxu0 %v3751
      %4118 = vmatpush1.bf16.msra.mxu0 %v3750
      %4119 = vmatprep.subr.bf16.mxu0 %v3755
      %4120 = vmatpush1.bf16.msra.mxu0 %v3754
      %4121 = vmatprep.subr.bf16.mxu0 %v3759
      %4122 = vmatpush1.bf16.msra.mxu0 %v3758
      %4123 = vmatprep.subr.bf16.mxu0 %v3763
      %4124 = vmatpush1.bf16.msra.mxu0 %v3762
      %4125 = vmatprep.subr.bf16.mxu0 %v3767
      %4126 = vmatpush1.bf16.msra.mxu0 %v3766
      %4127 = vmatprep.subr.bf16.mxu0 %v3771
      %4128 = vmatpush1.bf16.msra.mxu0 %v3770
      %4129 = vmatprep.subr.bf16.mxu0 %v3775
      %4130 = vmatpush1.bf16.msra.mxu0 %v3774
      %4131 = vmatprep.mubr.bf16.mxu0 %v3061
      %4132 = vmatmul.mubr.bf16.gmra.mrb[0].mxu0 %v3060
      %v4133 = vpop.f32.mrb[0].mxu0
      %v4134 = vadd.f32 %v3941, %v4133
      %v4135 = vpop.f32.mrb[0].mxu0
      %v4136 = vadd.f32 %v3943, %v4135
      %v4137 = vpop.f32.mrb[0].mxu0
      %v4138 = vadd.f32 %v3945, %v4137
      %v4139 = vpop.f32.mrb[0].mxu0
      %v4140 = vadd.f32 %v3947, %v4139
      %4141 = vmatprep.mubr.bf16.mxu0 %v3065
      %4142 = vmatmul.mubr.bf16.gmra.mrb[0].mxu0 %v3064
      %v4143 = vpop.f32.mrb[0].mxu0
      %v4144 = vadd.f32 %v3951, %v4143
      %v4145 = vpop.f32.mrb[0].mxu0
      %v4146 = vadd.f32 %v3953, %v4145
      %v4147 = vpop.f32.mrb[0].mxu0
      %v4148 = vadd.f32 %v3955, %v4147
      %v4149 = vpop.f32.mrb[0].mxu0
      %v4150 = vadd.f32 %v3957, %v4149
      %4151 = vmatprep.mubr.bf16.mxu0 %v3069
      %4152 = vmatmul.mubr.bf16.gmra.mrb[0].mxu0 %v3068
      %v4153 = vpop.f32.mrb[0].mxu0
      %v4154 = vadd.f32 %v3961, %v4153
      %v4155 = vpop.f32.mrb[0].mxu0
      %v4156 = vadd.f32 %v3963, %v4155
      %v4157 = vpop.f32.mrb[0].mxu0
      %v4158 = vadd.f32 %v3965, %v4157
      %v4159 = vpop.f32.mrb[0].mxu0
      %v4160 = vadd.f32 %v3967, %v4159
      %4161 = vmatprep.mubr.bf16.mxu0 %v3073
      %4162 = vmatmul.mubr.bf16.gmra.mrb[0].mxu0 %v3072
      %v4163 = vpop.f32.mrb[0].mxu0
      %v4164 = vadd.f32 %v3971, %v4163
      %v4165 = vpop.f32.mrb[0].mxu0
      %v4166 = vadd.f32 %v3973, %v4165
      %v4167 = vpop.f32.mrb[0].mxu0
      %v4168 = vadd.f32 %v3975, %v4167
      %v4169 = vpop.f32.mrb[0].mxu0
      %v4170 = vadd.f32 %v3977, %v4169
      %4171 = vmatprep.mubr.bf16.mxu0 %v3077
      %4172 = vmatmul.mubr.bf16.gmra.mrb[0].mxu0 %v3076
      %v4173 = vpop.f32.mrb[0].mxu0
      %v4174 = vadd.f32 %v3981, %v4173
      %v4175 = vpop.f32.mrb[0].mxu0
      %v4176 = vadd.f32 %v3983, %v4175
      %v4177 = vpop.f32.mrb[0].mxu0
      %v4178 = vadd.f32 %v3985, %v4177
      %v4179 = vpop.f32.mrb[0].mxu0
      %v4180 = vadd.f32 %v3987, %v4179
      %4181 = vmatprep.mubr.bf16.mxu0 %v3081
      %4182 = vmatmul.mubr.bf16.gmra.mrb[0].mxu0 %v3080
      %v4183 = vpop.f32.mrb[0].mxu0
      %v4184 = vadd.f32 %v3991, %v4183
      %v4185 = vpop.f32.mrb[0].mxu0
      %v4186 = vadd.f32 %v3993, %v4185
      %v4187 = vpop.f32.mrb[0].mxu0
      %v4188 = vadd.f32 %v3995, %v4187
      %v4189 = vpop.f32.mrb[0].mxu0
      %v4190 = vadd.f32 %v3997, %v4189
      %4191 = vmatprep.mubr.bf16.mxu0 %v3085
      %4192 = vmatmul.mubr.bf16.gmra.mrb[0].mxu0 %v3084
      %v4193 = vpop.f32.mrb[0].mxu0
      %v4194 = vadd.f32 %v4001, %v4193
      %v4195 = vpop.f32.mrb[0].mxu0
      %v4196 = vadd.f32 %v4003, %v4195
      %v4197 = vpop.f32.mrb[0].mxu0
      %v4198 = vadd.f32 %v4005, %v4197
      %v4199 = vpop.f32.mrb[0].mxu0
      %v4200 = vadd.f32 %v4007, %v4199
      %4201 = vmatprep.mubr.bf16.mxu0 %v3089
      %4202 = vmatmul.mubr.bf16.gmra.mrb[0].mxu0 %v3088
      %v4203 = vpop.f32.mrb[0].mxu0
      %v4204 = vadd.f32 %v4011, %v4203
      %v4205 = vpop.f32.mrb[0].mxu0
      %v4206 = vadd.f32 %v4013, %v4205
      %v4207 = vpop.f32.mrb[0].mxu0
      %v4208 = vadd.f32 %v4015, %v4207
      %v4209 = vpop.f32.mrb[0].mxu0
      %v4210 = vadd.f32 %v4017, %v4209
      %4211 = vmatprep.mubr.bf16.mxu0 %v3093
      %4212 = vmatmul.mubr.bf16.gmra.mrb[0].mxu0 %v3092
      %v4213 = vpop.f32.mrb[0].mxu0
      %v4214 = vadd.f32 %v4021, %v4213
      %v4215 = vpop.f32.mrb[0].mxu0
      %v4216 = vadd.f32 %v4023, %v4215
      %v4217 = vpop.f32.mrb[0].mxu0
      %v4218 = vadd.f32 %v4025, %v4217
      %v4219 = vpop.f32.mrb[0].mxu0
      %v4220 = vadd.f32 %v4027, %v4219
      %4221 = vmatprep.mubr.bf16.mxu0 %v3097
      %4222 = vmatmul.mubr.bf16.gmra.mrb[0].mxu0 %v3096
      %v4223 = vpop.f32.mrb[0].mxu0
      %v4224 = vadd.f32 %v4031, %v4223
      %v4225 = vpop.f32.mrb[0].mxu0
      %v4226 = vadd.f32 %v4033, %v4225
      %v4227 = vpop.f32.mrb[0].mxu0
      %v4228 = vadd.f32 %v4035, %v4227
      %v4229 = vpop.f32.mrb[0].mxu0
      %v4230 = vadd.f32 %v4037, %v4229
      %4231 = vmatprep.mubr.bf16.mxu0 %v3101
      %4232 = vmatmul.mubr.bf16.gmra.mrb[0].mxu0 %v3100
      %v4233 = vpop.f32.mrb[0].mxu0
      %v4234 = vadd.f32 %v4041, %v4233
      %v4235 = vpop.f32.mrb[0].mxu0
      %v4236 = vadd.f32 %v4043, %v4235
      %v4237 = vpop.f32.mrb[0].mxu0
      %v4238 = vadd.f32 %v4045, %v4237
      %v4239 = vpop.f32.mrb[0].mxu0
      %v4240 = vadd.f32 %v4047, %v4239
      %4241 = vmatprep.mubr.bf16.mxu0 %v3105
      %4242 = vmatmul.mubr.bf16.gmra.mrb[0].mxu0 %v3104
      %v4243 = vpop.f32.mrb[0].mxu0
      %v4244 = vadd.f32 %v4051, %v4243
      %v4245 = vpop.f32.mrb[0].mxu0
      %v4246 = vadd.f32 %v4053, %v4245
      %v4247 = vpop.f32.mrb[0].mxu0
      %v4248 = vadd.f32 %v4055, %v4247
      %v4249 = vpop.f32.mrb[0].mxu0
      %v4250 = vadd.f32 %v4057, %v4249
      %4251 = vmatprep.mubr.bf16.mxu0 %v3109
      %4252 = vmatmul.mubr.bf16.gmra.mrb[0].mxu0 %v3108
      %v4253 = vpop.f32.mrb[0].mxu0
      %v4254 = vadd.f32 %v4061, %v4253
      %v4255 = vpop.f32.mrb[0].mxu0
      %v4256 = vadd.f32 %v4063, %v4255
      %v4257 = vpop.f32.mrb[0].mxu0
      %v4258 = vadd.f32 %v4065, %v4257
      %v4259 = vpop.f32.mrb[0].mxu0
      %v4260 = vadd.f32 %v4067, %v4259
      %4261 = vmatprep.mubr.bf16.mxu0 %v3113
      %4262 = vmatmul.mubr.bf16.gmra.mrb[0].mxu0 %v3112
      %v4263 = vpop.f32.mrb[0].mxu0
      %v4264 = vadd.f32 %v4071, %v4263
      %v4265 = vpop.f32.mrb[0].mxu0
      %v4266 = vadd.f32 %v4073, %v4265
      %v4267 = vpop.f32.mrb[0].mxu0
      %v4268 = vadd.f32 %v4075, %v4267
      %v4269 = vpop.f32.mrb[0].mxu0
      %v4270 = vadd.f32 %v4077, %v4269
      %4271 = vmatprep.mubr.bf16.mxu0 %v3117
      %4272 = vmatmul.mubr.bf16.gmra.mrb[0].mxu0 %v3116
      %v4273 = vpop.f32.mrb[0].mxu0
      %v4274 = vadd.f32 %v4081, %v4273
      %v4275 = vpop.f32.mrb[0].mxu0
      %v4276 = vadd.f32 %v4083, %v4275
      %v4277 = vpop.f32.mrb[0].mxu0
      %v4278 = vadd.f32 %v4085, %v4277
      %v4279 = vpop.f32.mrb[0].mxu0
      %v4280 = vadd.f32 %v4087, %v4279
      %4281 = vmatprep.mubr.bf16.mxu0 %v3121
      %4282 = vmatmul.mubr.bf16.gmra.mrb[0].mxu0 %v3120
      %v4283 = vpop.f32.mrb[0].mxu0
      %v4284 = vadd.f32 %v4091, %v4283
      %v4285 = vpop.f32.mrb[0].mxu0
      %v4286 = vadd.f32 %v4093, %v4285
      %v4287 = vpop.f32.mrb[0].mxu0
      %v4288 = vadd.f32 %v4095, %v4287
      %v4289 = vpop.f32.mrb[0].mxu0
      %v4290 = vadd.f32 %v4097, %v4289
      %4291 = vdwg.mxu0
      %4292 = vmatprep.subr.bf16.mxu0 %v3653
      %4293 = vmatpush1.bf16.msra.mxu0 %v3652
      %4294 = vmatprep.subr.bf16.mxu0 %v3657
      %4295 = vmatpush1.bf16.msra.mxu0 %v3656
      %4296 = vmatprep.subr.bf16.mxu0 %v3661
      %4297 = vmatpush1.bf16.msra.mxu0 %v3660
      %4298 = vmatprep.subr.bf16.mxu0 %v3665
      %4299 = vmatpush1.bf16.msra.mxu0 %v3664
      %4300 = vmatprep.subr.bf16.mxu0 %v3669
      %4301 = vmatpush1.bf16.msra.mxu0 %v3668
      %4302 = vmatprep.subr.bf16.mxu0 %v3673
      %4303 = vmatpush1.bf16.msra.mxu0 %v3672
      %4304 = vmatprep.subr.bf16.mxu0 %v3677
      %4305 = vmatpush1.bf16.msra.mxu0 %v3676
      %4306 = vmatprep.subr.bf16.mxu0 %v3681
      %4307 = vmatpush1.bf16.msra.mxu0 %v3680
      %4308 = vmatprep.subr.bf16.mxu0 %v3685
      %4309 = vmatpush1.bf16.msra.mxu0 %v3684
      %4310 = vmatprep.subr.bf16.mxu0 %v3689
      %4311 = vmatpush1.bf16.msra.mxu0 %v3688
      %4312 = vmatprep.subr.bf16.mxu0 %v3693
      %4313 = vmatpush1.bf16.msra.mxu0 %v3692
      %4314 = vmatprep.subr.bf16.mxu0 %v3697
      %4315 = vmatpush1.bf16.msra.mxu0 %v3696
      %4316 = vmatprep.subr.bf16.mxu0 %v3701
      %4317 = vmatpush1.bf16.msra.mxu0 %v3700
      %4318 = vmatprep.subr.bf16.mxu0 %v3705
      %4319 = vmatpush1.bf16.msra.mxu0 %v3704
      %4320 = vmatprep.subr.bf16.mxu0 %v3709
      %4321 = vmatpush1.bf16.msra.mxu0 %v3708
      %4322 = vmatprep.subr.bf16.mxu0 %v3713
      %4323 = vmatpush1.bf16.msra.mxu0 %v3712
      %4324 = vmatprep.mubr.bf16.mxu0 %v3059
      %4325 = vmatmul.mubr.bf16.gmra.mrb[0].mxu0 %v3058
      %v4326 = vpop.f32.mrb[0].mxu0
      %v4327 = vadd.f32 %v3261, %v4326
      %v4328 = vpop.f32.mrb[0].mxu0
      %v4329 = vadd.f32 %v3265, %v4328
      %v4330 = vpop.f32.mrb[0].mxu0
      %v4331 = vadd.f32 %v3261, %v4330
      %v4332 = vpop.f32.mrb[0].mxu0
      %v4333 = vadd.f32 %v3265, %v4332
      %4334 = vmatprep.mubr.bf16.mxu0 %v3063
      %4335 = vmatmul.mubr.bf16.gmra.mrb[0].mxu0 %v3062
      %v4336 = vpop.f32.mrb[0].mxu0
      %v4337 = vadd.f32 %v3261, %v4336
      %v4338 = vpop.f32.mrb[0].mxu0
      %v4339 = vadd.f32 %v3265, %v4338
      %v4340 = vpop.f32.mrb[0].mxu0
      %v4341 = vadd.f32 %v3261, %v4340
      %v4342 = vpop.f32.mrb[0].mxu0
      %v4343 = vadd.f32 %v3265, %v4342
      %4344 = vmatprep.mubr.bf16.mxu0 %v3067
      %4345 = vmatmul.mubr.bf16.gmra.mrb[0].mxu0 %v3066
      %v4346 = vpop.f32.mrb[0].mxu0
      %v4347 = vadd.f32 %v3261, %v4346
      %v4348 = vpop.f32.mrb[0].mxu0
      %v4349 = vadd.f32 %v3265, %v4348
      %v4350 = vpop.f32.mrb[0].mxu0
      %v4351 = vadd.f32 %v3261, %v4350
      %v4352 = vpop.f32.mrb[0].mxu0
      %v4353 = vadd.f32 %v3265, %v4352
      %4354 = vmatprep.mubr.bf16.mxu0 %v3071
      %4355 = vmatmul.mubr.bf16.gmra.mrb[0].mxu0 %v3070
      %v4356 = vpop.f32.mrb[0].mxu0
      %v4357 = vadd.f32 %v3261, %v4356
      %v4358 = vpop.f32.mrb[0].mxu0
      %v4359 = vadd.f32 %v3265, %v4358
      %v4360 = vpop.f32.mrb[0].mxu0
      %v4361 = vadd.f32 %v3261, %v4360
      %v4362 = vpop.f32.mrb[0].mxu0
      %v4363 = vadd.f32 %v3265, %v4362
      %4364 = vmatprep.mubr.bf16.mxu0 %v3075
      %4365 = vmatmul.mubr.bf16.gmra.mrb[0].mxu0 %v3074
      %v4366 = vpop.f32.mrb[0].mxu0
      %v4367 = vadd.f32 %v3261, %v4366
      %v4368 = vpop.f32.mrb[0].mxu0
      %v4369 = vadd.f32 %v3265, %v4368
      %v4370 = vpop.f32.mrb[0].mxu0
      %v4371 = vadd.f32 %v3261, %v4370
      %v4372 = vpop.f32.mrb[0].mxu0
      %v4373 = vadd.f32 %v3265, %v4372
      %4374 = vmatprep.mubr.bf16.mxu0 %v3079
      %4375 = vmatmul.mubr.bf16.gmra.mrb[0].mxu0 %v3078
      %v4376 = vpop.f32.mrb[0].mxu0
      %v4377 = vadd.f32 %v3261, %v4376
      %v4378 = vpop.f32.mrb[0].mxu0
      %v4379 = vadd.f32 %v3265, %v4378
      %v4380 = vpop.f32.mrb[0].mxu0
      %v4381 = vadd.f32 %v3261, %v4380
      %v4382 = vpop.f32.mrb[0].mxu0
      %v4383 = vadd.f32 %v3265, %v4382
      %4384 = vmatprep.mubr.bf16.mxu0 %v3083
      %4385 = vmatmul.mubr.bf16.gmra.mrb[0].mxu0 %v3082
      %v4386 = vpop.f32.mrb[0].mxu0
      %v4387 = vadd.f32 %v3261, %v4386
      %v4388 = vpop.f32.mrb[0].mxu0
      %v4389 = vadd.f32 %v3265, %v4388
      %v4390 = vpop.f32.mrb[0].mxu0
      %v4391 = vadd.f32 %v3261, %v4390
      %v4392 = vpop.f32.mrb[0].mxu0
      %v4393 = vadd.f32 %v3265, %v4392
      %4394 = vmatprep.mubr.bf16.mxu0 %v3087
      %4395 = vmatmul.mubr.bf16.gmra.mrb[0].mxu0 %v3086
      %v4396 = vpop.f32.mrb[0].mxu0
      %v4397 = vadd.f32 %v3261, %v4396
      %v4398 = vpop.f32.mrb[0].mxu0
      %v4399 = vadd.f32 %v3265, %v4398
      %v4400 = vpop.f32.mrb[0].mxu0
      %v4401 = vadd.f32 %v3261, %v4400
      %v4402 = vpop.f32.mrb[0].mxu0
      %v4403 = vadd.f32 %v3265, %v4402
      %4404 = vmatprep.mubr.bf16.mxu0 %v3091
      %4405 = vmatmul.mubr.bf16.gmra.mrb[0].mxu0 %v3090
      %v4406 = vpop.f32.mrb[0].mxu0
      %v4407 = vadd.f32 %v3261, %v4406
      %v4408 = vpop.f32.mrb[0].mxu0
      %v4409 = vadd.f32 %v3265, %v4408
      %v4410 = vpop.f32.mrb[0].mxu0
      %v4411 = vadd.f32 %v3261, %v4410
      %v4412 = vpop.f32.mrb[0].mxu0
      %v4413 = vadd.f32 %v3265, %v4412
      %4414 = vmatprep.mubr.bf16.mxu0 %v3095
      %4415 = vmatmul.mubr.bf16.gmra.mrb[0].mxu0 %v3094
      %v4416 = vpop.f32.mrb[0].mxu0
      %v4417 = vadd.f32 %v3261, %v4416
      %v4418 = vpop.f32.mrb[0].mxu0
      %v4419 = vadd.f32 %v3265, %v4418
      %v4420 = vpop.f32.mrb[0].mxu0
      %v4421 = vadd.f32 %v3261, %v4420
      %v4422 = vpop.f32.mrb[0].mxu0
      %v4423 = vadd.f32 %v3265, %v4422
      %4424 = vmatprep.mubr.bf16.mxu0 %v3099
      %4425 = vmatmul.mubr.bf16.gmra.mrb[0].mxu0 %v3098
      %v4426 = vpop.f32.mrb[0].mxu0
      %v4427 = vadd.f32 %v3261, %v4426
      %v4428 = vpop.f32.mrb[0].mxu0
      %v4429 = vadd.f32 %v3265, %v4428
      %v4430 = vpop.f32.mrb[0].mxu0
      %v4431 = vadd.f32 %v3261, %v4430
      %v4432 = vpop.f32.mrb[0].mxu0
      %v4433 = vadd.f32 %v3265, %v4432
      %4434 = vmatprep.mubr.bf16.mxu0 %v3103
      %4435 = vmatmul.mubr.bf16.gmra.mrb[0].mxu0 %v3102
      %v4436 = vpop.f32.mrb[0].mxu0
      %v4437 = vadd.f32 %v3261, %v4436
      %v4438 = vpop.f32.mrb[0].mxu0
      %v4439 = vadd.f32 %v3265, %v4438
      %v4440 = vpop.f32.mrb[0].mxu0
      %v4441 = vadd.f32 %v3261, %v4440
      %v4442 = vpop.f32.mrb[0].mxu0
      %v4443 = vadd.f32 %v3265, %v4442
      %4444 = vmatprep.mubr.bf16.mxu0 %v3107
      %4445 = vmatmul.mubr.bf16.gmra.mrb[0].mxu0 %v3106
      %v4446 = vpop.f32.mrb[0].mxu0
      %v4447 = vadd.f32 %v3261, %v4446
      %v4448 = vpop.f32.mrb[0].mxu0
      %v4449 = vadd.f32 %v3265, %v4448
      %v4450 = vpop.f32.mrb[0].mxu0
      %v4451 = vadd.f32 %v3261, %v4450
      %v4452 = vpop.f32.mrb[0].mxu0
      %v4453 = vadd.f32 %v3265, %v4452
      %4454 = vmatprep.mubr.bf16.mxu0 %v3111
      %4455 = vmatmul.mubr.bf16.gmra.mrb[0].mxu0 %v3110
      %v4456 = vpop.f32.mrb[0].mxu0
      %v4457 = vadd.f32 %v3261, %v4456
      %v4458 = vpop.f32.mrb[0].mxu0
      %v4459 = vadd.f32 %v3265, %v4458
      %v4460 = vpop.f32.mrb[0].mxu0
      %v4461 = vadd.f32 %v3261, %v4460
      %v4462 = vpop.f32.mrb[0].mxu0
      %v4463 = vadd.f32 %v3265, %v4462
      %4464 = vmatprep.mubr.bf16.mxu0 %v3115
      %4465 = vmatmul.mubr.bf16.gmra.mrb[0].mxu0 %v3114
      %v4466 = vpop.f32.mrb[0].mxu0
      %v4467 = vadd.f32 %v3261, %v4466
      %v4468 = vpop.f32.mrb[0].mxu0
      %v4469 = vadd.f32 %v3265, %v4468
      %v4470 = vpop.f32.mrb[0].mxu0
      %v4471 = vadd.f32 %v3261, %v4470
      %v4472 = vpop.f32.mrb[0].mxu0
      %v4473 = vadd.f32 %v3265, %v4472
      %4474 = vmatprep.mubr.bf16.mxu0 %v3119
      %4475 = vmatmul.mubr.bf16.gmra.mrb[0].mxu0 %v3118
      %v4476 = vpop.f32.mrb[0].mxu0
      %v4477 = vadd.f32 %v3261, %v4476
      %v4478 = vpop.f32.mrb[0].mxu0
      %v4479 = vadd.f32 %v3265, %v4478
      %v4480 = vpop.f32.mrb[0].mxu0
      %v4481 = vadd.f32 %v3261, %v4480
      %v4482 = vpop.f32.mrb[0].mxu0
      %v4483 = vadd.f32 %v3265, %v4482
      %4484 = vdwg.mxu0
      %4485 = vmatprep.subr.bf16.mxu0 %v3717
      %4486 = vmatpush1.bf16.msra.mxu0 %v3716
      %4487 = vmatprep.subr.bf16.mxu0 %v3721
      %4488 = vmatpush1.bf16.msra.mxu0 %v3720
      %4489 = vmatprep.subr.bf16.mxu0 %v3725
      %4490 = vmatpush1.bf16.msra.mxu0 %v3724
      %4491 = vmatprep.subr.bf16.mxu0 %v3729
      %4492 = vmatpush1.bf16.msra.mxu0 %v3728
      %4493 = vmatprep.subr.bf16.mxu0 %v3733
      %4494 = vmatpush1.bf16.msra.mxu0 %v3732
      %4495 = vmatprep.subr.bf16.mxu0 %v3737
      %4496 = vmatpush1.bf16.msra.mxu0 %v3736
      %4497 = vmatprep.subr.bf16.mxu0 %v3741
      %4498 = vmatpush1.bf16.msra.mxu0 %v3740
      %4499 = vmatprep.subr.bf16.mxu0 %v3745
      %4500 = vmatpush1.bf16.msra.mxu0 %v3744
      %4501 = vmatprep.subr.bf16.mxu0 %v3749
      %4502 = vmatpush1.bf16.msra.mxu0 %v3748
      %4503 = vmatprep.subr.bf16.mxu0 %v3753
      %4504 = vmatpush1.bf16.msra.mxu0 %v3752
      %4505 = vmatprep.subr.bf16.mxu0 %v3757
      %4506 = vmatpush1.bf16.msra.mxu0 %v3756
      %4507 = vmatprep.subr.bf16.mxu0 %v3761
      %4508 = vmatpush1.bf16.msra.mxu0 %v3760
      %4509 = vmatprep.subr.bf16.mxu0 %v3765
      %4510 = vmatpush1.bf16.msra.mxu0 %v3764
      %4511 = vmatprep.subr.bf16.mxu0 %v3769
      %4512 = vmatpush1.bf16.msra.mxu0 %v3768
      %4513 = vmatprep.subr.bf16.mxu0 %v3773
      %4514 = vmatpush1.bf16.msra.mxu0 %v3772
      %4515 = vmatprep.subr.bf16.mxu0 %v3777
      %4516 = vmatpush1.bf16.msra.mxu0 %v3776
      %4517 = vmatprep.mubr.bf16.mxu0 %v3061
      %4518 = vmatmul.mubr.bf16.gmra.mrb[0].mxu0 %v3060
      %v4519 = vpop.f32.mrb[0].mxu0
      %v4520 = vadd.f32 %v4327, %v4519
      %v4521 = vpop.f32.mrb[0].mxu0
      %v4522 = vadd.f32 %v4329, %v4521
      %v4523 = vpop.f32.mrb[0].mxu0
      %v4524 = vadd.f32 %v4331, %v4523
      %v4525 = vpop.f32.mrb[0].mxu0
      %v4526 = vadd.f32 %v4333, %v4525
      %4527 = vmatprep.mubr.bf16.mxu0 %v3065
      %4528 = vmatmul.mubr.bf16.gmra.mrb[0].mxu0 %v3064
      %v4529 = vpop.f32.mrb[0].mxu0
      %v4530 = vadd.f32 %v4337, %v4529
      %v4531 = vpop.f32.mrb[0].mxu0
      %v4532 = vadd.f32 %v4339, %v4531
      %v4533 = vpop.f32.mrb[0].mxu0
      %v4534 = vadd.f32 %v4341, %v4533
      %v4535 = vpop.f32.mrb[0].mxu0
      %v4536 = vadd.f32 %v4343, %v4535
      %4537 = vmatprep.mubr.bf16.mxu0 %v3069
      %4538 = vmatmul.mubr.bf16.gmra.mrb[0].mxu0 %v3068
      %v4539 = vpop.f32.mrb[0].mxu0
      %v4540 = vadd.f32 %v4347, %v4539
      %v4541 = vpop.f32.mrb[0].mxu0
      %v4542 = vadd.f32 %v4349, %v4541
      %v4543 = vpop.f32.mrb[0].mxu0
      %v4544 = vadd.f32 %v4351, %v4543
      %v4545 = vpop.f32.mrb[0].mxu0
      %v4546 = vadd.f32 %v4353, %v4545
      %4547 = vmatprep.mubr.bf16.mxu0 %v3073
      %4548 = vmatmul.mubr.bf16.gmra.mrb[0].mxu0 %v3072
      %v4549 = vpop.f32.mrb[0].mxu0
      %v4550 = vadd.f32 %v4357, %v4549
      %v4551 = vpop.f32.mrb[0].mxu0
      %v4552 = vadd.f32 %v4359, %v4551
      %v4553 = vpop.f32.mrb[0].mxu0
      %v4554 = vadd.f32 %v4361, %v4553
      %v4555 = vpop.f32.mrb[0].mxu0
      %v4556 = vadd.f32 %v4363, %v4555
      %4557 = vmatprep.mubr.bf16.mxu0 %v3077
      %4558 = vmatmul.mubr.bf16.gmra.mrb[0].mxu0 %v3076
      %v4559 = vpop.f32.mrb[0].mxu0
      %v4560 = vadd.f32 %v4367, %v4559
      %v4561 = vpop.f32.mrb[0].mxu0
      %v4562 = vadd.f32 %v4369, %v4561
      %v4563 = vpop.f32.mrb[0].mxu0
      %v4564 = vadd.f32 %v4371, %v4563
      %v4565 = vpop.f32.mrb[0].mxu0
      %v4566 = vadd.f32 %v4373, %v4565
      %4567 = vmatprep.mubr.bf16.mxu0 %v3081
      %4568 = vmatmul.mubr.bf16.gmra.mrb[0].mxu0 %v3080
      %v4569 = vpop.f32.mrb[0].mxu0
      %v4570 = vadd.f32 %v4377, %v4569
      %v4571 = vpop.f32.mrb[0].mxu0
      %v4572 = vadd.f32 %v4379, %v4571
      %v4573 = vpop.f32.mrb[0].mxu0
      %v4574 = vadd.f32 %v4381, %v4573
      %v4575 = vpop.f32.mrb[0].mxu0
      %v4576 = vadd.f32 %v4383, %v4575
      %4577 = vmatprep.mubr.bf16.mxu0 %v3085
      %4578 = vmatmul.mubr.bf16.gmra.mrb[0].mxu0 %v3084
      %v4579 = vpop.f32.mrb[0].mxu0
      %v4580 = vadd.f32 %v4387, %v4579
      %v4581 = vpop.f32.mrb[0].mxu0
      %v4582 = vadd.f32 %v4389, %v4581
      %v4583 = vpop.f32.mrb[0].mxu0
      %v4584 = vadd.f32 %v4391, %v4583
      %v4585 = vpop.f32.mrb[0].mxu0
      %v4586 = vadd.f32 %v4393, %v4585
      %4587 = vmatprep.mubr.bf16.mxu0 %v3089
      %4588 = vmatmul.mubr.bf16.gmra.mrb[0].mxu0 %v3088
      %v4589 = vpop.f32.mrb[0].mxu0
      %v4590 = vadd.f32 %v4397, %v4589
      %v4591 = vpop.f32.mrb[0].mxu0
      %v4592 = vadd.f32 %v4399, %v4591
      %v4593 = vpop.f32.mrb[0].mxu0
      %v4594 = vadd.f32 %v4401, %v4593
      %v4595 = vpop.f32.mrb[0].mxu0
      %v4596 = vadd.f32 %v4403, %v4595
      %4597 = vmatprep.mubr.bf16.mxu0 %v3093
      %4598 = vmatmul.mubr.bf16.gmra.mrb[0].mxu0 %v3092
      %v4599 = vpop.f32.mrb[0].mxu0
      %v4600 = vadd.f32 %v4407, %v4599
      %v4601 = vpop.f32.mrb[0].mxu0
      %v4602 = vadd.f32 %v4409, %v4601
      %v4603 = vpop.f32.mrb[0].mxu0
      %v4604 = vadd.f32 %v4411, %v4603
      %v4605 = vpop.f32.mrb[0].mxu0
      %v4606 = vadd.f32 %v4413, %v4605
      %4607 = vmatprep.mubr.bf16.mxu0 %v3097
      %4608 = vmatmul.mubr.bf16.gmra.mrb[0].mxu0 %v3096
      %v4609 = vpop.f32.mrb[0].mxu0
      %v4610 = vadd.f32 %v4417, %v4609
      %v4611 = vpop.f32.mrb[0].mxu0
      %v4612 = vadd.f32 %v4419, %v4611
      %v4613 = vpop.f32.mrb[0].mxu0
      %v4614 = vadd.f32 %v4421, %v4613
      %v4615 = vpop.f32.mrb[0].mxu0
      %v4616 = vadd.f32 %v4423, %v4615
      %4617 = vmatprep.mubr.bf16.mxu0 %v3101
      %4618 = vmatmul.mubr.bf16.gmra.mrb[0].mxu0 %v3100
      %v4619 = vpop.f32.mrb[0].mxu0
      %v4620 = vadd.f32 %v4427, %v4619
      %v4621 = vpop.f32.mrb[0].mxu0
      %v4622 = vadd.f32 %v4429, %v4621
      %v4623 = vpop.f32.mrb[0].mxu0
      %v4624 = vadd.f32 %v4431, %v4623
      %v4625 = vpop.f32.mrb[0].mxu0
      %v4626 = vadd.f32 %v4433, %v4625
      %4627 = vmatprep.mubr.bf16.mxu0 %v3105
      %4628 = vmatmul.mubr.bf16.gmra.mrb[0].mxu0 %v3104
      %v4629 = vpop.f32.mrb[0].mxu0
      %v4630 = vadd.f32 %v4437, %v4629
      %v4631 = vpop.f32.mrb[0].mxu0
      %v4632 = vadd.f32 %v4439, %v4631
      %v4633 = vpop.f32.mrb[0].mxu0
      %v4634 = vadd.f32 %v4441, %v4633
      %v4635 = vpop.f32.mrb[0].mxu0
      %v4636 = vadd.f32 %v4443, %v4635
      %4637 = vmatprep.mubr.bf16.mxu0 %v3109
      %4638 = vmatmul.mubr.bf16.gmra.mrb[0].mxu0 %v3108
      %v4639 = vpop.f32.mrb[0].mxu0
      %v4640 = vadd.f32 %v4447, %v4639
      %v4641 = vpop.f32.mrb[0].mxu0
      %v4642 = vadd.f32 %v4449, %v4641
      %v4643 = vpop.f32.mrb[0].mxu0
      %v4644 = vadd.f32 %v4451, %v4643
      %v4645 = vpop.f32.mrb[0].mxu0
      %v4646 = vadd.f32 %v4453, %v4645
      %4647 = vmatprep.mubr.bf16.mxu0 %v3113
      %4648 = vmatmul.mubr.bf16.gmra.mrb[0].mxu0 %v3112
      %v4649 = vpop.f32.mrb[0].mxu0
      %v4650 = vadd.f32 %v4457, %v4649
      %v4651 = vpop.f32.mrb[0].mxu0
      %v4652 = vadd.f32 %v4459, %v4651
      %v4653 = vpop.f32.mrb[0].mxu0
      %v4654 = vadd.f32 %v4461, %v4653
      %v4655 = vpop.f32.mrb[0].mxu0
      %v4656 = vadd.f32 %v4463, %v4655
      %4657 = vmatprep.mubr.bf16.mxu0 %v3117
      %4658 = vmatmul.mubr.bf16.gmra.mrb[0].mxu0 %v3116
      %v4659 = vpop.f32.mrb[0].mxu0
      %v4660 = vadd.f32 %v4467, %v4659
      %v4661 = vpop.f32.mrb[0].mxu0
      %v4662 = vadd.f32 %v4469, %v4661
      %v4663 = vpop.f32.mrb[0].mxu0
      %v4664 = vadd.f32 %v4471, %v4663
      %v4665 = vpop.f32.mrb[0].mxu0
      %v4666 = vadd.f32 %v4473, %v4665
      %4667 = vmatprep.mubr.bf16.mxu0 %v3121
      %4668 = vmatmul.mubr.bf16.gmra.mrb[0].mxu0 %v3120
      %v4669 = vpop.f32.mrb[0].mxu0
      %v4670 = vadd.f32 %v4477, %v4669
      %v4671 = vpop.f32.mrb[0].mxu0
      %v4672 = vadd.f32 %v4479, %v4671
      %v4673 = vpop.f32.mrb[0].mxu0
      %v4674 = vadd.f32 %v4481, %v4673
      %v4675 = vpop.f32.mrb[0].mxu0
      %v4676 = vadd.f32 %v4483, %v4675
      %4677 = vdwg.mxu0
      %v4678 = vmax.f32 %v4134, 0.0
      %v4679 = vmax.f32 %v4136, 0.0
      %v4680 = vmax.f32 %v4520, 0.0
      %v4681 = vmax.f32 %v4522, 0.0
      %v4682 = vmax.f32 %v4138, 0.0
      %v4683 = vmax.f32 %v4140, 0.0
      %v4684 = vmax.f32 %v4524, 0.0
      %v4685 = vmax.f32 %v4526, 0.0
      %v4686 = vmax.f32 %v4144, 0.0
      %v4687 = vmax.f32 %v4146, 0.0
      %v4688 = vmax.f32 %v4530, 0.0
      %v4689 = vmax.f32 %v4532, 0.0
      %v4690 = vmax.f32 %v4148, 0.0
      %v4691 = vmax.f32 %v4150, 0.0
      %v4692 = vmax.f32 %v4534, 0.0
      %v4693 = vmax.f32 %v4536, 0.0
      %v4694 = vmax.f32 %v4154, 0.0
      %v4695 = vmax.f32 %v4156, 0.0
      %v4696 = vmax.f32 %v4540, 0.0
      %v4697 = vmax.f32 %v4542, 0.0
      %v4698 = vmax.f32 %v4158, 0.0
      %v4699 = vmax.f32 %v4160, 0.0
      %v4700 = vmax.f32 %v4544, 0.0
      %v4701 = vmax.f32 %v4546, 0.0
      %v4702 = vmax.f32 %v4164, 0.0
      %v4703 = vmax.f32 %v4166, 0.0
      %v4704 = vmax.f32 %v4550, 0.0
      %v4705 = vmax.f32 %v4552, 0.0
      %v4706 = vmax.f32 %v4168, 0.0
      %v4707 = vmax.f32 %v4170, 0.0
      %v4708 = vmax.f32 %v4554, 0.0
      %v4709 = vmax.f32 %v4556, 0.0
      %v4710 = vmax.f32 %v4174, 0.0
      %v4711 = vmax.f32 %v4176, 0.0
      %v4712 = vmax.f32 %v4560, 0.0
      %v4713 = vmax.f32 %v4562, 0.0
      %v4714 = vmax.f32 %v4178, 0.0
      %v4715 = vmax.f32 %v4180, 0.0
      %v4716 = vmax.f32 %v4564, 0.0
      %v4717 = vmax.f32 %v4566, 0.0
      %v4718 = vmax.f32 %v4184, 0.0
      %v4719 = vmax.f32 %v4186, 0.0
      %v4720 = vmax.f32 %v4570, 0.0
      %v4721 = vmax.f32 %v4572, 0.0
      %v4722 = vmax.f32 %v4188, 0.0
      %v4723 = vmax.f32 %v4190, 0.0
      %v4724 = vmax.f32 %v4574, 0.0
      %v4725 = vmax.f32 %v4576, 0.0
      %v4726 = vmax.f32 %v4194, 0.0
      %v4727 = vmax.f32 %v4196, 0.0
      %v4728 = vmax.f32 %v4580, 0.0
      %v4729 = vmax.f32 %v4582, 0.0
      %v4730 = vmax.f32 %v4198, 0.0
      %v4731 = vmax.f32 %v4200, 0.0
      %v4732 = vmax.f32 %v4584, 0.0
      %v4733 = vmax.f32 %v4586, 0.0
      %v4734 = vmax.f32 %v4204, 0.0
      %v4735 = vmax.f32 %v4206, 0.0
      %v4736 = vmax.f32 %v4590, 0.0
      %v4737 = vmax.f32 %v4592, 0.0
      %v4738 = vmax.f32 %v4208, 0.0
      %v4739 = vmax.f32 %v4210, 0.0
      %v4740 = vmax.f32 %v4594, 0.0
      %v4741 = vmax.f32 %v4596, 0.0
      %v4742 = vmax.f32 %v4214, 0.0
      %v4743 = vmax.f32 %v4216, 0.0
      %v4744 = vmax.f32 %v4600, 0.0
      %v4745 = vmax.f32 %v4602, 0.0
      %v4746 = vmax.f32 %v4218, 0.0
      %v4747 = vmax.f32 %v4220, 0.0
      %v4748 = vmax.f32 %v4604, 0.0
      %v4749 = vmax.f32 %v4606, 0.0
      %v4750 = vmax.f32 %v4224, 0.0
      %v4751 = vmax.f32 %v4226, 0.0
      %v4752 = vmax.f32 %v4610, 0.0
      %v4753 = vmax.f32 %v4612, 0.0
      %v4754 = vmax.f32 %v4228, 0.0
      %v4755 = vmax.f32 %v4230, 0.0
      %v4756 = vmax.f32 %v4614, 0.0
      %v4757 = vmax.f32 %v4616, 0.0
      %v4758 = vmax.f32 %v4234, 0.0
      %v4759 = vmax.f32 %v4236, 0.0
      %v4760 = vmax.f32 %v4620, 0.0
      %v4761 = vmax.f32 %v4622, 0.0
      %v4762 = vmax.f32 %v4238, 0.0
      %v4763 = vmax.f32 %v4240, 0.0
      %v4764 = vmax.f32 %v4624, 0.0
      %v4765 = vmax.f32 %v4626, 0.0
      %v4766 = vmax.f32 %v4244, 0.0
      %v4767 = vmax.f32 %v4246, 0.0
      %v4768 = vmax.f32 %v4630, 0.0
      %v4769 = vmax.f32 %v4632, 0.0
      %v4770 = vmax.f32 %v4248, 0.0
      %v4771 = vmax.f32 %v4250, 0.0
      %v4772 = vmax.f32 %v4634, 0.0
      %v4773 = vmax.f32 %v4636, 0.0
      %v4774 = vmax.f32 %v4254, 0.0
      %v4775 = vmax.f32 %v4256, 0.0
      %v4776 = vmax.f32 %v4640, 0.0
      %v4777 = vmax.f32 %v4642, 0.0
      %v4778 = vmax.f32 %v4258, 0.0
      %v4779 = vmax.f32 %v4260, 0.0
      %v4780 = vmax.f32 %v4644, 0.0
      %v4781 = vmax.f32 %v4646, 0.0
      %v4782 = vmax.f32 %v4264, 0.0
      %v4783 = vmax.f32 %v4266, 0.0
      %v4784 = vmax.f32 %v4650, 0.0
      %v4785 = vmax.f32 %v4652, 0.0
      %v4786 = vmax.f32 %v4268, 0.0
      %v4787 = vmax.f32 %v4270, 0.0
      %v4788 = vmax.f32 %v4654, 0.0
      %v4789 = vmax.f32 %v4656, 0.0
      %v4790 = vmax.f32 %v4274, 0.0
      %v4791 = vmax.f32 %v4276, 0.0
      %v4792 = vmax.f32 %v4660, 0.0
      %v4793 = vmax.f32 %v4662, 0.0
      %v4794 = vmax.f32 %v4278, 0.0
      %v4795 = vmax.f32 %v4280, 0.0
      %v4796 = vmax.f32 %v4664, 0.0
      %v4797 = vmax.f32 %v4666, 0.0
      %v4798 = vmax.f32 %v4284, 0.0
      %v4799 = vmax.f32 %v4286, 0.0
      %v4800 = vmax.f32 %v4670, 0.0
      %v4801 = vmax.f32 %v4672, 0.0
      %v4802 = vmax.f32 %v4288, 0.0
      %v4803 = vmax.f32 %v4290, 0.0
      %v4804 = vmax.f32 %v4674, 0.0
      %v4805 = vmax.f32 %v4676, 0.0
      %v4806 = vpack.c.bf16 %v4682, %v4678
      %v4807 = vpack.c.bf16 %v4683, %v4679
      %v4808 = vpack.c.bf16 %v4684, %v4680
      %v4809 = vpack.c.bf16 %v4685, %v4681
      %v4810 = vpack.c.bf16 %v4690, %v4686
      %v4811 = vpack.c.bf16 %v4691, %v4687
      %v4812 = vpack.c.bf16 %v4692, %v4688
      %v4813 = vpack.c.bf16 %v4693, %v4689
      %v4814 = vpack.c.bf16 %v4698, %v4694
      %v4815 = vpack.c.bf16 %v4699, %v4695
      %v4816 = vpack.c.bf16 %v4700, %v4696
      %v4817 = vpack.c.bf16 %v4701, %v4697
      %v4818 = vpack.c.bf16 %v4706, %v4702
      %v4819 = vpack.c.bf16 %v4707, %v4703
      %v4820 = vpack.c.bf16 %v4708, %v4704
      %v4821 = vpack.c.bf16 %v4709, %v4705
      %v4822 = vpack.c.bf16 %v4714, %v4710
      %v4823 = vpack.c.bf16 %v4715, %v4711
      %v4824 = vpack.c.bf16 %v4716, %v4712
      %v4825 = vpack.c.bf16 %v4717, %v4713
      %v4826 = vpack.c.bf16 %v4722, %v4718
      %v4827 = vpack.c.bf16 %v4723, %v4719
      %v4828 = vpack.c.bf16 %v4724, %v4720
      %v4829 = vpack.c.bf16 %v4725, %v4721
      %v4830 = vpack.c.bf16 %v4730, %v4726
      %v4831 = vpack.c.bf16 %v4731, %v4727
      %v4832 = vpack.c.bf16 %v4732, %v4728
      %v4833 = vpack.c.bf16 %v4733, %v4729
      %v4834 = vpack.c.bf16 %v4738, %v4734
      %v4835 = vpack.c.bf16 %v4739, %v4735
      %v4836 = vpack.c.bf16 %v4740, %v4736
      %v4837 = vpack.c.bf16 %v4741, %v4737
      %v4838 = vpack.c.bf16 %v4746, %v4742
      %v4839 = vpack.c.bf16 %v4747, %v4743
      %v4840 = vpack.c.bf16 %v4748, %v4744
      %v4841 = vpack.c.bf16 %v4749, %v4745
      %v4842 = vpack.c.bf16 %v4754, %v4750
      %v4843 = vpack.c.bf16 %v4755, %v4751
      %v4844 = vpack.c.bf16 %v4756, %v4752
      %v4845 = vpack.c.bf16 %v4757, %v4753
      %v4846 = vpack.c.bf16 %v4762, %v4758
      %v4847 = vpack.c.bf16 %v4763, %v4759
      %v4848 = vpack.c.bf16 %v4764, %v4760
      %v4849 = vpack.c.bf16 %v4765, %v4761
      %v4850 = vpack.c.bf16 %v4770, %v4766
      %v4851 = vpack.c.bf16 %v4771, %v4767
      %v4852 = vpack.c.bf16 %v4772, %v4768
      %v4853 = vpack.c.bf16 %v4773, %v4769
      %v4854 = vpack.c.bf16 %v4778, %v4774
      %v4855 = vpack.c.bf16 %v4779, %v4775
      %v4856 = vpack.c.bf16 %v4780, %v4776
      %v4857 = vpack.c.bf16 %v4781, %v4777
      %v4858 = vpack.c.bf16 %v4786, %v4782
      %v4859 = vpack.c.bf16 %v4787, %v4783
      %v4860 = vpack.c.bf16 %v4788, %v4784
      %v4861 = vpack.c.bf16 %v4789, %v4785
      %v4862 = vpack.c.bf16 %v4794, %v4790
      %v4863 = vpack.c.bf16 %v4795, %v4791
      %v4864 = vpack.c.bf16 %v4796, %v4792
      %v4865 = vpack.c.bf16 %v4797, %v4793
      %v4866 = vpack.c.bf16 %v4802, %v4798
      %v4867 = vpack.c.bf16 %v4803, %v4799
      %v4868 = vpack.c.bf16 %v4804, %v4800
      %v4869 = vpack.c.bf16 %v4805, %v4801
      %v4870 = vld [vmem:[%s4] sm:$0xf]
      %v4871 = vld [vmem:[%s4 + $0x4] sm:$0xf]
      %v4872 = vld [vmem:[%s4 + $0x8] sm:$0xf]
      %v4873 = vld [vmem:[%s4 + $0xc] sm:$0xf]
      %v4874 = vld [vmem:[%s4 + $0x10] sm:$0xf]
      %v4875 = vld [vmem:[%s4 + $0x14] sm:$0xf]
      %v4876 = vld [vmem:[%s4 + $0x18] sm:$0xf]
      %v4877 = vld [vmem:[%s4 + $0x1c] sm:$0xf]
      %v4878 = vld [vmem:[%s4 + $0x20] sm:$0xf]
      %v4879 = vld [vmem:[%s4 + $0x24] sm:$0xf]
      %v4880 = vld [vmem:[%s4 + $0x28] sm:$0xf]
      %v4881 = vld [vmem:[%s4 + $0x2c] sm:$0xf]
      %v4882 = vld [vmem:[%s4 + $0x30] sm:$0xf]
      %v4883 = vld [vmem:[%s4 + $0x34] sm:$0xf]
      %v4884 = vld [vmem:[%s4 + $0x38] sm:$0xf]
      %v4885 = vld [vmem:[%s4 + $0x3c] sm:$0xf]
      %v4886 = vld [vmem:[%s4 + $0x40] sm:$0xf]
      %v4887 = vld [vmem:[%s4 + $0x44] sm:$0xf]
      %v4888 = vld [vmem:[%s4 + $0x48] sm:$0xf]
      %v4889 = vld [vmem:[%s4 + $0x4c] sm:$0xf]
      %v4890 = vld [vmem:[%s4 + $0x50] sm:$0xf]
      %v4891 = vld [vmem:[%s4 + $0x54] sm:$0xf]
      %v4892 = vld [vmem:[%s4 + $0x58] sm:$0xf]
      %v4893 = vld [vmem:[%s4 + $0x5c] sm:$0xf]
      %v4894 = vld [vmem:[%s4 + $0x60] sm:$0xf]
      %v4895 = vld [vmem:[%s4 + $0x64] sm:$0xf]
      %v4896 = vld [vmem:[%s4 + $0x68] sm:$0xf]
      %v4897 = vld [vmem:[%s4 + $0x6c] sm:$0xf]
      %v4898 = vld [vmem:[%s4 + $0x70] sm:$0xf]
      %v4899 = vld [vmem:[%s4 + $0x74] sm:$0xf]
      %v4900 = vld [vmem:[%s4 + $0x78] sm:$0xf]
      %v4901 = vld [vmem:[%s4 + $0x7c] sm:$0xf]
      %v4902 = vld [vmem:[%s4 + $0x80] sm:$0xf]
      %v4903 = vld [vmem:[%s4 + $0x84] sm:$0xf]
      %v4904 = vld [vmem:[%s4 + $0x88] sm:$0xf]
      %v4905 = vld [vmem:[%s4 + $0x8c] sm:$0xf]
      %v4906 = vld [vmem:[%s4 + $0x90] sm:$0xf]
      %v4907 = vld [vmem:[%s4 + $0x94] sm:$0xf]
      %v4908 = vld [vmem:[%s4 + $0x98] sm:$0xf]
      %v4909 = vld [vmem:[%s4 + $0x9c] sm:$0xf]
      %v4910 = vld [vmem:[%s4 + $0xa0] sm:$0xf]
      %v4911 = vld [vmem:[%s4 + $0xa4] sm:$0xf]
      %v4912 = vld [vmem:[%s4 + $0xa8] sm:$0xf]
      %v4913 = vld [vmem:[%s4 + $0xac] sm:$0xf]
      %v4914 = vld [vmem:[%s4 + $0xb0] sm:$0xf]
      %v4915 = vld [vmem:[%s4 + $0xb4] sm:$0xf]
      %v4916 = vld [vmem:[%s4 + $0xb8] sm:$0xf]
      %v4917 = vld [vmem:[%s4 + $0xbc] sm:$0xf]
      %v4918 = vld [vmem:[%s4 + $0xc0] sm:$0xf]
      %v4919 = vld [vmem:[%s4 + $0xc4] sm:$0xf]
      %v4920 = vld [vmem:[%s4 + $0xc8] sm:$0xf]
      %v4921 = vld [vmem:[%s4 + $0xcc] sm:$0xf]
      %v4922 = vld [vmem:[%s4 + $0xd0] sm:$0xf]
      %v4923 = vld [vmem:[%s4 + $0xd4] sm:$0xf]
      %v4924 = vld [vmem:[%s4 + $0xd8] sm:$0xf]
      %v4925 = vld [vmem:[%s4 + $0xdc] sm:$0xf]
      %v4926 = vld [vmem:[%s4 + $0xe0] sm:$0xf]
      %v4927 = vld [vmem:[%s4 + $0xe4] sm:$0xf]
      %v4928 = vld [vmem:[%s4 + $0xe8] sm:$0xf]
      %v4929 = vld [vmem:[%s4 + $0xec] sm:$0xf]
      %v4930 = vld [vmem:[%s4 + $0xf0] sm:$0xf]
      %v4931 = vld [vmem:[%s4 + $0xf4] sm:$0xf]
      %v4932 = vld [vmem:[%s4 + $0xf8] sm:$0xf]
      %v4933 = vld [vmem:[%s4 + $0xfc] sm:$0xf]
      %v4934 = vlaneseq
      %v4935 = vshrl.u32 %v4934, 7
      %v4936 = vsub.s32 3, %v4935
      %v4937 = vrot.slane %v256, %v4936
      %v5002 = vunpack.c.l.b16 %v4870
      %v5003 = vunpack.c.l.b16 %v4871
      %v5004 = vunpack.c.l.b16 %v4872
      %v5005 = vunpack.c.l.b16 %v4873
      %v5006 = vunpack.c.l.b16 %v4874
      %v5007 = vunpack.c.l.b16 %v4875
      %v5008 = vunpack.c.l.b16 %v4876
      %v5009 = vunpack.c.l.b16 %v4877
      %v5010 = vunpack.c.l.b16 %v4878
      %v5011 = vunpack.c.l.b16 %v4879
      %v5012 = vunpack.c.l.b16 %v4880
      %v5013 = vunpack.c.l.b16 %v4881
      %v5014 = vunpack.c.l.b16 %v4882
      %v5015 = vunpack.c.l.b16 %v4883
      %v5016 = vunpack.c.l.b16 %v4884
      %v5017 = vunpack.c.l.b16 %v4885
      %v5018 = vunpack.c.l.b16 %v4886
      %v5019 = vunpack.c.l.b16 %v4887
      %v5020 = vunpack.c.l.b16 %v4888
      %v5021 = vunpack.c.l.b16 %v4889
      %v5022 = vunpack.c.l.b16 %v4890
      %v5023 = vunpack.c.l.b16 %v4891
      %v5024 = vunpack.c.l.b16 %v4892
      %v5025 = vunpack.c.l.b16 %v4893
      %v5026 = vunpack.c.l.b16 %v4894
      %v5027 = vunpack.c.l.b16 %v4895
      %v5028 = vunpack.c.l.b16 %v4896
      %v5029 = vunpack.c.l.b16 %v4897
      %v5030 = vunpack.c.l.b16 %v4898
      %v5031 = vunpack.c.l.b16 %v4899
      %v5032 = vunpack.c.l.b16 %v4900
      %v5033 = vunpack.c.l.b16 %v4901
      %v5034 = vunpack.c.l.b16 %v4902
      %v5035 = vunpack.c.l.b16 %v4903
      %v5036 = vunpack.c.l.b16 %v4904
      %v5037 = vunpack.c.l.b16 %v4905
      %v5038 = vunpack.c.l.b16 %v4906
      %v5039 = vunpack.c.l.b16 %v4907
      %v5040 = vunpack.c.l.b16 %v4908
      %v5041 = vunpack.c.l.b16 %v4909
      %v5042 = vunpack.c.l.b16 %v4910
      %v5043 = vunpack.c.l.b16 %v4911
      %v5044 = vunpack.c.l.b16 %v4912
      %v5045 = vunpack.c.l.b16 %v4913
      %v5046 = vunpack.c.l.b16 %v4914
      %v5047 = vunpack.c.l.b16 %v4915
      %v5048 = vunpack.c.l.b16 %v4916
      %v5049 = vunpack.c.l.b16 %v4917
      %v5050 = vunpack.c.l.b16 %v4918
      %v5051 = vunpack.c.l.b16 %v4919
      %v5052 = vunpack.c.l.b16 %v4920
      %v5053 = vunpack.c.l.b16 %v4921
      %v5054 = vunpack.c.l.b16 %v4922
      %v5055 = vunpack.c.l.b16 %v4923
      %v5056 = vunpack.c.l.b16 %v4924
      %v5057 = vunpack.c.l.b16 %v4925
      %v5058 = vunpack.c.l.b16 %v4926
      %v5059 = vunpack.c.l.b16 %v4927
      %v5060 = vunpack.c.l.b16 %v4928
      %v5061 = vunpack.c.l.b16 %v4929
      %v5062 = vunpack.c.l.b16 %v4930
      %v5063 = vunpack.c.l.b16 %v4931
      %v5064 = vunpack.c.l.b16 %v4932
      %v5065 = vunpack.c.l.b16 %v4933
      %v5066 = vpack.c.b16 %v5003, %v5002
      %v5067 = vpack.c.b16 %v5005, %v5004
      %v5068 = vpack.c.b16 %v5007, %v5006
      %v5069 = vpack.c.b16 %v5009, %v5008
      %v5070 = vpack.c.b16 %v5011, %v5010
      %v5071 = vpack.c.b16 %v5013, %v5012
      %v5072 = vpack.c.b16 %v5015, %v5014
      %v5073 = vpack.c.b16 %v5017, %v5016
      %v5074 = vpack.c.b16 %v5019, %v5018
      %v5075 = vpack.c.b16 %v5021, %v5020
      %v5076 = vpack.c.b16 %v5023, %v5022
      %v5077 = vpack.c.b16 %v5025, %v5024
      %v5078 = vpack.c.b16 %v5027, %v5026
      %v5079 = vpack.c.b16 %v5029, %v5028
      %v5080 = vpack.c.b16 %v5031, %v5030
      %v5081 = vpack.c.b16 %v5033, %v5032
      %v5082 = vpack.c.b16 %v5035, %v5034
      %v5083 = vpack.c.b16 %v5037, %v5036
      %v5084 = vpack.c.b16 %v5039, %v5038
      %v5085 = vpack.c.b16 %v5041, %v5040
      %v5086 = vpack.c.b16 %v5043, %v5042
      %v5087 = vpack.c.b16 %v5045, %v5044
      %v5088 = vpack.c.b16 %v5047, %v5046
      %v5089 = vpack.c.b16 %v5049, %v5048
      %v5090 = vpack.c.b16 %v5051, %v5050
      %v5091 = vpack.c.b16 %v5053, %v5052
      %v5092 = vpack.c.b16 %v5055, %v5054
      %v5093 = vpack.c.b16 %v5057, %v5056
      %v5094 = vpack.c.b16 %v5059, %v5058
      %v5095 = vpack.c.b16 %v5061, %v5060
      %v5096 = vpack.c.b16 %v5063, %v5062
      %v5097 = vpack.c.b16 %v5065, %v5064
      %5130 = vmatprep.subr.bf16.mxu0 0
      %5131 = vmatpush1.bf16.msra.mxu0 %v5066
      %5132 = vmatprep.subr.bf16.mxu0 0
      %5133 = vmatpush1.bf16.msra.mxu0 %v5067
      %5134 = vmatprep.subr.bf16.mxu0 0
      %5135 = vmatpush1.bf16.msra.mxu0 %v5068
      %5136 = vmatprep.subr.bf16.mxu0 0
      %5137 = vmatpush1.bf16.msra.mxu0 %v5069
      %5138 = vmatprep.subr.bf16.mxu0 0
      %5139 = vmatpush1.bf16.msra.mxu0 %v5070
      %5140 = vmatprep.subr.bf16.mxu0 0
      %5141 = vmatpush1.bf16.msra.mxu0 %v5071
      %5142 = vmatprep.subr.bf16.mxu0 0
      %5143 = vmatpush1.bf16.msra.mxu0 %v5072
      %5144 = vmatprep.subr.bf16.mxu0 0
      %5145 = vmatpush1.bf16.msra.mxu0 %v5073
      %5146 = vmatprep.subr.bf16.mxu0 0
      %5147 = vmatpush1.bf16.msra.mxu0 %v5074
      %5148 = vmatprep.subr.bf16.mxu0 0
      %5149 = vmatpush1.bf16.msra.mxu0 %v5075
      %5150 = vmatprep.subr.bf16.mxu0 0
      %5151 = vmatpush1.bf16.msra.mxu0 %v5076
      %5152 = vmatprep.subr.bf16.mxu0 0
      %5153 = vmatpush1.bf16.msra.mxu0 %v5077
      %5154 = vmatprep.subr.bf16.mxu0 0
      %5155 = vmatpush1.bf16.msra.mxu0 %v5078
      %5156 = vmatprep.subr.bf16.mxu0 0
      %5157 = vmatpush1.bf16.msra.mxu0 %v5079
      %5158 = vmatprep.subr.bf16.mxu0 0
      %5159 = vmatpush1.bf16.msra.mxu0 %v5080
      %5160 = vmatprep.subr.bf16.mxu0 0
      %5161 = vmatpush1.bf16.msra.mxu0 %v5081
      %5162 = vmatprep.mubr.bf16.mxu0 %v4807
      %5163 = vmatmul.mubr.bf16.gmra.mrb[0].mxu0 %v4806
      %v5164 = vpop.f32.mrb[0].mxu0
      %v5165 = vadd.f32 %v4937, %v5164
      %v5166 = vpop.f32.mrb[0].mxu0
      %v5167 = vpop.f32.mrb[0].mxu0
      %v5168 = vadd.f32 %v4937, %v5167
      %v5169 = vpop.f32.mrb[0].mxu0
      %5170 = vmatprep.mubr.bf16.mxu0 %v4811
      %5171 = vmatmul.mubr.bf16.gmra.mrb[0].mxu0 %v4810
      %v5172 = vpop.f32.mrb[0].mxu0
      %v5173 = vadd.f32 %v4937, %v5172
      %v5174 = vpop.f32.mrb[0].mxu0
      %v5175 = vpop.f32.mrb[0].mxu0
      %v5176 = vadd.f32 %v4937, %v5175
      %v5177 = vpop.f32.mrb[0].mxu0
      %5178 = vmatprep.mubr.bf16.mxu0 %v4815
      %5179 = vmatmul.mubr.bf16.gmra.mrb[0].mxu0 %v4814
      %v5180 = vpop.f32.mrb[0].mxu0
      %v5181 = vadd.f32 %v4937, %v5180
      %v5182 = vpop.f32.mrb[0].mxu0
      %v5183 = vpop.f32.mrb[0].mxu0
      %v5184 = vadd.f32 %v4937, %v5183
      %v5185 = vpop.f32.mrb[0].mxu0
      %5186 = vmatprep.mubr.bf16.mxu0 %v4819
      %5187 = vmatmul.mubr.bf16.gmra.mrb[0].mxu0 %v4818
      %v5188 = vpop.f32.mrb[0].mxu0
      %v5189 = vadd.f32 %v4937, %v5188
      %v5190 = vpop.f32.mrb[0].mxu0
      %v5191 = vpop.f32.mrb[0].mxu0
      %v5192 = vadd.f32 %v4937, %v5191
      %v5193 = vpop.f32.mrb[0].mxu0
      %5194 = vmatprep.mubr.bf16.mxu0 %v4823
      %5195 = vmatmul.mubr.bf16.gmra.mrb[0].mxu0 %v4822
      %v5196 = vpop.f32.mrb[0].mxu0
      %v5197 = vadd.f32 %v4937, %v5196
      %v5198 = vpop.f32.mrb[0].mxu0
      %v5199 = vpop.f32.mrb[0].mxu0
      %v5200 = vadd.f32 %v4937, %v5199
      %v5201 = vpop.f32.mrb[0].mxu0
      %5202 = vmatprep.mubr.bf16.mxu0 %v4827
      %5203 = vmatmul.mubr.bf16.gmra.mrb[0].mxu0 %v4826
      %v5204 = vpop.f32.mrb[0].mxu0
      %v5205 = vadd.f32 %v4937, %v5204
      %v5206 = vpop.f32.mrb[0].mxu0
      %v5207 = vpop.f32.mrb[0].mxu0
      %v5208 = vadd.f32 %v4937, %v5207
      %v5209 = vpop.f32.mrb[0].mxu0
      %5210 = vmatprep.mubr.bf16.mxu0 %v4831
      %5211 = vmatmul.mubr.bf16.gmra.mrb[0].mxu0 %v4830
      %v5212 = vpop.f32.mrb[0].mxu0
      %v5213 = vadd.f32 %v4937, %v5212
      %v5214 = vpop.f32.mrb[0].mxu0
      %v5215 = vpop.f32.mrb[0].mxu0
      %v5216 = vadd.f32 %v4937, %v5215
      %v5217 = vpop.f32.mrb[0].mxu0
      %5218 = vmatprep.mubr.bf16.mxu0 %v4835
      %5219 = vmatmul.mubr.bf16.gmra.mrb[0].mxu0 %v4834
      %v5220 = vpop.f32.mrb[0].mxu0
      %v5221 = vadd.f32 %v4937, %v5220
      %v5222 = vpop.f32.mrb[0].mxu0
      %v5223 = vpop.f32.mrb[0].mxu0
      %v5224 = vadd.f32 %v4937, %v5223
      %v5225 = vpop.f32.mrb[0].mxu0
      %5226 = vmatprep.mubr.bf16.mxu0 %v4839
      %5227 = vmatmul.mubr.bf16.gmra.mrb[0].mxu0 %v4838
      %v5228 = vpop.f32.mrb[0].mxu0
      %v5229 = vadd.f32 %v4937, %v5228
      %v5230 = vpop.f32.mrb[0].mxu0
      %v5231 = vpop.f32.mrb[0].mxu0
      %v5232 = vadd.f32 %v4937, %v5231
      %v5233 = vpop.f32.mrb[0].mxu0
      %5234 = vmatprep.mubr.bf16.mxu0 %v4843
      %5235 = vmatmul.mubr.bf16.gmra.mrb[0].mxu0 %v4842
      %v5236 = vpop.f32.mrb[0].mxu0
      %v5237 = vadd.f32 %v4937, %v5236
      %v5238 = vpop.f32.mrb[0].mxu0
      %v5239 = vpop.f32.mrb[0].mxu0
      %v5240 = vadd.f32 %v4937, %v5239
      %v5241 = vpop.f32.mrb[0].mxu0
      %5242 = vmatprep.mubr.bf16.mxu0 %v4847
      %5243 = vmatmul.mubr.bf16.gmra.mrb[0].mxu0 %v4846
      %v5244 = vpop.f32.mrb[0].mxu0
      %v5245 = vadd.f32 %v4937, %v5244
      %v5246 = vpop.f32.mrb[0].mxu0
      %v5247 = vpop.f32.mrb[0].mxu0
      %v5248 = vadd.f32 %v4937, %v5247
      %v5249 = vpop.f32.mrb[0].mxu0
      %5250 = vmatprep.mubr.bf16.mxu0 %v4851
      %5251 = vmatmul.mubr.bf16.gmra.mrb[0].mxu0 %v4850
      %v5252 = vpop.f32.mrb[0].mxu0
      %v5253 = vadd.f32 %v4937, %v5252
      %v5254 = vpop.f32.mrb[0].mxu0
      %v5255 = vpop.f32.mrb[0].mxu0
      %v5256 = vadd.f32 %v4937, %v5255
      %v5257 = vpop.f32.mrb[0].mxu0
      %5258 = vmatprep.mubr.bf16.mxu0 %v4855
      %5259 = vmatmul.mubr.bf16.gmra.mrb[0].mxu0 %v4854
      %v5260 = vpop.f32.mrb[0].mxu0
      %v5261 = vadd.f32 %v4937, %v5260
      %v5262 = vpop.f32.mrb[0].mxu0
      %v5263 = vpop.f32.mrb[0].mxu0
      %v5264 = vadd.f32 %v4937, %v5263
      %v5265 = vpop.f32.mrb[0].mxu0
      %5266 = vmatprep.mubr.bf16.mxu0 %v4859
      %5267 = vmatmul.mubr.bf16.gmra.mrb[0].mxu0 %v4858
      %v5268 = vpop.f32.mrb[0].mxu0
      %v5269 = vadd.f32 %v4937, %v5268
      %v5270 = vpop.f32.mrb[0].mxu0
      %v5271 = vpop.f32.mrb[0].mxu0
      %v5272 = vadd.f32 %v4937, %v5271
      %v5273 = vpop.f32.mrb[0].mxu0
      %5274 = vmatprep.mubr.bf16.mxu0 %v4863
      %5275 = vmatmul.mubr.bf16.gmra.mrb[0].mxu0 %v4862
      %v5276 = vpop.f32.mrb[0].mxu0
      %v5277 = vadd.f32 %v4937, %v5276
      %v5278 = vpop.f32.mrb[0].mxu0
      %v5279 = vpop.f32.mrb[0].mxu0
      %v5280 = vadd.f32 %v4937, %v5279
      %v5281 = vpop.f32.mrb[0].mxu0
      %5282 = vmatprep.mubr.bf16.mxu0 %v4867
      %5283 = vmatmul.mubr.bf16.gmra.mrb[0].mxu0 %v4866
      %v5284 = vpop.f32.mrb[0].mxu0
      %v5285 = vadd.f32 %v4937, %v5284
      %v5286 = vpop.f32.mrb[0].mxu0
      %v5287 = vpop.f32.mrb[0].mxu0
      %v5288 = vadd.f32 %v4937, %v5287
      %v5289 = vpop.f32.mrb[0].mxu0
      %5290 = vdwg.mxu0
      %5291 = vmatprep.subr.bf16.mxu0 0
      %5292 = vmatpush1.bf16.msra.mxu0 %v5082
      %5293 = vmatprep.subr.bf16.mxu0 0
      %5294 = vmatpush1.bf16.msra.mxu0 %v5083
      %5295 = vmatprep.subr.bf16.mxu0 0
      %5296 = vmatpush1.bf16.msra.mxu0 %v5084
      %5297 = vmatprep.subr.bf16.mxu0 0
      %5298 = vmatpush1.bf16.msra.mxu0 %v5085
      %5299 = vmatprep.subr.bf16.mxu0 0
      %5300 = vmatpush1.bf16.msra.mxu0 %v5086
      %5301 = vmatprep.subr.bf16.mxu0 0
      %5302 = vmatpush1.bf16.msra.mxu0 %v5087
      %5303 = vmatprep.subr.bf16.mxu0 0
      %5304 = vmatpush1.bf16.msra.mxu0 %v5088
      %5305 = vmatprep.subr.bf16.mxu0 0
      %5306 = vmatpush1.bf16.msra.mxu0 %v5089
      %5307 = vmatprep.subr.bf16.mxu0 0
      %5308 = vmatpush1.bf16.msra.mxu0 %v5090
      %5309 = vmatprep.subr.bf16.mxu0 0
      %5310 = vmatpush1.bf16.msra.mxu0 %v5091
      %5311 = vmatprep.subr.bf16.mxu0 0
      %5312 = vmatpush1.bf16.msra.mxu0 %v5092
      %5313 = vmatprep.subr.bf16.mxu0 0
      %5314 = vmatpush1.bf16.msra.mxu0 %v5093
      %5315 = vmatprep.subr.bf16.mxu0 0
      %5316 = vmatpush1.bf16.msra.mxu0 %v5094
      %5317 = vmatprep.subr.bf16.mxu0 0
      %5318 = vmatpush1.bf16.msra.mxu0 %v5095
      %5319 = vmatprep.subr.bf16.mxu0 0
      %5320 = vmatpush1.bf16.msra.mxu0 %v5096
      %5321 = vmatprep.subr.bf16.mxu0 0
      %5322 = vmatpush1.bf16.msra.mxu0 %v5097
      %5323 = vmatprep.mubr.bf16.mxu0 %v4809
      %5324 = vmatmul.mubr.bf16.gmra.mrb[0].mxu0 %v4808
      %v5325 = vpop.f32.mrb[0].mxu0
      %v5326 = vadd.f32 %v5165, %v5325
      %v5327 = vpop.f32.mrb[0].mxu0
      %v5328 = vpop.f32.mrb[0].mxu0
      %v5329 = vadd.f32 %v5168, %v5328
      %v5330 = vpop.f32.mrb[0].mxu0
      %5331 = vmatprep.mubr.bf16.mxu0 %v4813
      %5332 = vmatmul.mubr.bf16.gmra.mrb[0].mxu0 %v4812
      %v5333 = vpop.f32.mrb[0].mxu0
      %v5334 = vadd.f32 %v5173, %v5333
      %v5335 = vpop.f32.mrb[0].mxu0
      %v5336 = vpop.f32.mrb[0].mxu0
      %v5337 = vadd.f32 %v5176, %v5336
      %v5338 = vpop.f32.mrb[0].mxu0
      %5339 = vmatprep.mubr.bf16.mxu0 %v4817
      %5340 = vmatmul.mubr.bf16.gmra.mrb[0].mxu0 %v4816
      %v5341 = vpop.f32.mrb[0].mxu0
      %v5342 = vadd.f32 %v5181, %v5341
      %v5343 = vpop.f32.mrb[0].mxu0
      %v5344 = vpop.f32.mrb[0].mxu0
      %v5345 = vadd.f32 %v5184, %v5344
      %v5346 = vpop.f32.mrb[0].mxu0
      %5347 = vmatprep.mubr.bf16.mxu0 %v4821
      %5348 = vmatmul.mubr.bf16.gmra.mrb[0].mxu0 %v4820
      %v5349 = vpop.f32.mrb[0].mxu0
      %v5350 = vadd.f32 %v5189, %v5349
      %v5351 = vpop.f32.mrb[0].mxu0
      %v5352 = vpop.f32.mrb[0].mxu0
      %v5353 = vadd.f32 %v5192, %v5352
      %v5354 = vpop.f32.mrb[0].mxu0
      %5355 = vmatprep.mubr.bf16.mxu0 %v4825
      %5356 = vmatmul.mubr.bf16.gmra.mrb[0].mxu0 %v4824
      %v5357 = vpop.f32.mrb[0].mxu0
      %v5358 = vadd.f32 %v5197, %v5357
      %v5359 = vpop.f32.mrb[0].mxu0
      %v5360 = vpop.f32.mrb[0].mxu0
      %v5361 = vadd.f32 %v5200, %v5360
      %v5362 = vpop.f32.mrb[0].mxu0
      %5363 = vmatprep.mubr.bf16.mxu0 %v4829
      %5364 = vmatmul.mubr.bf16.gmra.mrb[0].mxu0 %v4828
      %v5365 = vpop.f32.mrb[0].mxu0
      %v5366 = vadd.f32 %v5205, %v5365
      %v5367 = vpop.f32.mrb[0].mxu0
      %v5368 = vpop.f32.mrb[0].mxu0
      %v5369 = vadd.f32 %v5208, %v5368
      %v5370 = vpop.f32.mrb[0].mxu0
      %5371 = vmatprep.mubr.bf16.mxu0 %v4833
      %5372 = vmatmul.mubr.bf16.gmra.mrb[0].mxu0 %v4832
      %v5373 = vpop.f32.mrb[0].mxu0
      %v5374 = vadd.f32 %v5213, %v5373
      %v5375 = vpop.f32.mrb[0].mxu0
      %v5376 = vpop.f32.mrb[0].mxu0
      %v5377 = vadd.f32 %v5216, %v5376
      %v5378 = vpop.f32.mrb[0].mxu0
      %5379 = vmatprep.mubr.bf16.mxu0 %v4837
      %5380 = vmatmul.mubr.bf16.gmra.mrb[0].mxu0 %v4836
      %v5381 = vpop.f32.mrb[0].mxu0
      %v5382 = vadd.f32 %v5221, %v5381
      %v5383 = vpop.f32.mrb[0].mxu0
      %v5384 = vpop.f32.mrb[0].mxu0
      %v5385 = vadd.f32 %v5224, %v5384
      %v5386 = vpop.f32.mrb[0].mxu0
      %5387 = vmatprep.mubr.bf16.mxu0 %v4841
      %5388 = vmatmul.mubr.bf16.gmra.mrb[0].mxu0 %v4840
      %v5389 = vpop.f32.mrb[0].mxu0
      %v5390 = vadd.f32 %v5229, %v5389
      %v5391 = vpop.f32.mrb[0].mxu0
      %v5392 = vpop.f32.mrb[0].mxu0
      %v5393 = vadd.f32 %v5232, %v5392
      %v5394 = vpop.f32.mrb[0].mxu0
      %5395 = vmatprep.mubr.bf16.mxu0 %v4845
      %5396 = vmatmul.mubr.bf16.gmra.mrb[0].mxu0 %v4844
      %v5397 = vpop.f32.mrb[0].mxu0
      %v5398 = vadd.f32 %v5237, %v5397
      %v5399 = vpop.f32.mrb[0].mxu0
      %v5400 = vpop.f32.mrb[0].mxu0
      %v5401 = vadd.f32 %v5240, %v5400
      %v5402 = vpop.f32.mrb[0].mxu0
      %5403 = vmatprep.mubr.bf16.mxu0 %v4849
      %5404 = vmatmul.mubr.bf16.gmra.mrb[0].mxu0 %v4848
      %v5405 = vpop.f32.mrb[0].mxu0
      %v5406 = vadd.f32 %v5245, %v5405
      %v5407 = vpop.f32.mrb[0].mxu0
      %v5408 = vpop.f32.mrb[0].mxu0
      %v5409 = vadd.f32 %v5248, %v5408
      %v5410 = vpop.f32.mrb[0].mxu0
      %5411 = vmatprep.mubr.bf16.mxu0 %v4853
      %5412 = vmatmul.mubr.bf16.gmra.mrb[0].mxu0 %v4852
      %v5413 = vpop.f32.mrb[0].mxu0
      %v5414 = vadd.f32 %v5253, %v5413
      %v5415 = vpop.f32.mrb[0].mxu0
      %v5416 = vpop.f32.mrb[0].mxu0
      %v5417 = vadd.f32 %v5256, %v5416
      %v5418 = vpop.f32.mrb[0].mxu0
      %5419 = vmatprep.mubr.bf16.mxu0 %v4857
      %5420 = vmatmul.mubr.bf16.gmra.mrb[0].mxu0 %v4856
      %v5421 = vpop.f32.mrb[0].mxu0
      %v5422 = vadd.f32 %v5261, %v5421
      %v5423 = vpop.f32.mrb[0].mxu0
      %v5424 = vpop.f32.mrb[0].mxu0
      %v5425 = vadd.f32 %v5264, %v5424
      %v5426 = vpop.f32.mrb[0].mxu0
      %5427 = vmatprep.mubr.bf16.mxu0 %v4861
      %5428 = vmatmul.mubr.bf16.gmra.mrb[0].mxu0 %v4860
      %v5429 = vpop.f32.mrb[0].mxu0
      %v5430 = vadd.f32 %v5269, %v5429
      %v5431 = vpop.f32.mrb[0].mxu0
      %v5432 = vpop.f32.mrb[0].mxu0
      %v5433 = vadd.f32 %v5272, %v5432
      %v5434 = vpop.f32.mrb[0].mxu0
      %5435 = vmatprep.mubr.bf16.mxu0 %v4865
      %5436 = vmatmul.mubr.bf16.gmra.mrb[0].mxu0 %v4864
      %v5437 = vpop.f32.mrb[0].mxu0
      %v5438 = vadd.f32 %v5277, %v5437
      %v5439 = vpop.f32.mrb[0].mxu0
      %v5440 = vpop.f32.mrb[0].mxu0
      %v5441 = vadd.f32 %v5280, %v5440
      %v5442 = vpop.f32.mrb[0].mxu0
      %5443 = vmatprep.mubr.bf16.mxu0 %v4869
      %5444 = vmatmul.mubr.bf16.gmra.mrb[0].mxu0 %v4868
      %v5445 = vpop.f32.mrb[0].mxu0
      %v5446 = vadd.f32 %v5285, %v5445
      %v5447 = vpop.f32.mrb[0].mxu0
      %v5448 = vpop.f32.mrb[0].mxu0
      %v5449 = vadd.f32 %v5288, %v5448
      %v5450 = vpop.f32.mrb[0].mxu0
      %5451 = vdwg.mxu0
      %v5452 = vsub.f32 0.0, %v5326
      %v5453 = vsub.f32 0.0, %v5329
      %v5454 = vsub.f32 0.0, %v5334
      %v5455 = vsub.f32 0.0, %v5337
      %v5456 = vsub.f32 0.0, %v5342
      %v5457 = vsub.f32 0.0, %v5345
      %v5458 = vsub.f32 0.0, %v5350
      %v5459 = vsub.f32 0.0, %v5353
      %v5460 = vsub.f32 0.0, %v5358
      %v5461 = vsub.f32 0.0, %v5361
      %v5462 = vsub.f32 0.0, %v5366
      %v5463 = vsub.f32 0.0, %v5369
      %v5464 = vsub.f32 0.0, %v5374
      %v5465 = vsub.f32 0.0, %v5377
      %v5466 = vsub.f32 0.0, %v5382
      %v5467 = vsub.f32 0.0, %v5385
      %v5468 = vsub.f32 0.0, %v5390
      %v5469 = vsub.f32 0.0, %v5393
      %v5470 = vsub.f32 0.0, %v5398
      %v5471 = vsub.f32 0.0, %v5401
      %v5472 = vsub.f32 0.0, %v5406
      %v5473 = vsub.f32 0.0, %v5409
      %v5474 = vsub.f32 0.0, %v5414
      %v5475 = vsub.f32 0.0, %v5417
      %v5476 = vsub.f32 0.0, %v5422
      %v5477 = vsub.f32 0.0, %v5425
      %v5478 = vsub.f32 0.0, %v5430
      %v5479 = vsub.f32 0.0, %v5433
      %v5480 = vsub.f32 0.0, %v5438
      %v5481 = vsub.f32 0.0, %v5441
      %v5482 = vsub.f32 0.0, %v5446
      %v5483 = vsub.f32 0.0, %v5449
      %v5484 = vmul.f32 %v5452, 1.442695
      %v5485 = vpow.pop %v5484
      %v5486 = vmul.f32 %v5453, 1.442695
      %v5487 = vpow.pop %v5486
      %v5488 = vmul.f32 %v5454, 1.442695
      %v5489 = vpow.pop %v5488
      %v5490 = vmul.f32 %v5455, 1.442695
      %v5491 = vpow.pop %v5490
      %v5492 = vmul.f32 %v5456, 1.442695
      %v5493 = vpow.pop %v5492
      %v5494 = vmul.f32 %v5457, 1.442695
      %v5495 = vpow.pop %v5494
      %v5496 = vmul.f32 %v5458, 1.442695
      %v5497 = vpow.pop %v5496
      %v5498 = vmul.f32 %v5459, 1.442695
      %v5499 = vpow.pop %v5498
      %v5500 = vmul.f32 %v5460, 1.442695
      %v5501 = vpow.pop %v5500
      %v5502 = vmul.f32 %v5461, 1.442695
      %v5503 = vpow.pop %v5502
      %v5504 = vmul.f32 %v5462, 1.442695
      %v5505 = vpow.pop %v5504
      %v5506 = vmul.f32 %v5463, 1.442695
      %v5507 = vpow.pop %v5506
      %v5508 = vmul.f32 %v5464, 1.442695
      %v5509 = vpow.pop %v5508
      %v5510 = vmul.f32 %v5465, 1.442695
      %v5511 = vpow.pop %v5510
      %v5512 = vmul.f32 %v5466, 1.442695
      %v5513 = vpow.pop %v5512
      %v5514 = vmul.f32 %v5467, 1.442695
      %v5515 = vpow.pop %v5514
      %v5516 = vmul.f32 %v5468, 1.442695
      %v5517 = vpow.pop %v5516
      %v5518 = vmul.f32 %v5469, 1.442695
      %v5519 = vpow.pop %v5518
      %v5520 = vmul.f32 %v5470, 1.442695
      %v5521 = vpow.pop %v5520
      %v5522 = vmul.f32 %v5471, 1.442695
      %v5523 = vpow.pop %v5522
      %v5524 = vmul.f32 %v5472, 1.442695
      %v5525 = vpow.pop %v5524
      %v5526 = vmul.f32 %v5473, 1.442695
      %v5527 = vpow.pop %v5526
      %v5528 = vmul.f32 %v5474, 1.442695
      %v5529 = vpow.pop %v5528
      %v5530 = vmul.f32 %v5475, 1.442695
      %v5531 = vpow.pop %v5530
      %v5532 = vmul.f32 %v5476, 1.442695
      %v5533 = vpow.pop %v5532
      %v5534 = vmul.f32 %v5477, 1.442695
      %v5535 = vpow.pop %v5534
      %v5536 = vmul.f32 %v5478, 1.442695
      %v5537 = vpow.pop %v5536
      %v5538 = vmul.f32 %v5479, 1.442695
      %v5539 = vpow.pop %v5538
      %v5540 = vmul.f32 %v5480, 1.442695
      %v5541 = vpow.pop %v5540
      %v5542 = vmul.f32 %v5481, 1.442695
      %v5543 = vpow.pop %v5542
      %v5544 = vmul.f32 %v5482, 1.442695
      %v5545 = vpow.pop %v5544
      %v5546 = vmul.f32 %v5483, 1.442695
      %v5547 = vpow.pop %v5546
      %v5548 = vadd.f32 %v5485, 1.0
      %v5549 = vadd.f32 %v5487, 1.0
      %v5550 = vadd.f32 %v5489, 1.0
      %v5551 = vadd.f32 %v5491, 1.0
      %v5552 = vadd.f32 %v5493, 1.0
      %v5553 = vadd.f32 %v5495, 1.0
      %v5554 = vadd.f32 %v5497, 1.0
      %v5555 = vadd.f32 %v5499, 1.0
      %v5556 = vadd.f32 %v5501, 1.0
      %v5557 = vadd.f32 %v5503, 1.0
      %v5558 = vadd.f32 %v5505, 1.0
      %v5559 = vadd.f32 %v5507, 1.0
      %v5560 = vadd.f32 %v5509, 1.0
      %v5561 = vadd.f32 %v5511, 1.0
      %v5562 = vadd.f32 %v5513, 1.0
      %v5563 = vadd.f32 %v5515, 1.0
      %v5564 = vadd.f32 %v5517, 1.0
      %v5565 = vadd.f32 %v5519, 1.0
      %v5566 = vadd.f32 %v5521, 1.0
      %v5567 = vadd.f32 %v5523, 1.0
      %v5568 = vadd.f32 %v5525, 1.0
      %v5569 = vadd.f32 %v5527, 1.0
      %v5570 = vadd.f32 %v5529, 1.0
      %v5571 = vadd.f32 %v5531, 1.0
      %v5572 = vadd.f32 %v5533, 1.0
      %v5573 = vadd.f32 %v5535, 1.0
      %v5574 = vadd.f32 %v5537, 1.0
      %v5575 = vadd.f32 %v5539, 1.0
      %v5576 = vadd.f32 %v5541, 1.0
      %v5577 = vadd.f32 %v5543, 1.0
      %v5578 = vadd.f32 %v5545, 1.0
      %v5579 = vadd.f32 %v5547, 1.0
      %v5580 = vrcp.pop %v5548
      %v5581 = vrcp.pop %v5549
      %v5582 = vrcp.pop %v5550
      %v5583 = vrcp.pop %v5551
      %v5584 = vrcp.pop %v5552
      %v5585 = vrcp.pop %v5553
      %v5586 = vrcp.pop %v5554
      %v5587 = vrcp.pop %v5555
      %v5588 = vrcp.pop %v5556
      %v5589 = vrcp.pop %v5557
      %v5590 = vrcp.pop %v5558
      %v5591 = vrcp.pop %v5559
      %v5592 = vrcp.pop %v5560
      %v5593 = vrcp.pop %v5561
      %v5594 = vrcp.pop %v5562
      %v5595 = vrcp.pop %v5563
      %v5596 = vrcp.pop %v5564
      %v5597 = vrcp.pop %v5565
      %v5598 = vrcp.pop %v5566
      %v5599 = vrcp.pop %v5567
      %v5600 = vrcp.pop %v5568
      %v5601 = vrcp.pop %v5569
      %v5602 = vrcp.pop %v5570
      %v5603 = vrcp.pop %v5571
      %v5604 = vrcp.pop %v5572
      %v5605 = vrcp.pop %v5573
      %v5606 = vrcp.pop %v5574
      %v5607 = vrcp.pop %v5575
      %v5608 = vrcp.pop %v5576
      %v5609 = vrcp.pop %v5577
      %v5610 = vrcp.pop %v5578
      %v5611 = vrcp.pop %v5579
      %5612 = vst [vmem:[%s253] sm:$0xff] %v5580
      %5613 = vst [vmem:[%s253 + $0x8] sm:$0xff] %v5581
      %5614 = vst [vmem:[%s253 + $0x10] sm:$0xff] %v5582
      %5615 = vst [vmem:[%s253 + $0x18] sm:$0xff] %v5583
      %5616 = vst [vmem:[%s253 + $0x20] sm:$0xff] %v5584
      %5617 = vst [vmem:[%s253 + $0x28] sm:$0xff] %v5585
      %5618 = vst [vmem:[%s253 + $0x30] sm:$0xff] %v5586
      %5619 = vst [vmem:[%s253 + $0x38] sm:$0xff] %v5587
      %5620 = vst [vmem:[%s253 + $0x40] sm:$0xff] %v5588
      %5621 = vst [vmem:[%s253 + $0x48] sm:$0xff] %v5589
      %5622 = vst [vmem:[%s253 + $0x50] sm:$0xff] %v5590
      %5623 = vst [vmem:[%s253 + $0x58] sm:$0xff] %v5591
      %5624 = vst [vmem:[%s253 + $0x60] sm:$0xff] %v5592
      %5625 = vst [vmem:[%s253 + $0x68] sm:$0xff] %v5593
      %5626 = vst [vmem:[%s253 + $0x70] sm:$0xff] %v5594
      %5627 = vst [vmem:[%s253 + $0x78] sm:$0xff] %v5595
      %5628 = vst [vmem:[%s253 + $0x80] sm:$0xff] %v5596
      %5629 = vst [vmem:[%s253 + $0x88] sm:$0xff] %v5597
      %5630 = vst [vmem:[%s253 + $0x90] sm:$0xff] %v5598
      %5631 = vst [vmem:[%s253 + $0x98] sm:$0xff] %v5599
      %5632 = vst [vmem:[%s253 + $0xa0] sm:$0xff] %v5600
      %5633 = vst [vmem:[%s253 + $0xa8] sm:$0xff] %v5601
      %5634 = vst [vmem:[%s253 + $0xb0] sm:$0xff] %v5602
      %5635 = vst [vmem:[%s253 + $0xb8] sm:$0xff] %v5603
      %5636 = vst [vmem:[%s253 + $0xc0] sm:$0xff] %v5604
      %5637 = vst [vmem:[%s253 + $0xc8] sm:$0xff] %v5605
      %5638 = vst [vmem:[%s253 + $0xd0] sm:$0xff] %v5606
      %5639 = vst [vmem:[%s253 + $0xd8] sm:$0xff] %v5607
      %5640 = vst [vmem:[%s253 + $0xe0] sm:$0xff] %v5608
      %5641 = vst [vmem:[%s253 + $0xe8] sm:$0xff] %v5609
      %5642 = vst [vmem:[%s253 + $0xf0] sm:$0xff] %v5610
      %5643 = vst [vmem:[%s253 + $0xf8] sm:$0xff] %v5611
      %s5644 = smul.u32 32, %s17
      %p5645 = scmp.lt.s32.totalorder %s5644, 127
      %s5646 = scalar_select %p5645, %s5644, 127
      %s5647 = smul.addr %s5646, 8
      %s5648 = scalar_lea.vmem %s6, %s5647
      // Predicated region
      $region45: #{_lambda_.1} parent=43 // pred_check
        %p5649 = pneg %p166
      $region46: #{_lambda_.1} parent=43 // pred_check_branch
        %5651 = sbr.rel (%p5649) target = $region48
      $region47: #{_lambda_.1} parent=43 // pred_region
        %s5652 = smul.u32 32, %s17
      $region48: #{_lambda_.1} parent=43 // pred_fallthru
        _
    $region44: #{_lambda_.1} parent=5 // pred_fallthru
      _
    %p5653 = scmp.le.s32.totalorder 2, %s12
    // Predicated region
    $region49: #{_lambda_.1} parent=5 // pred_check
      %p5654 = pneg %p5653
    $region50: #{_lambda_.1} parent=5 // pred_check_branch
      %5656 = sbr.rel (%p5654) target = $region52
    $region51: #{_lambda_.1} parent=5 // pred_region
      %s5657 = ssub.s32 %s12, 2
      // Predicated region
      $region53: #{_lambda_.1} parent=51 // pred_check
        %p5658 = pneg %p172
      $region54: #{_lambda_.1} parent=51 // pred_check_branch
        %5660 = sbr.rel (%p5658) target = $region56
      $region55: #{_lambda_.1} parent=51 // pred_region
        %s5661 = smul.u32 32, %s18
        %p5662 = scmp.lt.s32.totalorder %s5661, 127
        %s5663 = scalar_select %p5662, %s5661, 127
        %s5664 = smul.addr %s5663, 8
        %s5665 = scalar_lea.vmem %s6, %s5664
      $region56: #{_lambda_.1} parent=51 // pred_fallthru
        _
    $region52: #{_lambda_.1} parent=5 // pred_fallthru
      _
  $region6: #{_lambda_.1} parent=0 // loop_footer
    %s16 = sadd.s32 1, %s12
  $region7: #{_lambda_.1} parent=0 // loop_footer_branch
    %11 = sbr.rel target = $region3
  $region8: #{_lambda_.1} parent=0 // loop_exit
    _

</llo_original>
